<compile_context>
chip_gen: v6e
topology: v6e:2x2x1
jax: 0.10.0
libtpu: 0.0.40
codegen_flags: <defaults>
</compile_context>

<pallas_src>
import functools

import jax
import jax.numpy as jnp
import numpy as np
from jax.experimental import pallas as pl
from jax.experimental.pallas import tpu as pltpu


# ----------------------------------------------------------------------------
# Small helpers
# ----------------------------------------------------------------------------
def _round_up(x, m):
    return ((x + m - 1) // m) * m


def _vmem_capacity_bytes():
    try:
        info = pltpu.get_tpu_info()
        v = getattr(info, "vmem_capacity_bytes", None)
        if v:
            return int(v)
    except Exception:
        pass
    return 64 << 20  # conservative (v7x per-TC)


def _num_tensorcores():
    """Best-effort TC-per-chip count (2 on v7x, 1 on v5e/v6e)."""
    try:
        info = pltpu.get_tpu_info()
        for name in ("num_cores", "num_tensorcores", "tensor_cores_per_chip",
                     "cores_per_chip", "num_cores_per_chip"):
            v = getattr(info, name, None)
            if v:
                return int(v)
    except Exception:
        pass
    try:
        if "v7" in jax.devices()[0].device_kind.lower():
            return 2
    except Exception:
        pass
    return 1


def _vmem_budget_bytes(bt, L, E_pad, F_pad, cpad, ksz, dp_blocks):
    """Rough resident working-set estimate for one grid step."""
    bf16, f32 = 2, 4
    w = ksz * E_pad * F_pad * bf16                       # convert conv weights
    w += 2 * dp_blocks * ksz * F_pad * F_pad * bf16      # block weights
    w += F_pad * cpad * bf16                             # head weights
    w += (1 + 2 * dp_blocks) * F_pad * f32 + cpad * f32  # biases
    io = 2 * bt * L * E_pad * bf16 + 2 * bt * cpad * f32  # double-buffered I/O
    # level-0 activations dominate: conv_emb / h / feat (f32) + bf16 halo buf
    act = bt * (L + ksz) * F_pad * (3 * f32 + bf16) + bt * L * F_pad * f32
    return w + io + act


def _pick_block_b(B, L, E_pad, F_pad, cpad, ksz, dp_blocks, n_tc, vmem_cap):
    """Fold batch rows per grid step (MXU M = bt*L up to ~1024) subject to a
    VMEM budget; on multi-TC chips prefer tilings that balance the cores."""
    m_cap = max(1, 1024 // max(L, 1))
    cands = []
    for d in range(1, B + 1):
        if B % d:
            continue
        if d > m_cap:
            continue
        if _vmem_budget_bytes(d, L, E_pad, F_pad, cpad, ksz, dp_blocks) > vmem_cap:
            continue
        cands.append(d)
    if not cands:
        cands = [1]
    if n_tc > 1:
        balanced = [d for d in cands if (B // d) % n_tc == 0]
        if balanced:
            return max(balanced)
    return max(cands)


# ----------------------------------------------------------------------------
# In-kernel building blocks (operate on VMEM-resident values)
# ----------------------------------------------------------------------------
def _conv1d_same(x, w, b, ksz, *, relu_input):
    """1-D 'same' conv as ksz accumulated MXU matmuls.

    x: (bt, L, Cin) f32 or bf16;  w: (ksz*Cin, Cout) bf16;  b: (1, Cout) f32.
    A single halo-padded bf16 buffer (bt, L+2r, Cin) is built in VMEM and each
    tap is a static sublane slice fed to a K=Cin matmul with f32 accumulation.
    """
    bt, lc, cin = x.shape
    cout = w.shape[-1]
    r = ksz // 2
    if relu_input:
        x = jnp.maximum(x, 0.0)                    # f32 VPU math
    xh = x.astype(jnp.bfloat16)                    # MXU-boundary cast only
    z = jnp.zeros((bt, r, cin), xh.dtype)
    xp = jnp.concatenate([z, xh, z], axis=1)       # (bt, L+2r, Cin) halo buffer
    acc = jnp.zeros((bt * lc, cout), jnp.float32)
    for t in range(ksz):
        tap = xp[:, t:t + lc, :].reshape(bt * lc, cin)
        acc = acc + jnp.dot(tap, w[t * cin:(t + 1) * cin, :],
                            preferred_element_type=jnp.float32)
    return acc.reshape(bt, lc, cout) + b           # bias add in f32


def _maxpool1d_s2(x, ksz):
    """F.max_pool1d(x, ksz, stride=2), VALID.  x: (bt, L, C) -> (bt, Lp, C).

    Window max via shifted maxima, then stride-2 subsample via a lane-aligned
    (L, C) -> (L/2, 2C) reshape + lane slice (C is a multiple of 128)."""
    bt, lc, c = x.shape
    lw = lc - ksz + 1
    wm = x[:, :lw, :]
    for t in range(1, ksz):
        wm = jnp.maximum(wm, x[:, t:t + lw, :])
    lp = (lc - ksz) // 2 + 1
    pad = 2 * lp - lw                       # 0 or 1 (stride-2 only); padded row
    if pad > 0:                             # lands in the discarded odd half
        wm = jnp.concatenate([wm, wm[:, lw - pad:, :]], axis=1)
    wm = wm.reshape(bt, lp, 2 * c)
    return wm[:, :, :c]


# ----------------------------------------------------------------------------
# Fused DPCNN kernel: embeddings -> logits in one grid step per batch tile
# ----------------------------------------------------------------------------
def _dpcnn_kernel(emb_ref, cw_ref, cb_ref, bw_ref, bb_ref, lw_ref, lb_ref,
                  out_ref, *, ksz, dp_blocks):
    x = emb_ref[...]                                           # (bt, L, E_pad) bf16

    # convert_conv (no input ReLU)
    conv_emb = _conv1d_same(x, cw_ref[...], cb_ref[...], ksz, relu_input=False)

    # block 0: ReLU->conv->ReLU->conv, residual add
    h = _conv1d_same(conv_emb, bw_ref[0], bb_ref[0], ksz, relu_input=True)
    feat = _conv1d_same(h, bw_ref[1], bb_ref[1], ksz, relu_input=True) + conv_emb

    # pyramid levels: pool(stride 2) -> block -> residual
    for i in range(1, dp_blocks):
        pooled = _maxpool1d_s2(feat, ksz)
        h = _conv1d_same(pooled, bw_ref[2 * i], bb_ref[2 * i], ksz,
                         relu_input=True)
        feat = _conv1d_same(h, bw_ref[2 * i + 1], bb_ref[2 * i + 1], ksz,
                            relu_input=True) + pooled

    # head: global max over sequence + Linear (class dim zero-padded to 128)
    doc = jnp.max(feat, axis=1)                                # (bt, F_pad) f32
    out = jnp.dot(doc.astype(jnp.bfloat16), lw_ref[...],
                  preferred_element_type=jnp.float32) + lb_ref[...]
    out_ref[0] = out.astype(out_ref.dtype)


# ----------------------------------------------------------------------------
# Wrapper: weight repack (bf16, lane-padded) + pallas_call
# ----------------------------------------------------------------------------
def dpcnn_forward(params, tokens, *, kernel_size, dp_blocks, pooling_stride=2):
    """params: kernel-layout weights (conv weights as (k, Cin, Cout))."""
    ksz = kernel_size
    assert ksz % 2 == 1, "DPCNN kernel should be odd!"
    assert pooling_stride == 2, "DPCNN uses pooling stride 2"
    assert dp_blocks >= 1

    B, L = tokens.shape
    E = params["embedding"].shape[1]
    F = params["convert_w"].shape[2]
    n_class = params["lin_w"].shape[1]

    # Guard: every pooled level must still cover one pooling window.
    lvl = L
    for i in range(1, dp_blocks):
        assert lvl >= ksz, (
            f"DPCNN: sequence too short for dp_blocks={dp_blocks} "
            f"(level {i} length {lvl} < kernel_size {ksz})")
        lvl = (lvl - ksz) // 2 + 1
    assert lvl >= 1

    E_pad = _round_up(E, 128)
    F_pad = _round_up(F, 128)
    cpad = _round_up(n_class, 128)

    # Embedding gather (emb dropout is an inference identity) -> bf16, lane-pad.
    emb = jnp.take(params["embedding"].astype(jnp.float32), tokens, axis=0)
    emb = jnp.pad(emb.astype(jnp.bfloat16), ((0, 0), (0, 0), (0, E_pad - E)))

    # Repack weights: lane/sublane-padded, tap-stacked, bf16 for the MXU path;
    # biases stay f32 (added after f32 accumulation).
    cw = jnp.pad(params["convert_w"].astype(jnp.float32),
                 ((0, 0), (0, E_pad - E), (0, F_pad - F)))
    cw = cw.reshape(ksz * E_pad, F_pad).astype(jnp.bfloat16)
    cb = jnp.pad(params["convert_b"].astype(jnp.float32),
                 (0, F_pad - F)).reshape(1, F_pad)

    bw_list, bb_list = [], []
    for (w1, b1, w2, b2) in params["blocks"]:
        for w, b in ((w1, b1), (w2, b2)):
            wp = jnp.pad(w.astype(jnp.float32),
                         ((0, 0), (0, F_pad - F), (0, F_pad - F)))
            bw_list.append(wp.reshape(ksz * F_pad, F_pad).astype(jnp.bfloat16))
            bb_list.append(jnp.pad(b.astype(jnp.float32),
                                   (0, F_pad - F)).reshape(1, F_pad))
    bw = jnp.stack(bw_list)                         # (2*dp_blocks, k*F_pad, F_pad) bf16
    bb = jnp.stack(bb_list)                         # (2*dp_blocks, 1, F_pad) f32

    lw = jnp.pad(params["lin_w"].astype(jnp.float32),
                 ((0, F_pad - F), (0, cpad - n_class))).astype(jnp.bfloat16)
    lb = jnp.pad(params["lin_b"].astype(jnp.float32),
                 (0, cpad - n_class)).reshape(1, cpad)

    # Tile choice + explicit VMEM limit.
    phys_vmem = _vmem_capacity_bytes()
    n_tc = _num_tensorcores()
    vmem_cap = min(40 << 20, phys_vmem // 2)
    bt = _pick_block_b(B, L, E_pad, F_pad, cpad, ksz, dp_blocks, n_tc, vmem_cap)
    nb = B // bt
    budget = _vmem_budget_bytes(bt, L, E_pad, F_pad, cpad, ksz, dp_blocks)
    vmem_limit = int(min(phys_vmem * 9 // 10, max(32 << 20, 2 * budget)))

    kernel = functools.partial(_dpcnn_kernel, ksz=ksz, dp_blocks=dp_blocks)

    out = pl.pallas_call(
        kernel,
        grid=(nb,),
        in_specs=[
            pl.BlockSpec((bt, L, E_pad), lambda i: (i, 0, 0)),
            pl.BlockSpec((ksz * E_pad, F_pad), lambda i: (0, 0)),
            pl.BlockSpec((1, F_pad), lambda i: (0, 0)),
            pl.BlockSpec((2 * dp_blocks, ksz * F_pad, F_pad), lambda i: (0, 0, 0)),
            pl.BlockSpec((2 * dp_blocks, 1, F_pad), lambda i: (0, 0, 0)),
            pl.BlockSpec((F_pad, cpad), lambda i: (0, 0)),
            pl.BlockSpec((1, cpad), lambda i: (0, 0)),
        ],
        out_specs=pl.BlockSpec((1, bt, cpad), lambda i: (i, 0, 0)),
        out_shape=jax.ShapeDtypeStruct((nb, bt, cpad), jnp.float32),
        compiler_params=pltpu.CompilerParams(
            dimension_semantics=("parallel",),
            vmem_limit_bytes=vmem_limit),
    )(emb, cw, cb, bw, bb, lw, lb)

    # out_dropout is an inference identity; strip class padding.
    return out.reshape(B, cpad)[:, :n_class]


# ----------------------------------------------------------------------------
# Pure-JAX f32 reference (mimics torch NCL convs) for a correctness check
# ----------------------------------------------------------------------------
def dpcnn_reference(tparams, tokens, *, kernel_size, dp_blocks, pooling_stride=2):
    r = kernel_size // 2

    def conv(x, w, b):  # x: (B, C, L); w: (Cout, Cin, k) torch layout
        y = jax.lax.conv_general_dilated(
            x, w, window_strides=(1,), padding=[(r, r)],
            dimension_numbers=("NCH", "OIH", "NCH"))
        return y + b[None, :, None]

    def pool(x, k, s):
        return jax.lax.reduce_window(
            x, -jnp.inf, jax.lax.max,
            window_dimensions=(1, 1, k), window_strides=(1, 1, s),
            padding="VALID")

    emb = jnp.take(tparams["embedding"], tokens, axis=0)       # (B, L, E)
    x = jnp.transpose(emb, (0, 2, 1))                          # (B, E, L)
    conv_emb = conv(x, tparams["convert_w"], tparams["convert_b"])

    w1, b1, w2, b2 = tparams["blocks"][0]
    h = conv(jnp.maximum(conv_emb, 0.0), w1, b1)
    feat = conv(jnp.maximum(h, 0.0), w2, b2) + conv_emb

    for i in range(1, dp_blocks):
        pooled = pool(feat, kernel_size, pooling_stride)
        w1, b1, w2, b2 = tparams["blocks"][i]
        h = conv(jnp.maximum(pooled, 0.0), w1, b1)
        feat = conv(jnp.maximum(h, 0.0), w2, b2) + pooled

    doc = jnp.max(feat, axis=2)                                # (B, F)
    return doc @ tparams["lin_w"].T + tparams["lin_b"]


# ----------------------------------------------------------------------------
if __name__ == "__main__":
    # Small config consistent with the module's __init__
    B, L = 2, 16            # batch, sequence length
    n_dict, n_emb = 16, 32  # vocab, embedding dim
    n_filter = 32           # num_kernels
    kernel_size = 3         # must be odd
    dp_blocks = 2
    n_class = 4

    key = jax.random.PRNGKey(0)
    ks = jax.random.split(key, 5 + 4 * dp_blocks)

    def w_init(k, shape, scale=0.1):
        return (scale * jax.random.normal(k, shape)).astype(jnp.float32)

    # torch-layout parameters
    tparams = {
        "embedding": jax.random.normal(ks[0], (n_dict, n_emb)).astype(jnp.float32),
        "convert_w": w_init(ks[1], (n_filter, n_emb, kernel_size)),   # (Cout,Cin,k)
        "convert_b": w_init(ks[2], (n_filter,)),
        "lin_w": w_init(ks[3], (n_class, n_filter)),
        "lin_b": w_init(ks[4], (n_class,)),
        "blocks": [],
    }
    kc = 5
    for _ in range(dp_blocks):
        tparams["blocks"].append((
            w_init(ks[kc + 0], (n_filter, n_filter, kernel_size)),
            w_init(ks[kc + 1], (n_filter,)),
            w_init(ks[kc + 2], (n_filter, n_filter, kernel_size)),
            w_init(ks[kc + 3], (n_filter,)),
        ))
        kc += 4

    # kernel-layout parameters: conv weights (k, Cin, Cout); linear (K, n_class)
    params = {
        "embedding": tparams["embedding"],
        "convert_w": jnp.transpose(tparams["convert_w"], (2, 1, 0)),
        "convert_b": tparams["convert_b"],
        "lin_w": tparams["lin_w"].T,
        "lin_b": tparams["lin_b"],
        "blocks": [
            (jnp.transpose(w1, (2, 1, 0)), b1, jnp.transpose(w2, (2, 1, 0)), b2)
            for (w1, b1, w2, b2) in tparams["blocks"]
        ],
    }

    tokens = jax.random.randint(jax.random.PRNGKey(1), (B, L), 0, n_dict)

    out = dpcnn_forward(params, tokens, kernel_size=kernel_size,
                        dp_blocks=dp_blocks)
    out = jax.block_until_ready(out)

    ref = dpcnn_reference(tparams, tokens, kernel_size=kernel_size,
                          dp_blocks=dp_blocks)
    ref = jax.block_until_ready(ref)

    assert out.shape == (B, n_class), out.shape
    # bf16 MXU path vs f32 reference -> loosened tolerance (per perf review).
    np.testing.assert_allclose(np.asarray(out), np.asarray(ref),
                               rtol=3e-2, atol=3e-2)
    print("KERNEL_OK")
</pallas_src>

<mosaic_0001>
module attributes {stable_mosaic.version = 11 : i64} {
  func.func @_dpcnn_kernel(%arg0: i32, %arg1: memref<2x16x128xbf16, #tpu.memory_space<vmem>>, %arg2: memref<384x128xbf16, #tpu.memory_space<vmem>>, %arg3: memref<1x128xf32, #tpu.memory_space<vmem>>, %arg4: memref<4x384x128xbf16, #tpu.memory_space<vmem>>, %arg5: memref<4x1x128xf32, #tpu.memory_space<vmem>>, %arg6: memref<128x128xbf16, #tpu.memory_space<vmem>>, %arg7: memref<1x128xf32, #tpu.memory_space<vmem>>, %arg8: memref<1x2x128xf32, #tpu.memory_space<vmem>>) attributes {dimension_semantics = [#tpu.dimension_semantics<parallel>], iteration_bounds = array<i64: 1>, scalar_prefetch = 0 : i64, scratch_operands = 0 : i64, tpu.core_type = #tpu.core_type<tc>, window_params = [{transform_indices = @transform_0, window_bounds = array<i64: 2, 16, 128>}, {pipeline_mode = #tpu.pipeline_mode<synchronous>, transform_indices = @transform_1, window_bounds = array<i64: 384, 128>}, {pipeline_mode = #tpu.pipeline_mode<synchronous>, transform_indices = @transform_2, window_bounds = array<i64: 1, 128>}, {pipeline_mode = #tpu.pipeline_mode<synchronous>, transform_indices = @transform_3, window_bounds = array<i64: 4, 384, 128>}, {pipeline_mode = #tpu.pipeline_mode<synchronous>, transform_indices = @transform_4, window_bounds = array<i64: 4, 1, 128>}, {pipeline_mode = #tpu.pipeline_mode<synchronous>, transform_indices = @transform_5, window_bounds = array<i64: 128, 128>}, {pipeline_mode = #tpu.pipeline_mode<synchronous>, transform_indices = @transform_6, window_bounds = array<i64: 1, 128>}, {transform_indices = @transform_7, window_bounds = array<i64: 1, 2, 128>}]} {
    %c0 = arith.constant 0 : index
    %c0_0 = arith.constant 0 : index
    %c0_1 = arith.constant 0 : index
    %0 = vector.load %arg1[%c0, %c0_0, %c0_1] : memref<2x16x128xbf16, #tpu.memory_space<vmem>>, vector<2x16x128xbf16>
    %c0_2 = arith.constant 0 : index
    %c0_3 = arith.constant 0 : index
    %1 = vector.load %arg2[%c0_2, %c0_3] : memref<384x128xbf16, #tpu.memory_space<vmem>>, vector<384x128xbf16>
    %c0_4 = arith.constant 0 : index
    %c0_5 = arith.constant 0 : index
    %2 = vector.load %arg3[%c0_4, %c0_5] : memref<1x128xf32, #tpu.memory_space<vmem>>, vector<1x128xf32>
    %cst = arith.constant 0.000000e+00 : bf16
    %3 = vector.broadcast %cst : bf16 to vector<2x1x128xbf16>
    %4 = tpu.concatenate %3, %0, %3 in 1 : vector<2x1x128xbf16>, vector<2x16x128xbf16>, vector<2x1x128xbf16> -> vector<2x18x128xbf16>
    %cst_6 = arith.constant 0.000000e+00 : f32
    %5 = vector.broadcast %cst_6 : f32 to vector<32x128xf32>
    %6 = vector.extract_strided_slice %4 {offsets = [0, 0, 0], sizes = [2, 16, 128], strides = [1, 1, 1]} : vector<2x18x128xbf16> to vector<2x16x128xbf16>
    %7 = vector.shape_cast %6 : vector<2x16x128xbf16> to vector<32x128xbf16>
    %8 = vector.extract_strided_slice %1 {offsets = [0, 0], sizes = [128, 128], strides = [1, 1]} : vector<384x128xbf16> to vector<128x128xbf16>
    %cst_7 = arith.constant dense<0.000000e+00> : vector<32x128xf32>
    %9 = tpu.matmul %7, %8, %cst_7 {dimension_numbers = #tpu.dot_dimension_numbers<[1], [0], [0], [1], [0, 0, 1, 1], [], []>} : vector<32x128xbf16>, vector<128x128xbf16>, vector<32x128xf32> -> vector<32x128xf32>
    %10 = arith.addf %5, %9 : vector<32x128xf32>
    %11 = vector.extract_strided_slice %4 {offsets = [0, 1, 0], sizes = [2, 16, 128], strides = [1, 1, 1]} : vector<2x18x128xbf16> to vector<2x16x128xbf16>
    %12 = vector.shape_cast %11 : vector<2x16x128xbf16> to vector<32x128xbf16>
    %13 = vector.extract_strided_slice %1 {offsets = [128, 0], sizes = [128, 128], strides = [1, 1]} : vector<384x128xbf16> to vector<128x128xbf16>
    %cst_8 = arith.constant dense<0.000000e+00> : vector<32x128xf32>
    %14 = tpu.matmul %12, %13, %cst_8 {dimension_numbers = #tpu.dot_dimension_numbers<[1], [0], [0], [1], [0, 0, 1, 1], [], []>} : vector<32x128xbf16>, vector<128x128xbf16>, vector<32x128xf32> -> vector<32x128xf32>
    %15 = arith.addf %10, %14 : vector<32x128xf32>
    %16 = vector.extract_strided_slice %4 {offsets = [0, 2, 0], sizes = [2, 16, 128], strides = [1, 1, 1]} : vector<2x18x128xbf16> to vector<2x16x128xbf16>
    %17 = vector.shape_cast %16 : vector<2x16x128xbf16> to vector<32x128xbf16>
    %18 = vector.extract_strided_slice %1 {offsets = [256, 0], sizes = [128, 128], strides = [1, 1]} : vector<384x128xbf16> to vector<128x128xbf16>
    %cst_9 = arith.constant dense<0.000000e+00> : vector<32x128xf32>
    %19 = tpu.matmul %17, %18, %cst_9 {dimension_numbers = #tpu.dot_dimension_numbers<[1], [0], [0], [1], [0, 0, 1, 1], [], []>} : vector<32x128xbf16>, vector<128x128xbf16>, vector<32x128xf32> -> vector<32x128xf32>
    %20 = arith.addf %15, %19 : vector<32x128xf32>
    %21 = vector.shape_cast %20 : vector<32x128xf32> to vector<2x16x128xf32>
    %22 = vector.shape_cast %2 : vector<1x128xf32> to vector<1x1x128xf32>
    %23 = vector.broadcast %22 : vector<1x1x128xf32> to vector<2x16x128xf32>
    %24 = arith.addf %21, %23 : vector<2x16x128xf32>
    %c0_10 = arith.constant 0 : index
    %c0_11 = arith.constant 0 : index
    %c0_12 = arith.constant 0 : index
    %25 = vector.load %arg4[%c0_10, %c0_11, %c0_12] : memref<4x384x128xbf16, #tpu.memory_space<vmem>>, vector<1x384x128xbf16>
    %26 = vector.shape_cast %25 : vector<1x384x128xbf16> to vector<384x128xbf16>
    %c0_13 = arith.constant 0 : index
    %c0_14 = arith.constant 0 : index
    %c0_15 = arith.constant 0 : index
    %27 = vector.load %arg5[%c0_13, %c0_14, %c0_15] : memref<4x1x128xf32, #tpu.memory_space<vmem>>, vector<1x1x128xf32>
    %28 = vector.shape_cast %27 : vector<1x1x128xf32> to vector<1x128xf32>
    %cst_16 = arith.constant 0.000000e+00 : f32
    %29 = vector.broadcast %cst_16 : f32 to vector<2x16x128xf32>
    %30 = arith.maximumf %24, %29 : vector<2x16x128xf32>
    %31 = arith.truncf %30 : vector<2x16x128xf32> to vector<2x16x128xbf16>
    %cst_17 = arith.constant 0.000000e+00 : bf16
    %32 = vector.broadcast %cst_17 : bf16 to vector<2x1x128xbf16>
    %33 = tpu.concatenate %32, %31, %32 in 1 : vector<2x1x128xbf16>, vector<2x16x128xbf16>, vector<2x1x128xbf16> -> vector<2x18x128xbf16>
    %cst_18 = arith.constant 0.000000e+00 : f32
    %34 = vector.broadcast %cst_18 : f32 to vector<32x128xf32>
    %35 = vector.extract_strided_slice %33 {offsets = [0, 0, 0], sizes = [2, 16, 128], strides = [1, 1, 1]} : vector<2x18x128xbf16> to vector<2x16x128xbf16>
    %36 = vector.shape_cast %35 : vector<2x16x128xbf16> to vector<32x128xbf16>
    %37 = vector.extract_strided_slice %26 {offsets = [0, 0], sizes = [128, 128], strides = [1, 1]} : vector<384x128xbf16> to vector<128x128xbf16>
    %cst_19 = arith.constant dense<0.000000e+00> : vector<32x128xf32>
    %38 = tpu.matmul %36, %37, %cst_19 {dimension_numbers = #tpu.dot_dimension_numbers<[1], [0], [0], [1], [0, 0, 1, 1], [], []>} : vector<32x128xbf16>, vector<128x128xbf16>, vector<32x128xf32> -> vector<32x128xf32>
    %39 = arith.addf %34, %38 : vector<32x128xf32>
    %40 = vector.extract_strided_slice %33 {offsets = [0, 1, 0], sizes = [2, 16, 128], strides = [1, 1, 1]} : vector<2x18x128xbf16> to vector<2x16x128xbf16>
    %41 = vector.shape_cast %40 : vector<2x16x128xbf16> to vector<32x128xbf16>
    %42 = vector.extract_strided_slice %26 {offsets = [128, 0], sizes = [128, 128], strides = [1, 1]} : vector<384x128xbf16> to vector<128x128xbf16>
    %cst_20 = arith.constant dense<0.000000e+00> : vector<32x128xf32>
    %43 = tpu.matmul %41, %42, %cst_20 {dimension_numbers = #tpu.dot_dimension_numbers<[1], [0], [0], [1], [0, 0, 1, 1], [], []>} : vector<32x128xbf16>, vector<128x128xbf16>, vector<32x128xf32> -> vector<32x128xf32>
    %44 = arith.addf %39, %43 : vector<32x128xf32>
    %45 = vector.extract_strided_slice %33 {offsets = [0, 2, 0], sizes = [2, 16, 128], strides = [1, 1, 1]} : vector<2x18x128xbf16> to vector<2x16x128xbf16>
    %46 = vector.shape_cast %45 : vector<2x16x128xbf16> to vector<32x128xbf16>
    %47 = vector.extract_strided_slice %26 {offsets = [256, 0], sizes = [128, 128], strides = [1, 1]} : vector<384x128xbf16> to vector<128x128xbf16>
    %cst_21 = arith.constant dense<0.000000e+00> : vector<32x128xf32>
    %48 = tpu.matmul %46, %47, %cst_21 {dimension_numbers = #tpu.dot_dimension_numbers<[1], [0], [0], [1], [0, 0, 1, 1], [], []>} : vector<32x128xbf16>, vector<128x128xbf16>, vector<32x128xf32> -> vector<32x128xf32>
    %49 = arith.addf %44, %48 : vector<32x128xf32>
    %50 = vector.shape_cast %49 : vector<32x128xf32> to vector<2x16x128xf32>
    %51 = vector.shape_cast %28 : vector<1x128xf32> to vector<1x1x128xf32>
    %52 = vector.broadcast %51 : vector<1x1x128xf32> to vector<2x16x128xf32>
    %53 = arith.addf %50, %52 : vector<2x16x128xf32>
    %c1 = arith.constant 1 : index
    %c0_22 = arith.constant 0 : index
    %c0_23 = arith.constant 0 : index
    %54 = vector.load %arg4[%c1, %c0_22, %c0_23] : memref<4x384x128xbf16, #tpu.memory_space<vmem>>, vector<1x384x128xbf16>
    %55 = vector.shape_cast %54 : vector<1x384x128xbf16> to vector<384x128xbf16>
    %c1_24 = arith.constant 1 : index
    %c0_25 = arith.constant 0 : index
    %c0_26 = arith.constant 0 : index
    %56 = vector.load %arg5[%c1_24, %c0_25, %c0_26] : memref<4x1x128xf32, #tpu.memory_space<vmem>>, vector<1x1x128xf32>
    %57 = vector.shape_cast %56 : vector<1x1x128xf32> to vector<1x128xf32>
    %cst_27 = arith.constant 0.000000e+00 : f32
    %58 = vector.broadcast %cst_27 : f32 to vector<2x16x128xf32>
    %59 = arith.maximumf %53, %58 : vector<2x16x128xf32>
    %60 = arith.truncf %59 : vector<2x16x128xf32> to vector<2x16x128xbf16>
    %cst_28 = arith.constant 0.000000e+00 : bf16
    %61 = vector.broadcast %cst_28 : bf16 to vector<2x1x128xbf16>
    %62 = tpu.concatenate %61, %60, %61 in 1 : vector<2x1x128xbf16>, vector<2x16x128xbf16>, vector<2x1x128xbf16> -> vector<2x18x128xbf16>
    %cst_29 = arith.constant 0.000000e+00 : f32
    %63 = vector.broadcast %cst_29 : f32 to vector<32x128xf32>
    %64 = vector.extract_strided_slice %62 {offsets = [0, 0, 0], sizes = [2, 16, 128], strides = [1, 1, 1]} : vector<2x18x128xbf16> to vector<2x16x128xbf16>
    %65 = vector.shape_cast %64 : vector<2x16x128xbf16> to vector<32x128xbf16>
    %66 = vector.extract_strided_slice %55 {offsets = [0, 0], sizes = [128, 128], strides = [1, 1]} : vector<384x128xbf16> to vector<128x128xbf16>
    %cst_30 = arith.constant dense<0.000000e+00> : vector<32x128xf32>
    %67 = tpu.matmul %65, %66, %cst_30 {dimension_numbers = #tpu.dot_dimension_numbers<[1], [0], [0], [1], [0, 0, 1, 1], [], []>} : vector<32x128xbf16>, vector<128x128xbf16>, vector<32x128xf32> -> vector<32x128xf32>
    %68 = arith.addf %63, %67 : vector<32x128xf32>
    %69 = vector.extract_strided_slice %62 {offsets = [0, 1, 0], sizes = [2, 16, 128], strides = [1, 1, 1]} : vector<2x18x128xbf16> to vector<2x16x128xbf16>
    %70 = vector.shape_cast %69 : vector<2x16x128xbf16> to vector<32x128xbf16>
    %71 = vector.extract_strided_slice %55 {offsets = [128, 0], sizes = [128, 128], strides = [1, 1]} : vector<384x128xbf16> to vector<128x128xbf16>
    %cst_31 = arith.constant dense<0.000000e+00> : vector<32x128xf32>
    %72 = tpu.matmul %70, %71, %cst_31 {dimension_numbers = #tpu.dot_dimension_numbers<[1], [0], [0], [1], [0, 0, 1, 1], [], []>} : vector<32x128xbf16>, vector<128x128xbf16>, vector<32x128xf32> -> vector<32x128xf32>
    %73 = arith.addf %68, %72 : vector<32x128xf32>
    %74 = vector.extract_strided_slice %62 {offsets = [0, 2, 0], sizes = [2, 16, 128], strides = [1, 1, 1]} : vector<2x18x128xbf16> to vector<2x16x128xbf16>
    %75 = vector.shape_cast %74 : vector<2x16x128xbf16> to vector<32x128xbf16>
    %76 = vector.extract_strided_slice %55 {offsets = [256, 0], sizes = [128, 128], strides = [1, 1]} : vector<384x128xbf16> to vector<128x128xbf16>
    %cst_32 = arith.constant dense<0.000000e+00> : vector<32x128xf32>
    %77 = tpu.matmul %75, %76, %cst_32 {dimension_numbers = #tpu.dot_dimension_numbers<[1], [0], [0], [1], [0, 0, 1, 1], [], []>} : vector<32x128xbf16>, vector<128x128xbf16>, vector<32x128xf32> -> vector<32x128xf32>
    %78 = arith.addf %73, %77 : vector<32x128xf32>
    %79 = vector.shape_cast %78 : vector<32x128xf32> to vector<2x16x128xf32>
    %80 = vector.shape_cast %57 : vector<1x128xf32> to vector<1x1x128xf32>
    %81 = vector.broadcast %80 : vector<1x1x128xf32> to vector<2x16x128xf32>
    %82 = arith.addf %79, %81 : vector<2x16x128xf32>
    %83 = arith.addf %82, %24 : vector<2x16x128xf32>
    %84 = vector.extract_strided_slice %83 {offsets = [0, 0, 0], sizes = [2, 14, 128], strides = [1, 1, 1]} : vector<2x16x128xf32> to vector<2x14x128xf32>
    %85 = vector.extract_strided_slice %83 {offsets = [0, 1, 0], sizes = [2, 14, 128], strides = [1, 1, 1]} : vector<2x16x128xf32> to vector<2x14x128xf32>
    %86 = arith.maximumf %84, %85 : vector<2x14x128xf32>
    %87 = vector.extract_strided_slice %83 {offsets = [0, 2, 0], sizes = [2, 14, 128], strides = [1, 1, 1]} : vector<2x16x128xf32> to vector<2x14x128xf32>
    %88 = arith.maximumf %86, %87 : vector<2x14x128xf32>
    %89 = vector.shape_cast %88 : vector<2x14x128xf32> to vector<2x7x256xf32>
    %90 = vector.extract_strided_slice %89 {offsets = [0, 0, 0], sizes = [2, 7, 128], strides = [1, 1, 1]} : vector<2x7x256xf32> to vector<2x7x128xf32>
    %c2 = arith.constant 2 : index
    %c0_33 = arith.constant 0 : index
    %c0_34 = arith.constant 0 : index
    %91 = vector.load %arg4[%c2, %c0_33, %c0_34] : memref<4x384x128xbf16, #tpu.memory_space<vmem>>, vector<1x384x128xbf16>
    %92 = vector.shape_cast %91 : vector<1x384x128xbf16> to vector<384x128xbf16>
    %c2_35 = arith.constant 2 : index
    %c0_36 = arith.constant 0 : index
    %c0_37 = arith.constant 0 : index
    %93 = vector.load %arg5[%c2_35, %c0_36, %c0_37] : memref<4x1x128xf32, #tpu.memory_space<vmem>>, vector<1x1x128xf32>
    %94 = vector.shape_cast %93 : vector<1x1x128xf32> to vector<1x128xf32>
    %cst_38 = arith.constant 0.000000e+00 : f32
    %95 = vector.broadcast %cst_38 : f32 to vector<2x7x128xf32>
    %96 = arith.maximumf %90, %95 : vector<2x7x128xf32>
    %97 = arith.truncf %96 : vector<2x7x128xf32> to vector<2x7x128xbf16>
    %cst_39 = arith.constant 0.000000e+00 : bf16
    %98 = vector.broadcast %cst_39 : bf16 to vector<2x1x128xbf16>
    %99 = tpu.concatenate %98, %97, %98 in 1 : vector<2x1x128xbf16>, vector<2x7x128xbf16>, vector<2x1x128xbf16> -> vector<2x9x128xbf16>
    %cst_40 = arith.constant 0.000000e+00 : f32
    %100 = vector.broadcast %cst_40 : f32 to vector<14x128xf32>
    %101 = vector.extract_strided_slice %99 {offsets = [0, 0, 0], sizes = [2, 7, 128], strides = [1, 1, 1]} : vector<2x9x128xbf16> to vector<2x7x128xbf16>
    %102 = vector.shape_cast %101 : vector<2x7x128xbf16> to vector<14x128xbf16>
    %103 = vector.extract_strided_slice %92 {offsets = [0, 0], sizes = [128, 128], strides = [1, 1]} : vector<384x128xbf16> to vector<128x128xbf16>
    %cst_41 = arith.constant dense<0.000000e+00> : vector<14x128xf32>
    %104 = tpu.matmul %102, %103, %cst_41 {dimension_numbers = #tpu.dot_dimension_numbers<[1], [0], [0], [1], [0, 0, 1, 1], [], []>} : vector<14x128xbf16>, vector<128x128xbf16>, vector<14x128xf32> -> vector<14x128xf32>
    %105 = arith.addf %100, %104 : vector<14x128xf32>
    %106 = vector.extract_strided_slice %99 {offsets = [0, 1, 0], sizes = [2, 7, 128], strides = [1, 1, 1]} : vector<2x9x128xbf16> to vector<2x7x128xbf16>
    %107 = vector.shape_cast %106 : vector<2x7x128xbf16> to vector<14x128xbf16>
    %108 = vector.extract_strided_slice %92 {offsets = [128, 0], sizes = [128, 128], strides = [1, 1]} : vector<384x128xbf16> to vector<128x128xbf16>
    %cst_42 = arith.constant dense<0.000000e+00> : vector<14x128xf32>
    %109 = tpu.matmul %107, %108, %cst_42 {dimension_numbers = #tpu.dot_dimension_numbers<[1], [0], [0], [1], [0, 0, 1, 1], [], []>} : vector<14x128xbf16>, vector<128x128xbf16>, vector<14x128xf32> -> vector<14x128xf32>
    %110 = arith.addf %105, %109 : vector<14x128xf32>
    %111 = vector.extract_strided_slice %99 {offsets = [0, 2, 0], sizes = [2, 7, 128], strides = [1, 1, 1]} : vector<2x9x128xbf16> to vector<2x7x128xbf16>
    %112 = vector.shape_cast %111 : vector<2x7x128xbf16> to vector<14x128xbf16>
    %113 = vector.extract_strided_slice %92 {offsets = [256, 0], sizes = [128, 128], strides = [1, 1]} : vector<384x128xbf16> to vector<128x128xbf16>
    %cst_43 = arith.constant dense<0.000000e+00> : vector<14x128xf32>
    %114 = tpu.matmul %112, %113, %cst_43 {dimension_numbers = #tpu.dot_dimension_numbers<[1], [0], [0], [1], [0, 0, 1, 1], [], []>} : vector<14x128xbf16>, vector<128x128xbf16>, vector<14x128xf32> -> vector<14x128xf32>
    %115 = arith.addf %110, %114 : vector<14x128xf32>
    %116 = vector.shape_cast %115 : vector<14x128xf32> to vector<2x7x128xf32>
    %117 = vector.shape_cast %94 : vector<1x128xf32> to vector<1x1x128xf32>
    %118 = vector.broadcast %117 : vector<1x1x128xf32> to vector<2x7x128xf32>
    %119 = arith.addf %116, %118 : vector<2x7x128xf32>
    %c3 = arith.constant 3 : index
    %c0_44 = arith.constant 0 : index
    %c0_45 = arith.constant 0 : index
    %120 = vector.load %arg4[%c3, %c0_44, %c0_45] : memref<4x384x128xbf16, #tpu.memory_space<vmem>>, vector<1x384x128xbf16>
    %121 = vector.shape_cast %120 : vector<1x384x128xbf16> to vector<384x128xbf16>
    %c3_46 = arith.constant 3 : index
    %c0_47 = arith.constant 0 : index
    %c0_48 = arith.constant 0 : index
    %122 = vector.load %arg5[%c3_46, %c0_47, %c0_48] : memref<4x1x128xf32, #tpu.memory_space<vmem>>, vector<1x1x128xf32>
    %123 = vector.shape_cast %122 : vector<1x1x128xf32> to vector<1x128xf32>
    %cst_49 = arith.constant 0.000000e+00 : f32
    %124 = vector.broadcast %cst_49 : f32 to vector<2x7x128xf32>
    %125 = arith.maximumf %119, %124 : vector<2x7x128xf32>
    %126 = arith.truncf %125 : vector<2x7x128xf32> to vector<2x7x128xbf16>
    %cst_50 = arith.constant 0.000000e+00 : bf16
    %127 = vector.broadcast %cst_50 : bf16 to vector<2x1x128xbf16>
    %128 = tpu.concatenate %127, %126, %127 in 1 : vector<2x1x128xbf16>, vector<2x7x128xbf16>, vector<2x1x128xbf16> -> vector<2x9x128xbf16>
    %cst_51 = arith.constant 0.000000e+00 : f32
    %129 = vector.broadcast %cst_51 : f32 to vector<14x128xf32>
    %130 = vector.extract_strided_slice %128 {offsets = [0, 0, 0], sizes = [2, 7, 128], strides = [1, 1, 1]} : vector<2x9x128xbf16> to vector<2x7x128xbf16>
    %131 = vector.shape_cast %130 : vector<2x7x128xbf16> to vector<14x128xbf16>
    %132 = vector.extract_strided_slice %121 {offsets = [0, 0], sizes = [128, 128], strides = [1, 1]} : vector<384x128xbf16> to vector<128x128xbf16>
    %cst_52 = arith.constant dense<0.000000e+00> : vector<14x128xf32>
    %133 = tpu.matmul %131, %132, %cst_52 {dimension_numbers = #tpu.dot_dimension_numbers<[1], [0], [0], [1], [0, 0, 1, 1], [], []>} : vector<14x128xbf16>, vector<128x128xbf16>, vector<14x128xf32> -> vector<14x128xf32>
    %134 = arith.addf %129, %133 : vector<14x128xf32>
    %135 = vector.extract_strided_slice %128 {offsets = [0, 1, 0], sizes = [2, 7, 128], strides = [1, 1, 1]} : vector<2x9x128xbf16> to vector<2x7x128xbf16>
    %136 = vector.shape_cast %135 : vector<2x7x128xbf16> to vector<14x128xbf16>
    %137 = vector.extract_strided_slice %121 {offsets = [128, 0], sizes = [128, 128], strides = [1, 1]} : vector<384x128xbf16> to vector<128x128xbf16>
    %cst_53 = arith.constant dense<0.000000e+00> : vector<14x128xf32>
    %138 = tpu.matmul %136, %137, %cst_53 {dimension_numbers = #tpu.dot_dimension_numbers<[1], [0], [0], [1], [0, 0, 1, 1], [], []>} : vector<14x128xbf16>, vector<128x128xbf16>, vector<14x128xf32> -> vector<14x128xf32>
    %139 = arith.addf %134, %138 : vector<14x128xf32>
    %140 = vector.extract_strided_slice %128 {offsets = [0, 2, 0], sizes = [2, 7, 128], strides = [1, 1, 1]} : vector<2x9x128xbf16> to vector<2x7x128xbf16>
    %141 = vector.shape_cast %140 : vector<2x7x128xbf16> to vector<14x128xbf16>
    %142 = vector.extract_strided_slice %121 {offsets = [256, 0], sizes = [128, 128], strides = [1, 1]} : vector<384x128xbf16> to vector<128x128xbf16>
    %cst_54 = arith.constant dense<0.000000e+00> : vector<14x128xf32>
    %143 = tpu.matmul %141, %142, %cst_54 {dimension_numbers = #tpu.dot_dimension_numbers<[1], [0], [0], [1], [0, 0, 1, 1], [], []>} : vector<14x128xbf16>, vector<128x128xbf16>, vector<14x128xf32> -> vector<14x128xf32>
    %144 = arith.addf %139, %143 : vector<14x128xf32>
    %145 = vector.shape_cast %144 : vector<14x128xf32> to vector<2x7x128xf32>
    %146 = vector.shape_cast %123 : vector<1x128xf32> to vector<1x1x128xf32>
    %147 = vector.broadcast %146 : vector<1x1x128xf32> to vector<2x7x128xf32>
    %148 = arith.addf %145, %147 : vector<2x7x128xf32>
    %149 = arith.addf %148, %90 : vector<2x7x128xf32>
    %cst_55 = arith.constant dense<0xFF800000> : vector<2x128xf32>
    %150 = vector.multi_reduction <maximumf>, %149, %cst_55 [1] : vector<2x7x128xf32> to vector<2x128xf32>
    %151 = arith.truncf %150 : vector<2x128xf32> to vector<2x128xbf16>
    %c0_56 = arith.constant 0 : index
    %c0_57 = arith.constant 0 : index
    %152 = vector.load %arg6[%c0_56, %c0_57] : memref<128x128xbf16, #tpu.memory_space<vmem>>, vector<128x128xbf16>
    %cst_58 = arith.constant dense<0.000000e+00> : vector<2x128xf32>
    %153 = tpu.matmul %151, %152, %cst_58 {dimension_numbers = #tpu.dot_dimension_numbers<[1], [0], [0], [1], [0, 0, 1, 1], [], []>} : vector<2x128xbf16>, vector<128x128xbf16>, vector<2x128xf32> -> vector<2x128xf32>
    %c0_59 = arith.constant 0 : index
    %c0_60 = arith.constant 0 : index
    %154 = vector.load %arg7[%c0_59, %c0_60] : memref<1x128xf32, #tpu.memory_space<vmem>>, vector<1x128xf32>
    %155 = vector.broadcast %154 : vector<1x128xf32> to vector<2x128xf32>
    %156 = arith.addf %153, %155 : vector<2x128xf32>
    %c0_61 = arith.constant 0 : index
    %c0_62 = arith.constant 0 : index
    %c0_63 = arith.constant 0 : index
    %157 = vector.load %arg8[%c0_61, %c0_62, %c0_63] : memref<1x2x128xf32, #tpu.memory_space<vmem>>, vector<1x2x128xf32>
    %158 = vector.shape_cast %157 : vector<1x2x128xf32> to vector<2x128xf32>
    %159 = vector.shape_cast %156 : vector<2x128xf32> to vector<1x2x128xf32>
    tpu.vector_store %arg8[%c0_61, %c0_62, %c0_63], %159 {strides = array<i32>} : memref<1x2x128xf32, #tpu.memory_space<vmem>>, vector<1x2x128xf32>,
    return
  }
  func.func @transform_0(%arg0: i32) -> (i32, i32, i32) {
    %c0_i32 = arith.constant 0 : i32
    %c0_i32_0 = arith.constant 0 : i32
    %c0_i32_1 = arith.constant 0 : i32
    return %arg0, %c0_i32, %c0_i32_0 : i32, i32, i32
  }
  func.func @transform_1(%arg0: i32) -> (i32, i32) {
    %c0_i32 = arith.constant 0 : i32
    %c0_i32_0 = arith.constant 0 : i32
    %c0_i32_1 = arith.constant 0 : i32
    return %c0_i32, %c0_i32_0 : i32, i32
  }
  func.func @transform_2(%arg0: i32) -> (i32, i32) {
    %c0_i32 = arith.constant 0 : i32
    %c0_i32_0 = arith.constant 0 : i32
    %c0_i32_1 = arith.constant 0 : i32
    return %c0_i32, %c0_i32_0 : i32, i32
  }
  func.func @transform_3(%arg0: i32) -> (i32, i32, i32) {
    %c0_i32 = arith.constant 0 : i32
    %c0_i32_0 = arith.constant 0 : i32
    %c0_i32_1 = arith.constant 0 : i32
    %c0_i32_2 = arith.constant 0 : i32
    return %c0_i32, %c0_i32_0, %c0_i32_1 : i32, i32, i32
  }
  func.func @transform_4(%arg0: i32) -> (i32, i32, i32) {
    %c0_i32 = arith.constant 0 : i32
    %c0_i32_0 = arith.constant 0 : i32
    %c0_i32_1 = arith.constant 0 : i32
    %c0_i32_2 = arith.constant 0 : i32
    return %c0_i32, %c0_i32_0, %c0_i32_1 : i32, i32, i32
  }
  func.func @transform_5(%arg0: i32) -> (i32, i32) {
    %c0_i32 = arith.constant 0 : i32
    %c0_i32_0 = arith.constant 0 : i32
    %c0_i32_1 = arith.constant 0 : i32
    return %c0_i32, %c0_i32_0 : i32, i32
  }
  func.func @transform_6(%arg0: i32) -> (i32, i32) {
    %c0_i32 = arith.constant 0 : i32
    %c0_i32_0 = arith.constant 0 : i32
    %c0_i32_1 = arith.constant 0 : i32
    return %c0_i32, %c0_i32_0 : i32, i32
  }
  func.func @transform_7(%arg0: i32) -> (i32, i32, i32) {
    %c0_i32 = arith.constant 0 : i32
    %c0_i32_0 = arith.constant 0 : i32
    %c0_i32_1 = arith.constant 0 : i32
    return %arg0, %c0_i32, %c0_i32_0 : i32, i32, i32
  }
}

</mosaic_0001>

<llo_original>
// kernel: tpu_custom_call.1
$region0: #{tpu_custom_call.1}
  #allocation0 [shape = 'u32[]', space=smem, size = 0x4, offset = 0x4, fixed_abs, tag = 'smem constant byte address 0x4 - core index']
  #allocation1 [shape = 'u32[144,128]{1,0:T(1,128)}', space=vmem, size = 0x12000, scoped, tag = 'internal scratch']
  %s0 = inlined_call_operand.hbm [shape: bf16[2,16,128], index: 0, kind: input, shape index: {}]
  %s1 = inlined_call_operand.hbm [shape: bf16[384,128], index: 1, kind: input, shape index: {}]
  %s2 = inlined_call_operand.vmem [shape: f32[1,128], index: 2, kind: input, shape index: {}]
  %s3 = inlined_call_operand.hbm [shape: bf16[4,384,128], index: 3, kind: input, shape index: {}]
  %s4 = inlined_call_operand.vmem [shape: f32[4,1,128], index: 4, kind: input, shape index: {}]
  %s5 = inlined_call_operand.hbm [shape: bf16[128,128], index: 5, kind: input, shape index: {}]
  %s6 = inlined_call_operand.vmem [shape: f32[1,128], index: 6, kind: input, shape index: {}]
  %s7 = inlined_call_operand.hbm [shape: f32[1,2,128], index: 7, kind: output, shape index: {}]
  %s8 = sld [smem:[#allocation0]]
  $region54: #{tpu_custom_call.1} parent=0
    _
  %s10 = ssub.s32 1, %s8
  %s11 = scalar_select 0, %s10, %s8
  $region1: #{tpu_custom_call.1} parent=0
    #allocation2 [shape = 'u8[8192]{0}', space=vmem, size = 0x2000, scoped, tag = 'input window, operand 0, single buffered']
    #allocation3 [shape = 's32[1]{0}', space=sflag, size = 0x4, scoped, tag = 'scoped memory for tpu_custom_call.1']
    #allocation4 [shape = 's32[1]{0}', space=sflag, size = 0x4, scoped, tag = 'scoped memory for tpu_custom_call.1']
    #allocation5 [shape = 'u8[98304]{0}', space=vmem, size = 0x18000, scoped, tag = 'input window, operand 1, single buffered']
    #allocation6 [shape = 's32[1]{0}', space=sflag, size = 0x4, scoped, tag = 'scoped memory for tpu_custom_call.1']
    #allocation7 [shape = 'u8[393216]{0}', space=vmem, size = 0x60000, scoped, tag = 'input window, operand 3, single buffered']
    #allocation8 [shape = 'u8[32768]{0}', space=vmem, size = 0x8000, scoped, tag = 'input window, operand 5, single buffered']
    #allocation9 [shape = 's32[1]{0}', space=sflag, size = 0x4, scoped, tag = 'scoped memory for tpu_custom_call.1']
    #allocation10 [shape = 'u8[1024]{0}', space=vmem, size = 0x400, scoped, tag = 'output window, operand 0, single buffered']
    %12 = vsyncpa [#allocation3], 0
    %13 = vsyncpa [#allocation6], 0
    %14 = vsyncpa [#allocation9], 0
    %15 = vsyncpa [#allocation4], 0
    // Predicated region
    $region2: #{tpu_custom_call.1} parent=1 // pred_check
      _
    $region3: #{tpu_custom_call.1} parent=1 // pred_check_branch
      %17 = sbr.rel (0) target = $region5
    $region4: #{tpu_custom_call.1} parent=1 // pred_region
      %s19 = ssub.s32 256, 256
      %20 = vsyncadd [#allocation3], %s19
      %s21 = sshll.u32 [#allocation2], 4
      %s22 = int_to_ptr.vmem [resolvable:$true] %s21
      %27 = dma.hbm_to_vmem [thread:$0]  %s0, 256, %s22, [#allocation3], 64, 64, 4
    $region5: #{tpu_custom_call.1} parent=1 // pred_fallthru
      _
    // Predicated region
    $region6: #{tpu_custom_call.1} parent=1 // pred_check
      _
    $region7: #{tpu_custom_call.1} parent=1 // pred_check_branch
      %29 = sbr.rel (0) target = $region9
    $region8: #{tpu_custom_call.1} parent=1 // pred_region
      %s31 = ssub.s32 3072, 3072
      %32 = vsyncadd [#allocation6], %s31
      %s33 = sshll.u32 [#allocation5], 4
      %s34 = int_to_ptr.vmem [resolvable:$true] %s33
      %39 = dma.hbm_to_vmem [thread:$0]  %s1, 3072, %s34, [#allocation6], 64, 64, 4
    $region9: #{tpu_custom_call.1} parent=1 // pred_fallthru
      _
    // Predicated region
    $region10: #{tpu_custom_call.1} parent=1 // pred_check
      _
    $region11: #{tpu_custom_call.1} parent=1 // pred_check_branch
      %41 = sbr.rel (0) target = $region13
    $region12: #{tpu_custom_call.1} parent=1 // pred_region
      _
    $region13: #{tpu_custom_call.1} parent=1 // pred_fallthru
      _
    // Predicated region
    $region14: #{tpu_custom_call.1} parent=1 // pred_check
      _
    $region15: #{tpu_custom_call.1} parent=1 // pred_check_branch
      %43 = sbr.rel (0) target = $region17
    $region16: #{tpu_custom_call.1} parent=1 // pred_region
      %s45 = ssub.s32 12288, 12288
      %46 = vsyncadd [#allocation6], %s45
      %s47 = sshll.u32 [#allocation7], 4
      %s48 = int_to_ptr.vmem [resolvable:$true] %s47
      %53 = dma.hbm_to_vmem [thread:$0]  %s3, 12288, %s48, [#allocation6], 64, 64, 4
    $region17: #{tpu_custom_call.1} parent=1 // pred_fallthru
      _
    // Predicated region
    $region18: #{tpu_custom_call.1} parent=1 // pred_check
      _
    $region19: #{tpu_custom_call.1} parent=1 // pred_check_branch
      %55 = sbr.rel (0) target = $region21
    $region20: #{tpu_custom_call.1} parent=1 // pred_region
      _
    $region21: #{tpu_custom_call.1} parent=1 // pred_fallthru
      _
    // Predicated region
    $region22: #{tpu_custom_call.1} parent=1 // pred_check
      _
    $region23: #{tpu_custom_call.1} parent=1 // pred_check_branch
      %57 = sbr.rel (0) target = $region25
    $region24: #{tpu_custom_call.1} parent=1 // pred_region
      %s59 = ssub.s32 1024, 1024
      %60 = vsyncadd [#allocation9], %s59
      %s61 = sshll.u32 [#allocation8], 4
      %s62 = int_to_ptr.vmem [resolvable:$true] %s61
      %67 = dma.hbm_to_vmem [thread:$0]  %s5, 1024, %s62, [#allocation9], 64, 64, 4
    $region25: #{tpu_custom_call.1} parent=1 // pred_fallthru
      _
    // Predicated region
    $region26: #{tpu_custom_call.1} parent=1 // pred_check
      _
    $region27: #{tpu_custom_call.1} parent=1 // pred_check_branch
      %69 = sbr.rel (0) target = $region29
    $region28: #{tpu_custom_call.1} parent=1 // pred_region
      _
    $region29: #{tpu_custom_call.1} parent=1 // pred_fallthru
      _
    // Predicated region
    $region30: #{tpu_custom_call.1} parent=1 // pred_check
      _
    $region31: #{tpu_custom_call.1} parent=1 // pred_check_branch
      %71 = sbr.rel (0) target = $region33
    $region32: #{tpu_custom_call.1} parent=1 // pred_region
      %72 = dma.done [#allocation3], 256
    $region33: #{tpu_custom_call.1} parent=1 // pred_fallthru
      _
    // Predicated region
    $region34: #{tpu_custom_call.1} parent=1 // pred_check
      _
    $region35: #{tpu_custom_call.1} parent=1 // pred_check_branch
      %74 = sbr.rel (0) target = $region37
    $region36: #{tpu_custom_call.1} parent=1 // pred_region
      %75 = dma.done [#allocation6], 3072
    $region37: #{tpu_custom_call.1} parent=1 // pred_fallthru
      _
    // Predicated region
    $region38: #{tpu_custom_call.1} parent=1 // pred_check
      _
    $region39: #{tpu_custom_call.1} parent=1 // pred_check_branch
      %77 = sbr.rel (0) target = $region41
    $region40: #{tpu_custom_call.1} parent=1 // pred_region
      %78 = dma.done [#allocation6], 12288
    $region41: #{tpu_custom_call.1} parent=1 // pred_fallthru
      _
    // Predicated region
    $region42: #{tpu_custom_call.1} parent=1 // pred_check
      _
    $region43: #{tpu_custom_call.1} parent=1 // pred_check_branch
      %80 = sbr.rel (0) target = $region45
    $region44: #{tpu_custom_call.1} parent=1 // pred_region
      %81 = dma.done [#allocation9], 1024
    $region45: #{tpu_custom_call.1} parent=1 // pred_fallthru
      _
    %v83 = vld [vmem:[#allocation2] sm:$0xf]
    %v84 = vld [vmem:[#allocation2 + $0x4] sm:$0xf]
    %v85 = vld [vmem:[#allocation2 + $0x8] sm:$0xf]
    %v86 = vld [vmem:[#allocation2 + $0xc] sm:$0xf]
    %v87 = vld [vmem:[#allocation5] sm:$0xf]
    %v88 = vld [vmem:[#allocation5 + $0x4] sm:$0xf]
    %v89 = vld [vmem:[#allocation5 + $0x8] sm:$0xf]
    %v90 = vld [vmem:[#allocation5 + $0xc] sm:$0xf]
    %v91 = vld [vmem:[#allocation5 + $0x10] sm:$0xf]
    %v92 = vld [vmem:[#allocation5 + $0x14] sm:$0xf]
    %v93 = vld [vmem:[#allocation5 + $0x18] sm:$0xf]
    %v94 = vld [vmem:[#allocation5 + $0x1c] sm:$0xf]
    %v95 = vld [vmem:[#allocation5 + $0x20] sm:$0xf]
    %v96 = vld [vmem:[#allocation5 + $0x24] sm:$0xf]
    %v97 = vld [vmem:[#allocation5 + $0x28] sm:$0xf]
    %v98 = vld [vmem:[#allocation5 + $0x2c] sm:$0xf]
    %v99 = vld [vmem:[#allocation5 + $0x30] sm:$0xf]
    %v100 = vld [vmem:[#allocation5 + $0x34] sm:$0xf]
    %v101 = vld [vmem:[#allocation5 + $0x38] sm:$0xf]
    %v102 = vld [vmem:[#allocation5 + $0x3c] sm:$0xf]
    %v103 = vld [vmem:[#allocation5 + $0x40] sm:$0xf]
    %v104 = vld [vmem:[#allocation5 + $0x44] sm:$0xf]
    %v105 = vld [vmem:[#allocation5 + $0x48] sm:$0xf]
    %v106 = vld [vmem:[#allocation5 + $0x4c] sm:$0xf]
    %v107 = vld [vmem:[#allocation5 + $0x50] sm:$0xf]
    %v108 = vld [vmem:[#allocation5 + $0x54] sm:$0xf]
    %v109 = vld [vmem:[#allocation5 + $0x58] sm:$0xf]
    %v110 = vld [vmem:[#allocation5 + $0x5c] sm:$0xf]
    %v111 = vld [vmem:[#allocation5 + $0x60] sm:$0xf]
    %v112 = vld [vmem:[#allocation5 + $0x64] sm:$0xf]
    %v113 = vld [vmem:[#allocation5 + $0x68] sm:$0xf]
    %v114 = vld [vmem:[#allocation5 + $0x6c] sm:$0xf]
    %v115 = vld [vmem:[#allocation5 + $0x70] sm:$0xf]
    %v116 = vld [vmem:[#allocation5 + $0x74] sm:$0xf]
    %v117 = vld [vmem:[#allocation5 + $0x78] sm:$0xf]
    %v118 = vld [vmem:[#allocation5 + $0x7c] sm:$0xf]
    %v119 = vld [vmem:[#allocation5 + $0x80] sm:$0xf]
    %v120 = vld [vmem:[#allocation5 + $0x84] sm:$0xf]
    %v121 = vld [vmem:[#allocation5 + $0x88] sm:$0xf]
    %v122 = vld [vmem:[#allocation5 + $0x8c] sm:$0xf]
    %v123 = vld [vmem:[#allocation5 + $0x90] sm:$0xf]
    %v124 = vld [vmem:[#allocation5 + $0x94] sm:$0xf]
    %v125 = vld [vmem:[#allocation5 + $0x98] sm:$0xf]
    %v126 = vld [vmem:[#allocation5 + $0x9c] sm:$0xf]
    %v127 = vld [vmem:[#allocation5 + $0xa0] sm:$0xf]
    %v128 = vld [vmem:[#allocation5 + $0xa4] sm:$0xf]
    %v129 = vld [vmem:[#allocation5 + $0xa8] sm:$0xf]
    %v130 = vld [vmem:[#allocation5 + $0xac] sm:$0xf]
    %v131 = vld [vmem:[#allocation5 + $0xb0] sm:$0xf]
    %v132 = vld [vmem:[#allocation5 + $0xb4] sm:$0xf]
    %v133 = vld [vmem:[#allocation5 + $0xb8] sm:$0xf]
    %v134 = vld [vmem:[#allocation5 + $0xbc] sm:$0xf]
    %v135 = vld [vmem:[%s2] sm:$0x1]
    %v140 = vunpack.c.l.b16 %v83
    %v141 = vunpack.c.l.b16 %v84
    %v142 = vunpack.c.l.b16 %v85
    %v143 = vunpack.c.l.b16 %v86
    %v144 = vpack.c.b16 %v141, %v140
    %v145 = vpack.c.b16 %v143, %v142
    %v147 = vshrl.u32 %v144, 16
    %v149 = vrot.slane %v147, 7
    %v150 = vshll.u32 %v144, 16
    %v152 = vor.u32 %v149, %v150
    %v154 = vshrl.u32 %v145, 16
    %v156 = vrot.slane %v154, 7
    %v157 = vshll.u32 %v145, 16
    %v159 = vor.u32 %v156, %v157
    %vm164 = vcmask 1040384
    %vm165 = vsmask.f32 256
    %vm166 = vmand %vm164, %vm165
    %v167 = vsel %vm166, 0, %v152
    %v168 = vsel %vm166, 0, %v159
    %v169 = vsel %vm166, %v149, 0
    %v170 = vsel %vm166, %v156, 0
    %vm171 = vsmask.f32 7424
    %v173 = vshrl.u32 %v167, 16
    %v175 = vshll.u32 %v167, 16
    %v177 = vrot.slane %v175, 1
    %v178 = vor.u32 %v173, %v177
    %v180 = vshll.u32 %v169, 16
    %v182 = vrot.slane %v180, 1
    %v183 = vsel %vm171, %v178, %v182
    %v185 = vshrl.u32 %v168, 16
    %v187 = vshll.u32 %v168, 16
    %v189 = vrot.slane %v187, 1
    %v190 = vor.u32 %v185, %v189
    %v192 = vshll.u32 %v170, 16
    %v194 = vrot.slane %v192, 1
    %v195 = vsel %vm171, %v190, %v194
    %v214 = vunpack.c.l.b16 %v103
    %v215 = vunpack.c.l.b16 %v104
    %v216 = vunpack.c.l.b16 %v105
    %v217 = vunpack.c.l.b16 %v106
    %v218 = vunpack.c.l.b16 %v107
    %v219 = vunpack.c.l.b16 %v108
    %v220 = vunpack.c.l.b16 %v109
    %v221 = vunpack.c.l.b16 %v110
    %v222 = vunpack.c.l.b16 %v111
    %v223 = vunpack.c.l.b16 %v112
    %v224 = vunpack.c.l.b16 %v113
    %v225 = vunpack.c.l.b16 %v114
    %v226 = vunpack.c.l.b16 %v115
    %v227 = vunpack.c.l.b16 %v116
    %v228 = vunpack.c.l.b16 %v117
    %v229 = vunpack.c.l.b16 %v118
    %v230 = vpack.c.b16 %v215, %v214
    %v231 = vpack.c.b16 %v217, %v216
    %v232 = vpack.c.b16 %v219, %v218
    %v233 = vpack.c.b16 %v221, %v220
    %v234 = vpack.c.b16 %v223, %v222
    %v235 = vpack.c.b16 %v225, %v224
    %v236 = vpack.c.b16 %v227, %v226
    %v237 = vpack.c.b16 %v229, %v228
    %246 = vmatprep.subr.bf16.mxu0 0
    %247 = vmatpush1.bf16.msra.mxu0 %v237
    %248 = vmatprep.subr.bf16.mxu0 0
    %249 = vmatpush1.bf16.msra.mxu0 %v236
    %250 = vmatprep.subr.bf16.mxu0 0
    %251 = vmatpush1.bf16.msra.mxu0 %v235
    %252 = vmatprep.subr.bf16.mxu0 0
    %253 = vmatpush1.bf16.msra.mxu0 %v234
    %254 = vmatprep.subr.bf16.mxu0 0
    %255 = vmatpush1.bf16.msra.mxu0 %v233
    %256 = vmatprep.subr.bf16.mxu0 0
    %257 = vmatpush1.bf16.msra.mxu0 %v232
    %258 = vmatprep.subr.bf16.mxu0 0
    %259 = vmatpush1.bf16.msra.mxu0 %v231
    %260 = vmatprep.subr.bf16.mxu0 0
    %261 = vmatpush1.bf16.msra.mxu0 %v230
    %262 = vmatprep.subr.bf16.mxu0 0
    %263 = vmatpush2.bf16.msra.mxu0 0
    %264 = vmatprep.subr.bf16.mxu0 0
    %265 = vmatpush2.bf16.msra.mxu0 0
    %266 = vmatprep.subr.bf16.mxu0 0
    %267 = vmatpush2.bf16.msra.mxu0 0
    %268 = vmatprep.subr.bf16.mxu0 0
    %269 = vmatpush2.bf16.msra.mxu0 0
    %270 = vmatprep.subr.bf16.mxu0 0
    %271 = vmatpush2.bf16.msra.mxu0 0
    %272 = vmatprep.subr.bf16.mxu0 0
    %273 = vmatpush2.bf16.msra.mxu0 0
    %274 = vmatprep.subr.bf16.mxu0 0
    %275 = vmatpush2.bf16.msra.mxu0 0
    %276 = vmatprep.subr.bf16.mxu0 0
    %277 = vmatpush2.bf16.msra.mxu0 0
    %278 = vmatprep.mubr.bf16.mxu0 0
    %279 = vmatmul.mubr.bf16.gmra.mxu0 %v183
    %v280 = vpop.f32.mrf.mxu0
    %v281 = vadd.f32 0.0, %v280
    %v282 = vpop.f32.mrf.mxu0
    %v283 = vpop.f32.mrf.mxu0
    %v284 = vadd.f32 0.0, %v283
    %v285 = vpop.f32.mrf.mxu0
    %286 = vmatprep.mubr.bf16.mxu0 0
    %287 = vmatmul.mubr.bf16.gmra.mxu0 %v195
    %v288 = vpop.f32.mrf.mxu0
    %v289 = vadd.f32 0.0, %v288
    %v290 = vpop.f32.mrf.mxu0
    %v291 = vpop.f32.mrf.mxu0
    %v292 = vadd.f32 0.0, %v291
    %v293 = vpop.f32.mrf.mxu0
    %294 = vdwg.mxu0
    %v311 = vunpack.c.l.b16 %v87
    %v312 = vunpack.c.l.b16 %v88
    %v313 = vunpack.c.l.b16 %v89
    %v314 = vunpack.c.l.b16 %v90
    %v315 = vunpack.c.l.b16 %v91
    %v316 = vunpack.c.l.b16 %v92
    %v317 = vunpack.c.l.b16 %v93
    %v318 = vunpack.c.l.b16 %v94
    %v319 = vunpack.c.l.b16 %v95
    %v320 = vunpack.c.l.b16 %v96
    %v321 = vunpack.c.l.b16 %v97
    %v322 = vunpack.c.l.b16 %v98
    %v323 = vunpack.c.l.b16 %v99
    %v324 = vunpack.c.l.b16 %v100
    %v325 = vunpack.c.l.b16 %v101
    %v326 = vunpack.c.l.b16 %v102
    %v327 = vpack.c.b16 %v312, %v311
    %v328 = vpack.c.b16 %v314, %v313
    %v329 = vpack.c.b16 %v316, %v315
    %v330 = vpack.c.b16 %v318, %v317
    %v331 = vpack.c.b16 %v320, %v319
    %v332 = vpack.c.b16 %v322, %v321
    %v333 = vpack.c.b16 %v324, %v323
    %v334 = vpack.c.b16 %v326, %v325
    %343 = vmatprep.subr.bf16.mxu0 0
    %344 = vmatpush1.bf16.msra.mxu0 %v334
    %345 = vmatprep.subr.bf16.mxu0 0
    %346 = vmatpush1.bf16.msra.mxu0 %v333
    %347 = vmatprep.subr.bf16.mxu0 0
    %348 = vmatpush1.bf16.msra.mxu0 %v332
    %349 = vmatprep.subr.bf16.mxu0 0
    %350 = vmatpush1.bf16.msra.mxu0 %v331
    %351 = vmatprep.subr.bf16.mxu0 0
    %352 = vmatpush1.bf16.msra.mxu0 %v330
    %353 = vmatprep.subr.bf16.mxu0 0
    %354 = vmatpush1.bf16.msra.mxu0 %v329
    %355 = vmatprep.subr.bf16.mxu0 0
    %356 = vmatpush1.bf16.msra.mxu0 %v328
    %357 = vmatprep.subr.bf16.mxu0 0
    %358 = vmatpush1.bf16.msra.mxu0 %v327
    %359 = vmatprep.subr.bf16.mxu0 0
    %360 = vmatpush2.bf16.msra.mxu0 0
    %361 = vmatprep.subr.bf16.mxu0 0
    %362 = vmatpush2.bf16.msra.mxu0 0
    %363 = vmatprep.subr.bf16.mxu0 0
    %364 = vmatpush2.bf16.msra.mxu0 0
    %365 = vmatprep.subr.bf16.mxu0 0
    %366 = vmatpush2.bf16.msra.mxu0 0
    %367 = vmatprep.subr.bf16.mxu0 0
    %368 = vmatpush2.bf16.msra.mxu0 0
    %369 = vmatprep.subr.bf16.mxu0 0
    %370 = vmatpush2.bf16.msra.mxu0 0
    %371 = vmatprep.subr.bf16.mxu0 0
    %372 = vmatpush2.bf16.msra.mxu0 0
    %373 = vmatprep.subr.bf16.mxu0 0
    %374 = vmatpush2.bf16.msra.mxu0 0
    %375 = vmatprep.mubr.bf16.mxu0 0
    %376 = vmatmul.mubr.bf16.gmra.mxu0 %v167
    %v377 = vpop.f32.mrf.mxu0
    %v378 = vadd.f32 %v281, %v377
    %v379 = vpop.f32.mrf.mxu0
    %v380 = vpop.f32.mrf.mxu0
    %v381 = vadd.f32 %v284, %v380
    %v382 = vpop.f32.mrf.mxu0
    %383 = vmatprep.mubr.bf16.mxu0 0
    %384 = vmatmul.mubr.bf16.gmra.mxu0 %v168
    %v385 = vpop.f32.mrf.mxu0
    %v386 = vadd.f32 %v289, %v385
    %v387 = vpop.f32.mrf.mxu0
    %v388 = vpop.f32.mrf.mxu0
    %v389 = vadd.f32 %v292, %v388
    %v390 = vpop.f32.mrf.mxu0
    %391 = vdwg.mxu0
    %vm396 = vcmask 1046528
    %v397 = vrot.slane %v167, 1
    %v398 = vrot.slane %v169, 1
    %v399 = vsel %vm396, %v397, %v398
    %v400 = vrot.slane %v168, 1
    %v401 = vrot.slane %v170, 1
    %v402 = vsel %vm396, %v400, %v401
    %v421 = vunpack.c.l.b16 %v119
    %v422 = vunpack.c.l.b16 %v120
    %v423 = vunpack.c.l.b16 %v121
    %v424 = vunpack.c.l.b16 %v122
    %v425 = vunpack.c.l.b16 %v123
    %v426 = vunpack.c.l.b16 %v124
    %v427 = vunpack.c.l.b16 %v125
    %v428 = vunpack.c.l.b16 %v126
    %v429 = vunpack.c.l.b16 %v127
    %v430 = vunpack.c.l.b16 %v128
    %v431 = vunpack.c.l.b16 %v129
    %v432 = vunpack.c.l.b16 %v130
    %v433 = vunpack.c.l.b16 %v131
    %v434 = vunpack.c.l.b16 %v132
    %v435 = vunpack.c.l.b16 %v133
    %v436 = vunpack.c.l.b16 %v134
    %v437 = vpack.c.b16 %v422, %v421
    %v438 = vpack.c.b16 %v424, %v423
    %v439 = vpack.c.b16 %v426, %v425
    %v440 = vpack.c.b16 %v428, %v427
    %v441 = vpack.c.b16 %v430, %v429
    %v442 = vpack.c.b16 %v432, %v431
    %v443 = vpack.c.b16 %v434, %v433
    %v444 = vpack.c.b16 %v436, %v435
    %453 = vmatprep.subr.bf16.mxu0 0
    %454 = vmatpush1.bf16.msra.mxu0 %v444
    %455 = vmatprep.subr.bf16.mxu0 0
    %456 = vmatpush1.bf16.msra.mxu0 %v443
    %457 = vmatprep.subr.bf16.mxu0 0
    %458 = vmatpush1.bf16.msra.mxu0 %v442
    %459 = vmatprep.subr.bf16.mxu0 0
    %460 = vmatpush1.bf16.msra.mxu0 %v441
    %461 = vmatprep.subr.bf16.mxu0 0
    %462 = vmatpush1.bf16.msra.mxu0 %v440
    %463 = vmatprep.subr.bf16.mxu0 0
    %464 = vmatpush1.bf16.msra.mxu0 %v439
    %465 = vmatprep.subr.bf16.mxu0 0
    %466 = vmatpush1.bf16.msra.mxu0 %v438
    %467 = vmatprep.subr.bf16.mxu0 0
    %468 = vmatpush1.bf16.msra.mxu0 %v437
    %469 = vmatprep.subr.bf16.mxu0 0
    %470 = vmatpush2.bf16.msra.mxu0 0
    %471 = vmatprep.subr.bf16.mxu0 0
    %472 = vmatpush2.bf16.msra.mxu0 0
    %473 = vmatprep.subr.bf16.mxu0 0
    %474 = vmatpush2.bf16.msra.mxu0 0
    %475 = vmatprep.subr.bf16.mxu0 0
    %476 = vmatpush2.bf16.msra.mxu0 0
    %477 = vmatprep.subr.bf16.mxu0 0
    %478 = vmatpush2.bf16.msra.mxu0 0
    %479 = vmatprep.subr.bf16.mxu0 0
    %480 = vmatpush2.bf16.msra.mxu0 0
    %481 = vmatprep.subr.bf16.mxu0 0
    %482 = vmatpush2.bf16.msra.mxu0 0
    %483 = vmatprep.subr.bf16.mxu0 0
    %484 = vmatpush2.bf16.msra.mxu0 0
    %485 = vmatprep.mubr.bf16.mxu0 0
    %486 = vmatmul.mubr.bf16.gmra.mxu0 %v399
    %v487 = vpop.f32.mrf.mxu0
    %v488 = vadd.f32 0.0, %v487
    %v489 = vpop.f32.mrf.mxu0
    %v490 = vpop.f32.mrf.mxu0
    %v491 = vadd.f32 0.0, %v490
    %v492 = vpop.f32.mrf.mxu0
    %493 = vmatprep.mubr.bf16.mxu0 0
    %494 = vmatmul.mubr.bf16.gmra.mxu0 %v402
    %v495 = vpop.f32.mrf.mxu0
    %v496 = vadd.f32 0.0, %v495
    %v497 = vpop.f32.mrf.mxu0
    %v498 = vpop.f32.mrf.mxu0
    %v499 = vadd.f32 0.0, %v498
    %v500 = vpop.f32.mrf.mxu0
    %501 = vdwg.mxu0
    %v502 = vadd.f32 %v378, %v488
    %v503 = vadd.f32 %v381, %v491
    %v504 = vadd.f32 %v386, %v496
    %v505 = vadd.f32 %v389, %v499
    %v507 = vlaneseq
    %v508 = vshrl.u32 %v507, 7
    %v509 = vsub.s32 0, %v508
    %v510 = vrot.slane %v135, %v509
    %v512 = vadd.f32 %v502, %v510
    %v513 = vadd.f32 %v503, %v510
    %v514 = vadd.f32 %v504, %v510
    %v515 = vadd.f32 %v505, %v510
    %v516 = vld [vmem:[#allocation7] sm:$0xf]
    %v517 = vld [vmem:[#allocation7 + $0x4] sm:$0xf]
    %v518 = vld [vmem:[#allocation7 + $0x8] sm:$0xf]
    %v519 = vld [vmem:[#allocation7 + $0xc] sm:$0xf]
    %v520 = vld [vmem:[#allocation7 + $0x10] sm:$0xf]
    %v521 = vld [vmem:[#allocation7 + $0x14] sm:$0xf]
    %v522 = vld [vmem:[#allocation7 + $0x18] sm:$0xf]
    %v523 = vld [vmem:[#allocation7 + $0x1c] sm:$0xf]
    %v524 = vld [vmem:[#allocation7 + $0x20] sm:$0xf]
    %v525 = vld [vmem:[#allocation7 + $0x24] sm:$0xf]
    %v526 = vld [vmem:[#allocation7 + $0x28] sm:$0xf]
    %v527 = vld [vmem:[#allocation7 + $0x2c] sm:$0xf]
    %v528 = vld [vmem:[#allocation7 + $0x30] sm:$0xf]
    %v529 = vld [vmem:[#allocation7 + $0x34] sm:$0xf]
    %v530 = vld [vmem:[#allocation7 + $0x38] sm:$0xf]
    %v531 = vld [vmem:[#allocation7 + $0x3c] sm:$0xf]
    %v532 = vld [vmem:[#allocation7 + $0x40] sm:$0xf]
    %v533 = vld [vmem:[#allocation7 + $0x44] sm:$0xf]
    %v534 = vld [vmem:[#allocation7 + $0x48] sm:$0xf]
    %v535 = vld [vmem:[#allocation7 + $0x4c] sm:$0xf]
    %v536 = vld [vmem:[#allocation7 + $0x50] sm:$0xf]
    %v537 = vld [vmem:[#allocation7 + $0x54] sm:$0xf]
    %v538 = vld [vmem:[#allocation7 + $0x58] sm:$0xf]
    %v539 = vld [vmem:[#allocation7 + $0x5c] sm:$0xf]
    %v540 = vld [vmem:[#allocation7 + $0x60] sm:$0xf]
    %v541 = vld [vmem:[#allocation7 + $0x64] sm:$0xf]
    %v542 = vld [vmem:[#allocation7 + $0x68] sm:$0xf]
    %v543 = vld [vmem:[#allocation7 + $0x6c] sm:$0xf]
    %v544 = vld [vmem:[#allocation7 + $0x70] sm:$0xf]
    %v545 = vld [vmem:[#allocation7 + $0x74] sm:$0xf]
    %v546 = vld [vmem:[#allocation7 + $0x78] sm:$0xf]
    %v547 = vld [vmem:[#allocation7 + $0x7c] sm:$0xf]
    %v548 = vld [vmem:[#allocation7 + $0x80] sm:$0xf]
    %v549 = vld [vmem:[#allocation7 + $0x84] sm:$0xf]
    %v550 = vld [vmem:[#allocation7 + $0x88] sm:$0xf]
    %v551 = vld [vmem:[#allocation7 + $0x8c] sm:$0xf]
    %v552 = vld [vmem:[#allocation7 + $0x90] sm:$0xf]
    %v553 = vld [vmem:[#allocation7 + $0x94] sm:$0xf]
    %v554 = vld [vmem:[#allocation7 + $0x98] sm:$0xf]
    %v555 = vld [vmem:[#allocation7 + $0x9c] sm:$0xf]
    %v556 = vld [vmem:[#allocation7 + $0xa0] sm:$0xf]
    %v557 = vld [vmem:[#allocation7 + $0xa4] sm:$0xf]
    %v558 = vld [vmem:[#allocation7 + $0xa8] sm:$0xf]
    %v559 = vld [vmem:[#allocation7 + $0xac] sm:$0xf]
    %v560 = vld [vmem:[#allocation7 + $0xb0] sm:$0xf]
    %v561 = vld [vmem:[#allocation7 + $0xb4] sm:$0xf]
    %v562 = vld [vmem:[#allocation7 + $0xb8] sm:$0xf]
    %v563 = vld [vmem:[#allocation7 + $0xbc] sm:$0xf]
    %v564 = vld [vmem:[%s4] sm:$0x1]
    %v565 = vmax.f32 %v512, 0.0
    %v566 = vmax.f32 %v513, 0.0
    %v567 = vmax.f32 %v514, 0.0
    %v568 = vmax.f32 %v515, 0.0
    %v569 = vpack.c.bf16 %v566, %v565
    %v570 = vpack.c.bf16 %v568, %v567
    %v572 = vshrl.u32 %v569, 16
    %v574 = vrot.slane %v572, 7
    %v575 = vshll.u32 %v569, 16
    %v577 = vor.u32 %v574, %v575
    %v579 = vshrl.u32 %v570, 16
    %v581 = vrot.slane %v579, 7
    %v582 = vshll.u32 %v570, 16
    %v584 = vor.u32 %v581, %v582
    %v589 = vsel %vm166, 0, %v577
    %v590 = vsel %vm166, 0, %v584
    %v591 = vsel %vm166, %v574, 0
    %v592 = vsel %vm166, %v581, 0
    %v594 = vshrl.u32 %v589, 16
    %v596 = vshll.u32 %v589, 16
    %v598 = vrot.slane %v596, 1
    %v599 = vor.u32 %v594, %v598
    %v601 = vshll.u32 %v591, 16
    %v603 = vrot.slane %v601, 1
    %v604 = vsel %vm171, %v599, %v603
    %v606 = vshrl.u32 %v590, 16
    %v608 = vshll.u32 %v590, 16
    %v610 = vrot.slane %v608, 1
    %v611 = vor.u32 %v606, %v610
    %v613 = vshll.u32 %v592, 16
    %v615 = vrot.slane %v613, 1
    %v616 = vsel %vm171, %v611, %v615
    %v635 = vunpack.c.l.b16 %v532
    %v636 = vunpack.c.l.b16 %v533
    %v637 = vunpack.c.l.b16 %v534
    %v638 = vunpack.c.l.b16 %v535
    %v639 = vunpack.c.l.b16 %v536
    %v640 = vunpack.c.l.b16 %v537
    %v641 = vunpack.c.l.b16 %v538
    %v642 = vunpack.c.l.b16 %v539
    %v643 = vunpack.c.l.b16 %v540
    %v644 = vunpack.c.l.b16 %v541
    %v645 = vunpack.c.l.b16 %v542
    %v646 = vunpack.c.l.b16 %v543
    %v647 = vunpack.c.l.b16 %v544
    %v648 = vunpack.c.l.b16 %v545
    %v649 = vunpack.c.l.b16 %v546
    %v650 = vunpack.c.l.b16 %v547
    %v651 = vpack.c.b16 %v636, %v635
    %v652 = vpack.c.b16 %v638, %v637
    %v653 = vpack.c.b16 %v640, %v639
    %v654 = vpack.c.b16 %v642, %v641
    %v655 = vpack.c.b16 %v644, %v643
    %v656 = vpack.c.b16 %v646, %v645
    %v657 = vpack.c.b16 %v648, %v647
    %v658 = vpack.c.b16 %v650, %v649
    %667 = vmatprep.subr.bf16.mxu0 0
    %668 = vmatpush1.bf16.msra.mxu0 %v658
    %669 = vmatprep.subr.bf16.mxu0 0
    %670 = vmatpush1.bf16.msra.mxu0 %v657
    %671 = vmatprep.subr.bf16.mxu0 0
    %672 = vmatpush1.bf16.msra.mxu0 %v656
    %673 = vmatprep.subr.bf16.mxu0 0
    %674 = vmatpush1.bf16.msra.mxu0 %v655
    %675 = vmatprep.subr.bf16.mxu0 0
    %676 = vmatpush1.bf16.msra.mxu0 %v654
    %677 = vmatprep.subr.bf16.mxu0 0
    %678 = vmatpush1.bf16.msra.mxu0 %v653
    %679 = vmatprep.subr.bf16.mxu0 0
    %680 = vmatpush1.bf16.msra.mxu0 %v652
    %681 = vmatprep.subr.bf16.mxu0 0
    %682 = vmatpush1.bf16.msra.mxu0 %v651
    %683 = vmatprep.subr.bf16.mxu0 0
    %684 = vmatpush2.bf16.msra.mxu0 0
    %685 = vmatprep.subr.bf16.mxu0 0
    %686 = vmatpush2.bf16.msra.mxu0 0
    %687 = vmatprep.subr.bf16.mxu0 0
    %688 = vmatpush2.bf16.msra.mxu0 0
    %689 = vmatprep.subr.bf16.mxu0 0
    %690 = vmatpush2.bf16.msra.mxu0 0
    %691 = vmatprep.subr.bf16.mxu0 0
    %692 = vmatpush2.bf16.msra.mxu0 0
    %693 = vmatprep.subr.bf16.mxu0 0
    %694 = vmatpush2.bf16.msra.mxu0 0
    %695 = vmatprep.subr.bf16.mxu0 0
    %696 = vmatpush2.bf16.msra.mxu0 0
    %697 = vmatprep.subr.bf16.mxu0 0
    %698 = vmatpush2.bf16.msra.mxu0 0
    %699 = vmatprep.mubr.bf16.mxu0 0
    %700 = vmatmul.mubr.bf16.gmra.mxu0 %v604
    %v701 = vpop.f32.mrf.mxu0
    %v702 = vadd.f32 0.0, %v701
    %v703 = vpop.f32.mrf.mxu0
    %v704 = vpop.f32.mrf.mxu0
    %v705 = vadd.f32 0.0, %v704
    %v706 = vpop.f32.mrf.mxu0
    %707 = vmatprep.mubr.bf16.mxu0 0
    %708 = vmatmul.mubr.bf16.gmra.mxu0 %v616
    %v709 = vpop.f32.mrf.mxu0
    %v710 = vadd.f32 0.0, %v709
    %v711 = vpop.f32.mrf.mxu0
    %v712 = vpop.f32.mrf.mxu0
    %v713 = vadd.f32 0.0, %v712
    %v714 = vpop.f32.mrf.mxu0
    %715 = vdwg.mxu0
    %v732 = vunpack.c.l.b16 %v516
    %v733 = vunpack.c.l.b16 %v517
    %v734 = vunpack.c.l.b16 %v518
    %v735 = vunpack.c.l.b16 %v519
    %v736 = vunpack.c.l.b16 %v520
    %v737 = vunpack.c.l.b16 %v521
    %v738 = vunpack.c.l.b16 %v522
    %v739 = vunpack.c.l.b16 %v523
    %v740 = vunpack.c.l.b16 %v524
    %v741 = vunpack.c.l.b16 %v525
    %v742 = vunpack.c.l.b16 %v526
    %v743 = vunpack.c.l.b16 %v527
    %v744 = vunpack.c.l.b16 %v528
    %v745 = vunpack.c.l.b16 %v529
    %v746 = vunpack.c.l.b16 %v530
    %v747 = vunpack.c.l.b16 %v531
    %v748 = vpack.c.b16 %v733, %v732
    %v749 = vpack.c.b16 %v735, %v734
    %v750 = vpack.c.b16 %v737, %v736
    %v751 = vpack.c.b16 %v739, %v738
    %v752 = vpack.c.b16 %v741, %v740
    %v753 = vpack.c.b16 %v743, %v742
    %v754 = vpack.c.b16 %v745, %v744
    %v755 = vpack.c.b16 %v747, %v746
    %764 = vmatprep.subr.bf16.mxu0 0
    %765 = vmatpush1.bf16.msra.mxu0 %v755
    %766 = vmatprep.subr.bf16.mxu0 0
    %767 = vmatpush1.bf16.msra.mxu0 %v754
    %768 = vmatprep.subr.bf16.mxu0 0
    %769 = vmatpush1.bf16.msra.mxu0 %v753
    %770 = vmatprep.subr.bf16.mxu0 0
    %771 = vmatpush1.bf16.msra.mxu0 %v752
    %772 = vmatprep.subr.bf16.mxu0 0
    %773 = vmatpush1.bf16.msra.mxu0 %v751
    %774 = vmatprep.subr.bf16.mxu0 0
    %775 = vmatpush1.bf16.msra.mxu0 %v750
    %776 = vmatprep.subr.bf16.mxu0 0
    %777 = vmatpush1.bf16.msra.mxu0 %v749
    %778 = vmatprep.subr.bf16.mxu0 0
    %779 = vmatpush1.bf16.msra.mxu0 %v748
    %780 = vmatprep.subr.bf16.mxu0 0
    %781 = vmatpush2.bf16.msra.mxu0 0
    %782 = vmatprep.subr.bf16.mxu0 0
    %783 = vmatpush2.bf16.msra.mxu0 0
    %784 = vmatprep.subr.bf16.mxu0 0
    %785 = vmatpush2.bf16.msra.mxu0 0
    %786 = vmatprep.subr.bf16.mxu0 0
    %787 = vmatpush2.bf16.msra.mxu0 0
    %788 = vmatprep.subr.bf16.mxu0 0
    %789 = vmatpush2.bf16.msra.mxu0 0
    %790 = vmatprep.subr.bf16.mxu0 0
    %791 = vmatpush2.bf16.msra.mxu0 0
    %792 = vmatprep.subr.bf16.mxu0 0
    %793 = vmatpush2.bf16.msra.mxu0 0
    %794 = vmatprep.subr.bf16.mxu0 0
    %795 = vmatpush2.bf16.msra.mxu0 0
    %796 = vmatprep.mubr.bf16.mxu0 0
    %797 = vmatmul.mubr.bf16.gmra.mxu0 %v589
    %v798 = vpop.f32.mrf.mxu0
    %v799 = vadd.f32 %v702, %v798
    %v800 = vpop.f32.mrf.mxu0
    %v801 = vpop.f32.mrf.mxu0
    %v802 = vadd.f32 %v705, %v801
    %v803 = vpop.f32.mrf.mxu0
    %804 = vmatprep.mubr.bf16.mxu0 0
    %805 = vmatmul.mubr.bf16.gmra.mxu0 %v590
    %v806 = vpop.f32.mrf.mxu0
    %v807 = vadd.f32 %v710, %v806
    %v808 = vpop.f32.mrf.mxu0
    %v809 = vpop.f32.mrf.mxu0
    %v810 = vadd.f32 %v713, %v809
    %v811 = vpop.f32.mrf.mxu0
    %812 = vdwg.mxu0
    %v817 = vrot.slane %v589, 1
    %v818 = vrot.slane %v591, 1
    %v819 = vsel %vm396, %v817, %v818
    %v820 = vrot.slane %v590, 1
    %v821 = vrot.slane %v592, 1
    %v822 = vsel %vm396, %v820, %v821
    %v841 = vunpack.c.l.b16 %v548
    %v842 = vunpack.c.l.b16 %v549
    %v843 = vunpack.c.l.b16 %v550
    %v844 = vunpack.c.l.b16 %v551
    %v845 = vunpack.c.l.b16 %v552
    %v846 = vunpack.c.l.b16 %v553
    %v847 = vunpack.c.l.b16 %v554
    %v848 = vunpack.c.l.b16 %v555
    %v849 = vunpack.c.l.b16 %v556
    %v850 = vunpack.c.l.b16 %v557
    %v851 = vunpack.c.l.b16 %v558
    %v852 = vunpack.c.l.b16 %v559
    %v853 = vunpack.c.l.b16 %v560
    %v854 = vunpack.c.l.b16 %v561
    %v855 = vunpack.c.l.b16 %v562
    %v856 = vunpack.c.l.b16 %v563
    %v857 = vpack.c.b16 %v842, %v841
    %v858 = vpack.c.b16 %v844, %v843
    %v859 = vpack.c.b16 %v846, %v845
    %v860 = vpack.c.b16 %v848, %v847
    %v861 = vpack.c.b16 %v850, %v849
    %v862 = vpack.c.b16 %v852, %v851
    %v863 = vpack.c.b16 %v854, %v853
    %v864 = vpack.c.b16 %v856, %v855
    %873 = vmatprep.subr.bf16.mxu0 0
    %874 = vmatpush1.bf16.msra.mxu0 %v864
    %875 = vmatprep.subr.bf16.mxu0 0
    %876 = vmatpush1.bf16.msra.mxu0 %v863
    %877 = vmatprep.subr.bf16.mxu0 0
    %878 = vmatpush1.bf16.msra.mxu0 %v862
    %879 = vmatprep.subr.bf16.mxu0 0
    %880 = vmatpush1.bf16.msra.mxu0 %v861
    %881 = vmatprep.subr.bf16.mxu0 0
    %882 = vmatpush1.bf16.msra.mxu0 %v860
    %883 = vmatprep.subr.bf16.mxu0 0
    %884 = vmatpush1.bf16.msra.mxu0 %v859
    %885 = vmatprep.subr.bf16.mxu0 0
    %886 = vmatpush1.bf16.msra.mxu0 %v858
    %887 = vmatprep.subr.bf16.mxu0 0
    %888 = vmatpush1.bf16.msra.mxu0 %v857
    %889 = vmatprep.subr.bf16.mxu0 0
    %890 = vmatpush2.bf16.msra.mxu0 0
    %891 = vmatprep.subr.bf16.mxu0 0
    %892 = vmatpush2.bf16.msra.mxu0 0
    %893 = vmatprep.subr.bf16.mxu0 0
    %894 = vmatpush2.bf16.msra.mxu0 0
    %895 = vmatprep.subr.bf16.mxu0 0
    %896 = vmatpush2.bf16.msra.mxu0 0
    %897 = vmatprep.subr.bf16.mxu0 0
    %898 = vmatpush2.bf16.msra.mxu0 0
    %899 = vmatprep.subr.bf16.mxu0 0
    %900 = vmatpush2.bf16.msra.mxu0 0
    %901 = vmatprep.subr.bf16.mxu0 0
    %902 = vmatpush2.bf16.msra.mxu0 0
    %903 = vmatprep.subr.bf16.mxu0 0
    %904 = vmatpush2.bf16.msra.mxu0 0
    %905 = vmatprep.mubr.bf16.mxu0 0
    %906 = vmatmul.mubr.bf16.gmra.mxu0 %v819
    %v907 = vpop.f32.mrf.mxu0
    %v908 = vadd.f32 0.0, %v907
    %v909 = vpop.f32.mrf.mxu0
    %v910 = vpop.f32.mrf.mxu0
    %v911 = vadd.f32 0.0, %v910
    %v912 = vpop.f32.mrf.mxu0
    %913 = vmatprep.mubr.bf16.mxu0 0
    %914 = vmatmul.mubr.bf16.gmra.mxu0 %v822
    %v915 = vpop.f32.mrf.mxu0
    %v916 = vadd.f32 0.0, %v915
    %v917 = vpop.f32.mrf.mxu0
    %v918 = vpop.f32.mrf.mxu0
    %v919 = vadd.f32 0.0, %v918
    %v920 = vpop.f32.mrf.mxu0
    %921 = vdwg.mxu0
    %v922 = vadd.f32 %v799, %v908
    %v923 = vadd.f32 %v802, %v911
    %v924 = vadd.f32 %v807, %v916
    %v925 = vadd.f32 %v810, %v919
    %v927 = vlaneseq
    %v928 = vshrl.u32 %v927, 7
    %v929 = vsub.s32 0, %v928
    %v930 = vrot.slane %v564, %v929
    %v932 = vadd.f32 %v922, %v930
    %v933 = vadd.f32 %v923, %v930
    %v934 = vadd.f32 %v924, %v930
    %v935 = vadd.f32 %v925, %v930
    %s936 = scalar_lea.vmem [#allocation7], 192
    %v937 = vld [vmem:[%s936] sm:$0xf]
    %v938 = vld [vmem:[%s936 + $0x4] sm:$0xf]
    %v939 = vld [vmem:[%s936 + $0x8] sm:$0xf]
    %v940 = vld [vmem:[%s936 + $0xc] sm:$0xf]
    %v941 = vld [vmem:[%s936 + $0x10] sm:$0xf]
    %v942 = vld [vmem:[%s936 + $0x14] sm:$0xf]
    %v943 = vld [vmem:[%s936 + $0x18] sm:$0xf]
    %v944 = vld [vmem:[%s936 + $0x1c] sm:$0xf]
    %v945 = vld [vmem:[%s936 + $0x20] sm:$0xf]
    %v946 = vld [vmem:[%s936 + $0x24] sm:$0xf]
    %v947 = vld [vmem:[%s936 + $0x28] sm:$0xf]
    %v948 = vld [vmem:[%s936 + $0x2c] sm:$0xf]
    %v949 = vld [vmem:[%s936 + $0x30] sm:$0xf]
    %v950 = vld [vmem:[%s936 + $0x34] sm:$0xf]
    %v951 = vld [vmem:[%s936 + $0x38] sm:$0xf]
    %v952 = vld [vmem:[%s936 + $0x3c] sm:$0xf]
    %v953 = vld [vmem:[%s936 + $0x40] sm:$0xf]
    %v954 = vld [vmem:[%s936 + $0x44] sm:$0xf]
    %v955 = vld [vmem:[%s936 + $0x48] sm:$0xf]
    %v956 = vld [vmem:[%s936 + $0x4c] sm:$0xf]
    %v957 = vld [vmem:[%s936 + $0x50] sm:$0xf]
    %v958 = vld [vmem:[%s936 + $0x54] sm:$0xf]
    %v959 = vld [vmem:[%s936 + $0x58] sm:$0xf]
    %v960 = vld [vmem:[%s936 + $0x5c] sm:$0xf]
    %v961 = vld [vmem:[%s936 + $0x60] sm:$0xf]
    %v962 = vld [vmem:[%s936 + $0x64] sm:$0xf]
    %v963 = vld [vmem:[%s936 + $0x68] sm:$0xf]
    %v964 = vld [vmem:[%s936 + $0x6c] sm:$0xf]
    %v965 = vld [vmem:[%s936 + $0x70] sm:$0xf]
    %v966 = vld [vmem:[%s936 + $0x74] sm:$0xf]
    %v967 = vld [vmem:[%s936 + $0x78] sm:$0xf]
    %v968 = vld [vmem:[%s936 + $0x7c] sm:$0xf]
    %v969 = vld [vmem:[%s936 + $0x80] sm:$0xf]
    %v970 = vld [vmem:[%s936 + $0x84] sm:$0xf]
    %v971 = vld [vmem:[%s936 + $0x88] sm:$0xf]
    %v972 = vld [vmem:[%s936 + $0x8c] sm:$0xf]
    %v973 = vld [vmem:[%s936 + $0x90] sm:$0xf]
    %v974 = vld [vmem:[%s936 + $0x94] sm:$0xf]
    %v975 = vld [vmem:[%s936 + $0x98] sm:$0xf]
    %v976 = vld [vmem:[%s936 + $0x9c] sm:$0xf]
    %v977 = vld [vmem:[%s936 + $0xa0] sm:$0xf]
    %v978 = vld [vmem:[%s936 + $0xa4] sm:$0xf]
    %v979 = vld [vmem:[%s936 + $0xa8] sm:$0xf]
    %v980 = vld [vmem:[%s936 + $0xac] sm:$0xf]
    %v981 = vld [vmem:[%s936 + $0xb0] sm:$0xf]
    %v982 = vld [vmem:[%s936 + $0xb4] sm:$0xf]
    %v983 = vld [vmem:[%s936 + $0xb8] sm:$0xf]
    %v984 = vld [vmem:[%s936 + $0xbc] sm:$0xf]
    %s985 = scalar_lea.vmem %s4, 1
    %v986 = vld [vmem:[%s985] sm:$0x1]
    %v987 = vmax.f32 %v932, 0.0
    %v988 = vmax.f32 %v933, 0.0
    %v989 = vmax.f32 %v934, 0.0
    %v990 = vmax.f32 %v935, 0.0
    %v991 = vpack.c.bf16 %v988, %v987
    %v992 = vpack.c.bf16 %v990, %v989
    %v994 = vshrl.u32 %v991, 16
    %v996 = vrot.slane %v994, 7
    %v997 = vshll.u32 %v991, 16
    %v999 = vor.u32 %v996, %v997
    %v1001 = vshrl.u32 %v992, 16
    %v1003 = vrot.slane %v1001, 7
    %v1004 = vshll.u32 %v992, 16
    %v1006 = vor.u32 %v1003, %v1004
    %v1011 = vsel %vm166, 0, %v999
    %v1012 = vsel %vm166, 0, %v1006
    %v1013 = vsel %vm166, %v996, 0
    %v1014 = vsel %vm166, %v1003, 0
    %v1016 = vshrl.u32 %v1011, 16
    %v1018 = vshll.u32 %v1011, 16
    %v1020 = vrot.slane %v1018, 1
    %v1021 = vor.u32 %v1016, %v1020
    %v1023 = vshll.u32 %v1013, 16
    %v1025 = vrot.slane %v1023, 1
    %v1026 = vsel %vm171, %v1021, %v1025
    %v1028 = vshrl.u32 %v1012, 16
    %v1030 = vshll.u32 %v1012, 16
    %v1032 = vrot.slane %v1030, 1
    %v1033 = vor.u32 %v1028, %v1032
    %v1035 = vshll.u32 %v1014, 16
    %v1037 = vrot.slane %v1035, 1
    %v1038 = vsel %vm171, %v1033, %v1037
    %v1057 = vunpack.c.l.b16 %v953
    %v1058 = vunpack.c.l.b16 %v954
    %v1059 = vunpack.c.l.b16 %v955
    %v1060 = vunpack.c.l.b16 %v956
    %v1061 = vunpack.c.l.b16 %v957
    %v1062 = vunpack.c.l.b16 %v958
    %v1063 = vunpack.c.l.b16 %v959
    %v1064 = vunpack.c.l.b16 %v960
    %v1065 = vunpack.c.l.b16 %v961
    %v1066 = vunpack.c.l.b16 %v962
    %v1067 = vunpack.c.l.b16 %v963
    %v1068 = vunpack.c.l.b16 %v964
    %v1069 = vunpack.c.l.b16 %v965
    %v1070 = vunpack.c.l.b16 %v966
    %v1071 = vunpack.c.l.b16 %v967
    %v1072 = vunpack.c.l.b16 %v968
    %v1073 = vpack.c.b16 %v1058, %v1057
    %v1074 = vpack.c.b16 %v1060, %v1059
    %v1075 = vpack.c.b16 %v1062, %v1061
    %v1076 = vpack.c.b16 %v1064, %v1063
    %v1077 = vpack.c.b16 %v1066, %v1065
    %v1078 = vpack.c.b16 %v1068, %v1067
    %v1079 = vpack.c.b16 %v1070, %v1069
    %v1080 = vpack.c.b16 %v1072, %v1071
    %1089 = vmatprep.subr.bf16.mxu0 0
    %1090 = vmatpush1.bf16.msra.mxu0 %v1080
    %1091 = vmatprep.subr.bf16.mxu0 0
    %1092 = vmatpush1.bf16.msra.mxu0 %v1079
    %1093 = vmatprep.subr.bf16.mxu0 0
    %1094 = vmatpush1.bf16.msra.mxu0 %v1078
    %1095 = vmatprep.subr.bf16.mxu0 0
    %1096 = vmatpush1.bf16.msra.mxu0 %v1077
    %1097 = vmatprep.subr.bf16.mxu0 0
    %1098 = vmatpush1.bf16.msra.mxu0 %v1076
    %1099 = vmatprep.subr.bf16.mxu0 0
    %1100 = vmatpush1.bf16.msra.mxu0 %v1075
    %1101 = vmatprep.subr.bf16.mxu0 0
    %1102 = vmatpush1.bf16.msra.mxu0 %v1074
    %1103 = vmatprep.subr.bf16.mxu0 0
    %1104 = vmatpush1.bf16.msra.mxu0 %v1073
    %1105 = vmatprep.subr.bf16.mxu0 0
    %1106 = vmatpush2.bf16.msra.mxu0 0
    %1107 = vmatprep.subr.bf16.mxu0 0
    %1108 = vmatpush2.bf16.msra.mxu0 0
    %1109 = vmatprep.subr.bf16.mxu0 0
    %1110 = vmatpush2.bf16.msra.mxu0 0
    %1111 = vmatprep.subr.bf16.mxu0 0
    %1112 = vmatpush2.bf16.msra.mxu0 0
    %1113 = vmatprep.subr.bf16.mxu0 0
    %1114 = vmatpush2.bf16.msra.mxu0 0
    %1115 = vmatprep.subr.bf16.mxu0 0
    %1116 = vmatpush2.bf16.msra.mxu0 0
    %1117 = vmatprep.subr.bf16.mxu0 0
    %1118 = vmatpush2.bf16.msra.mxu0 0
    %1119 = vmatprep.subr.bf16.mxu0 0
    %1120 = vmatpush2.bf16.msra.mxu0 0
    %1121 = vmatprep.mubr.bf16.mxu0 0
    %1122 = vmatmul.mubr.bf16.gmra.mxu0 %v1026
    %v1123 = vpop.f32.mrf.mxu0
    %v1124 = vadd.f32 0.0, %v1123
    %v1125 = vpop.f32.mrf.mxu0
    %v1126 = vpop.f32.mrf.mxu0
    %v1127 = vadd.f32 0.0, %v1126
    %v1128 = vpop.f32.mrf.mxu0
    %1129 = vmatprep.mubr.bf16.mxu0 0
    %1130 = vmatmul.mubr.bf16.gmra.mxu0 %v1038
    %v1131 = vpop.f32.mrf.mxu0
    %v1132 = vadd.f32 0.0, %v1131
    %v1133 = vpop.f32.mrf.mxu0
    %v1134 = vpop.f32.mrf.mxu0
    %v1135 = vadd.f32 0.0, %v1134
    %v1136 = vpop.f32.mrf.mxu0
    %1137 = vdwg.mxu0
    %v1154 = vunpack.c.l.b16 %v937
    %v1155 = vunpack.c.l.b16 %v938
    %v1156 = vunpack.c.l.b16 %v939
    %v1157 = vunpack.c.l.b16 %v940
    %v1158 = vunpack.c.l.b16 %v941
    %v1159 = vunpack.c.l.b16 %v942
    %v1160 = vunpack.c.l.b16 %v943
    %v1161 = vunpack.c.l.b16 %v944
    %v1162 = vunpack.c.l.b16 %v945
    %v1163 = vunpack.c.l.b16 %v946
    %v1164 = vunpack.c.l.b16 %v947
    %v1165 = vunpack.c.l.b16 %v948
    %v1166 = vunpack.c.l.b16 %v949
    %v1167 = vunpack.c.l.b16 %v950
    %v1168 = vunpack.c.l.b16 %v951
    %v1169 = vunpack.c.l.b16 %v952
    %v1170 = vpack.c.b16 %v1155, %v1154
    %v1171 = vpack.c.b16 %v1157, %v1156
    %v1172 = vpack.c.b16 %v1159, %v1158
    %v1173 = vpack.c.b16 %v1161, %v1160
    %v1174 = vpack.c.b16 %v1163, %v1162
    %v1175 = vpack.c.b16 %v1165, %v1164
    %v1176 = vpack.c.b16 %v1167, %v1166
    %v1177 = vpack.c.b16 %v1169, %v1168
    %1186 = vmatprep.subr.bf16.mxu0 0
    %1187 = vmatpush1.bf16.msra.mxu0 %v1177
    %1188 = vmatprep.subr.bf16.mxu0 0
    %1189 = vmatpush1.bf16.msra.mxu0 %v1176
    %1190 = vmatprep.subr.bf16.mxu0 0
    %1191 = vmatpush1.bf16.msra.mxu0 %v1175
    %1192 = vmatprep.subr.bf16.mxu0 0
    %1193 = vmatpush1.bf16.msra.mxu0 %v1174
    %1194 = vmatprep.subr.bf16.mxu0 0
    %1195 = vmatpush1.bf16.msra.mxu0 %v1173
    %1196 = vmatprep.subr.bf16.mxu0 0
    %1197 = vmatpush1.bf16.msra.mxu0 %v1172
    %1198 = vmatprep.subr.bf16.mxu0 0
    %1199 = vmatpush1.bf16.msra.mxu0 %v1171
    %1200 = vmatprep.subr.bf16.mxu0 0
    %1201 = vmatpush1.bf16.msra.mxu0 %v1170
    %1202 = vmatprep.subr.bf16.mxu0 0
    %1203 = vmatpush2.bf16.msra.mxu0 0
    %1204 = vmatprep.subr.bf16.mxu0 0
    %1205 = vmatpush2.bf16.msra.mxu0 0
    %1206 = vmatprep.subr.bf16.mxu0 0
    %1207 = vmatpush2.bf16.msra.mxu0 0
    %1208 = vmatprep.subr.bf16.mxu0 0
    %1209 = vmatpush2.bf16.msra.mxu0 0
    %1210 = vmatprep.subr.bf16.mxu0 0
    %1211 = vmatpush2.bf16.msra.mxu0 0
    %1212 = vmatprep.subr.bf16.mxu0 0
    %1213 = vmatpush2.bf16.msra.mxu0 0
    %1214 = vmatprep.subr.bf16.mxu0 0
    %1215 = vmatpush2.bf16.msra.mxu0 0
    %1216 = vmatprep.subr.bf16.mxu0 0
    %1217 = vmatpush2.bf16.msra.mxu0 0
    %1218 = vmatprep.mubr.bf16.mxu0 0
    %1219 = vmatmul.mubr.bf16.gmra.mxu0 %v1011
    %v1220 = vpop.f32.mrf.mxu0
    %v1221 = vadd.f32 %v1124, %v1220
    %v1222 = vpop.f32.mrf.mxu0
    %v1223 = vpop.f32.mrf.mxu0
    %v1224 = vadd.f32 %v1127, %v1223
    %v1225 = vpop.f32.mrf.mxu0
    %1226 = vmatprep.mubr.bf16.mxu0 0
    %1227 = vmatmul.mubr.bf16.gmra.mxu0 %v1012
    %v1228 = vpop.f32.mrf.mxu0
    %v1229 = vadd.f32 %v1132, %v1228
    %v1230 = vpop.f32.mrf.mxu0
    %v1231 = vpop.f32.mrf.mxu0
    %v1232 = vadd.f32 %v1135, %v1231
    %v1233 = vpop.f32.mrf.mxu0
    %1234 = vdwg.mxu0
    %v1239 = vrot.slane %v1011, 1
    %v1240 = vrot.slane %v1013, 1
    %v1241 = vsel %vm396, %v1239, %v1240
    %v1242 = vrot.slane %v1012, 1
    %v1243 = vrot.slane %v1014, 1
    %v1244 = vsel %vm396, %v1242, %v1243
    %v1263 = vunpack.c.l.b16 %v969
    %v1264 = vunpack.c.l.b16 %v970
    %v1265 = vunpack.c.l.b16 %v971
    %v1266 = vunpack.c.l.b16 %v972
    %v1267 = vunpack.c.l.b16 %v973
    %v1268 = vunpack.c.l.b16 %v974
    %v1269 = vunpack.c.l.b16 %v975
    %v1270 = vunpack.c.l.b16 %v976
    %v1271 = vunpack.c.l.b16 %v977
    %v1272 = vunpack.c.l.b16 %v978
    %v1273 = vunpack.c.l.b16 %v979
    %v1274 = vunpack.c.l.b16 %v980
    %v1275 = vunpack.c.l.b16 %v981
    %v1276 = vunpack.c.l.b16 %v982
    %v1277 = vunpack.c.l.b16 %v983
    %v1278 = vunpack.c.l.b16 %v984
    %v1279 = vpack.c.b16 %v1264, %v1263
    %v1280 = vpack.c.b16 %v1266, %v1265
    %v1281 = vpack.c.b16 %v1268, %v1267
    %v1282 = vpack.c.b16 %v1270, %v1269
    %v1283 = vpack.c.b16 %v1272, %v1271
    %v1284 = vpack.c.b16 %v1274, %v1273
    %v1285 = vpack.c.b16 %v1276, %v1275
    %v1286 = vpack.c.b16 %v1278, %v1277
    %1295 = vmatprep.subr.bf16.mxu0 0
    %1296 = vmatpush1.bf16.msra.mxu0 %v1286
    %1297 = vmatprep.subr.bf16.mxu0 0
    %1298 = vmatpush1.bf16.msra.mxu0 %v1285
    %1299 = vmatprep.subr.bf16.mxu0 0
    %1300 = vmatpush1.bf16.msra.mxu0 %v1284
    %1301 = vmatprep.subr.bf16.mxu0 0
    %1302 = vmatpush1.bf16.msra.mxu0 %v1283
    %1303 = vmatprep.subr.bf16.mxu0 0
    %1304 = vmatpush1.bf16.msra.mxu0 %v1282
    %1305 = vmatprep.subr.bf16.mxu0 0
    %1306 = vmatpush1.bf16.msra.mxu0 %v1281
    %1307 = vmatprep.subr.bf16.mxu0 0
    %1308 = vmatpush1.bf16.msra.mxu0 %v1280
    %1309 = vmatprep.subr.bf16.mxu0 0
    %1310 = vmatpush1.bf16.msra.mxu0 %v1279
    %1311 = vmatprep.subr.bf16.mxu0 0
    %1312 = vmatpush2.bf16.msra.mxu0 0
    %1313 = vmatprep.subr.bf16.mxu0 0
    %1314 = vmatpush2.bf16.msra.mxu0 0
    %1315 = vmatprep.subr.bf16.mxu0 0
    %1316 = vmatpush2.bf16.msra.mxu0 0
    %1317 = vmatprep.subr.bf16.mxu0 0
    %1318 = vmatpush2.bf16.msra.mxu0 0
    %1319 = vmatprep.subr.bf16.mxu0 0
    %1320 = vmatpush2.bf16.msra.mxu0 0
    %1321 = vmatprep.subr.bf16.mxu0 0
    %1322 = vmatpush2.bf16.msra.mxu0 0
    %1323 = vmatprep.subr.bf16.mxu0 0
    %1324 = vmatpush2.bf16.msra.mxu0 0
    %1325 = vmatprep.subr.bf16.mxu0 0
    %1326 = vmatpush2.bf16.msra.mxu0 0
    %1327 = vmatprep.mubr.bf16.mxu0 0
    %1328 = vmatmul.mubr.bf16.gmra.mxu0 %v1241
    %v1329 = vpop.f32.mrf.mxu0
    %v1330 = vadd.f32 0.0, %v1329
    %v1331 = vpop.f32.mrf.mxu0
    %v1332 = vpop.f32.mrf.mxu0
    %v1333 = vadd.f32 0.0, %v1332
    %v1334 = vpop.f32.mrf.mxu0
    %1335 = vmatprep.mubr.bf16.mxu0 0
    %1336 = vmatmul.mubr.bf16.gmra.mxu0 %v1244
    %v1337 = vpop.f32.mrf.mxu0
    %v1338 = vadd.f32 0.0, %v1337
    %v1339 = vpop.f32.mrf.mxu0
    %v1340 = vpop.f32.mrf.mxu0
    %v1341 = vadd.f32 0.0, %v1340
    %v1342 = vpop.f32.mrf.mxu0
    %1343 = vdwg.mxu0
    %v1344 = vadd.f32 %v1221, %v1330
    %v1345 = vadd.f32 %v1224, %v1333
    %v1346 = vadd.f32 %v1229, %v1338
    %v1347 = vadd.f32 %v1232, %v1341
    %v1349 = vlaneseq
    %v1350 = vshrl.u32 %v1349, 7
    %v1351 = vsub.s32 0, %v1350
    %v1352 = vrot.slane %v986, %v1351
    %v1354 = vadd.f32 %v1344, %v1352
    %v1355 = vadd.f32 %v1345, %v1352
    %v1356 = vadd.f32 %v1346, %v1352
    %v1357 = vadd.f32 %v1347, %v1352
    %v1358 = vadd.f32 %v1354, %v512
    %v1359 = vadd.f32 %v1355, %v513
    %v1360 = vadd.f32 %v1356, %v514
    %v1361 = vadd.f32 %v1357, %v515
    %vm1366 = vcmask 1046528
    %v1367 = vrot.slane %v1358, 1
    %v1368 = vrot.slane %v1359, 1
    %v1369 = vsel %vm1366, %v1367, %v1368
    %v1370 = vrot.slane %v1360, 1
    %v1371 = vrot.slane %v1361, 1
    %v1372 = vsel %vm1366, %v1370, %v1371
    %v1377 = vmax.f32 %v1358, %v1369
    %v1378 = vmax.f32 %v1359, %v1368
    %v1379 = vmax.f32 %v1360, %v1372
    %v1380 = vmax.f32 %v1361, %v1371
    %vm1381 = vcmask 1045504
    %v1382 = vrot.slane %v1358, 2
    %v1383 = vrot.slane %v1359, 2
    %v1384 = vsel %vm1381, %v1382, %v1383
    %v1385 = vrot.slane %v1360, 2
    %v1386 = vrot.slane %v1361, 2
    %v1387 = vsel %vm1381, %v1385, %v1386
    %v1392 = vmax.f32 %v1377, %v1384
    %v1393 = vmax.f32 %v1378, %v1383
    %v1394 = vmax.f32 %v1379, %v1387
    %v1395 = vmax.f32 %v1380, %v1386
    %v1397 = vunpack.c.l.s4 1966171168
    %v1398 = vunpack.c.0.s8 %v1397
    %v1399 = vlaneseq
    %v1400 = vshrl.u32 %v1399, 7
    %v1401 = vsub.s32 %v1398, %v1400
    %v1402 = vrot.slane %v1392, %v1401
    %v1404 = vunpack.c.l.s4 1966171168
    %v1405 = vunpack.c.0.s8 %v1404
    %v1406 = vlaneseq
    %v1407 = vshrl.u32 %v1406, 7
    %v1408 = vsub.s32 %v1405, %v1407
    %v1409 = vrot.slane %v1393, %v1408
    %v1411 = vunpack.c.l.s4 1966171168
    %v1412 = vunpack.c.0.s8 %v1411
    %v1413 = vlaneseq
    %v1414 = vshrl.u32 %v1413, 7
    %v1415 = vsub.s32 %v1412, %v1414
    %v1416 = vrot.slane %v1394, %v1415
    %v1418 = vunpack.c.l.s4 1966171168
    %v1419 = vunpack.c.0.s8 %v1418
    %v1420 = vlaneseq
    %v1421 = vshrl.u32 %v1420, 7
    %v1422 = vsub.s32 %v1419, %v1421
    %v1423 = vrot.slane %v1395, %v1422
    %s1424 = scalar_lea.vmem [#allocation7], 384
    %v1425 = vld [vmem:[%s1424] sm:$0xf]
    %v1426 = vld [vmem:[%s1424 + $0x4] sm:$0xf]
    %v1427 = vld [vmem:[%s1424 + $0x8] sm:$0xf]
    %v1428 = vld [vmem:[%s1424 + $0xc] sm:$0xf]
    %v1429 = vld [vmem:[%s1424 + $0x10] sm:$0xf]
    %v1430 = vld [vmem:[%s1424 + $0x14] sm:$0xf]
    %v1431 = vld [vmem:[%s1424 + $0x18] sm:$0xf]
    %v1432 = vld [vmem:[%s1424 + $0x1c] sm:$0xf]
    %v1433 = vld [vmem:[%s1424 + $0x20] sm:$0xf]
    %v1434 = vld [vmem:[%s1424 + $0x24] sm:$0xf]
    %v1435 = vld [vmem:[%s1424 + $0x28] sm:$0xf]
    %v1436 = vld [vmem:[%s1424 + $0x2c] sm:$0xf]
    %v1437 = vld [vmem:[%s1424 + $0x30] sm:$0xf]
    %v1438 = vld [vmem:[%s1424 + $0x34] sm:$0xf]
    %v1439 = vld [vmem:[%s1424 + $0x38] sm:$0xf]
    %v1440 = vld [vmem:[%s1424 + $0x3c] sm:$0xf]
    %v1441 = vld [vmem:[%s1424 + $0x40] sm:$0xf]
    %v1442 = vld [vmem:[%s1424 + $0x44] sm:$0xf]
    %v1443 = vld [vmem:[%s1424 + $0x48] sm:$0xf]
    %v1444 = vld [vmem:[%s1424 + $0x4c] sm:$0xf]
    %v1445 = vld [vmem:[%s1424 + $0x50] sm:$0xf]
    %v1446 = vld [vmem:[%s1424 + $0x54] sm:$0xf]
    %v1447 = vld [vmem:[%s1424 + $0x58] sm:$0xf]
    %v1448 = vld [vmem:[%s1424 + $0x5c] sm:$0xf]
    %v1449 = vld [vmem:[%s1424 + $0x60] sm:$0xf]
    %v1450 = vld [vmem:[%s1424 + $0x64] sm:$0xf]
    %v1451 = vld [vmem:[%s1424 + $0x68] sm:$0xf]
    %v1452 = vld [vmem:[%s1424 + $0x6c] sm:$0xf]
    %v1453 = vld [vmem:[%s1424 + $0x70] sm:$0xf]
    %v1454 = vld [vmem:[%s1424 + $0x74] sm:$0xf]
    %v1455 = vld [vmem:[%s1424 + $0x78] sm:$0xf]
    %v1456 = vld [vmem:[%s1424 + $0x7c] sm:$0xf]
    %v1457 = vld [vmem:[%s1424 + $0x80] sm:$0xf]
    %v1458 = vld [vmem:[%s1424 + $0x84] sm:$0xf]
    %v1459 = vld [vmem:[%s1424 + $0x88] sm:$0xf]
    %v1460 = vld [vmem:[%s1424 + $0x8c] sm:$0xf]
    %v1461 = vld [vmem:[%s1424 + $0x90] sm:$0xf]
    %v1462 = vld [vmem:[%s1424 + $0x94] sm:$0xf]
    %v1463 = vld [vmem:[%s1424 + $0x98] sm:$0xf]
    %v1464 = vld [vmem:[%s1424 + $0x9c] sm:$0xf]
    %v1465 = vld [vmem:[%s1424 + $0xa0] sm:$0xf]
    %v1466 = vld [vmem:[%s1424 + $0xa4] sm:$0xf]
    %v1467 = vld [vmem:[%s1424 + $0xa8] sm:$0xf]
    %v1468 = vld [vmem:[%s1424 + $0xac] sm:$0xf]
    %v1469 = vld [vmem:[%s1424 + $0xb0] sm:$0xf]
    %v1470 = vld [vmem:[%s1424 + $0xb4] sm:$0xf]
    %v1471 = vld [vmem:[%s1424 + $0xb8] sm:$0xf]
    %v1472 = vld [vmem:[%s1424 + $0xbc] sm:$0xf]
    %s1473 = scalar_lea.vmem %s4, 2
    %v1474 = vld [vmem:[%s1473] sm:$0x1]
    %v1475 = vmax.f32 %v1402, 0.0
    %v1476 = vmax.f32 %v1409, 0.0
    %v1477 = vmax.f32 %v1416, 0.0
    %v1478 = vmax.f32 %v1423, 0.0
    %v1483 = vcombine.low %v1475, %v1476
    %v1484 = vcombine.low %v1477, %v1478
    %v1487 = vpack.c.bf16 %v1483, %v1483
    %v1488 = vpack.c.bf16 %v1484, %v1484
    %v1490 = vshrl.u32 %v1487, 16
    %v1492 = vrot.slane %v1490, 7
    %v1493 = vshll.u32 %v1487, 16
    %v1495 = vor.u32 %v1492, %v1493
    %v1497 = vshrl.u32 %v1488, 16
    %v1499 = vrot.slane %v1497, 7
    %v1500 = vshll.u32 %v1488, 16
    %v1502 = vor.u32 %v1499, %v1500
    %v1505 = vsel %vm166, 0, %v1495
    %v1506 = vsel %vm166, 0, %v1502
    %vm1507 = vcmask 1043456
    %v1510 = vsel %vm1507, %v1505, 0
    %v1512 = vsel %vm1507, %v1506, 0
    %v1516 = vunpack.c.l.s4 1966171168
    %v1517 = vunpack.c.0.s8 %v1516
    %v1518 = vlaneseq
    %v1519 = vshrl.u32 %v1518, 7
    %v1520 = vsub.s32 %v1517, %v1519
    %v1521 = vrot.slane %v1510, %v1520
    %v1522 = vcombine.high %v1521, %v1521
    %v1524 = vunpack.c.l.s4 1966171168
    %v1525 = vunpack.c.0.s8 %v1524
    %v1526 = vlaneseq
    %v1527 = vshrl.u32 %v1526, 7
    %v1528 = vsub.s32 %v1525, %v1527
    %v1529 = vrot.slane %v1521, %v1528
    %v1531 = vunpack.c.l.s4 1966171168
    %v1532 = vunpack.c.0.s8 %v1531
    %v1533 = vlaneseq
    %v1534 = vshrl.u32 %v1533, 7
    %v1535 = vsub.s32 %v1532, %v1534
    %v1536 = vrot.slane %v1522, %v1535
    %v1537 = vcombine.high %v1529, %v1529
    %v1538 = vcombine.high %v1536, %v1536
    %v1540 = vunpack.c.l.s4 1966171168
    %v1541 = vunpack.c.0.s8 %v1540
    %v1542 = vlaneseq
    %v1543 = vshrl.u32 %v1542, 7
    %v1544 = vsub.s32 %v1541, %v1543
    %v1545 = vrot.slane %v1512, %v1544
    %v1546 = vcombine.high %v1545, %v1545
    %v1548 = vunpack.c.l.s4 1966171168
    %v1549 = vunpack.c.0.s8 %v1548
    %v1550 = vlaneseq
    %v1551 = vshrl.u32 %v1550, 7
    %v1552 = vsub.s32 %v1549, %v1551
    %v1553 = vrot.slane %v1545, %v1552
    %v1555 = vunpack.c.l.s4 1966171168
    %v1556 = vunpack.c.0.s8 %v1555
    %v1557 = vlaneseq
    %v1558 = vshrl.u32 %v1557, 7
    %v1559 = vsub.s32 %v1556, %v1558
    %v1560 = vrot.slane %v1546, %v1559
    %v1561 = vcombine.high %v1553, %v1553
    %v1562 = vcombine.high %v1560, %v1560
    %v1563 = vunpack.i.l.s16 %v1529
    %v1564 = vunpack.i.h.s16 %v1529
    %v1565 = vunpack.i.l.s16 %v1536
    %v1566 = vunpack.i.h.s16 %v1536
    %v1567 = vunpack.i.l.s16 %v1537
    %v1568 = vunpack.i.h.s16 %v1537
    %v1569 = vunpack.i.l.s16 %v1538
    %v1570 = vunpack.i.l.s16 %v1553
    %v1571 = vunpack.i.h.s16 %v1553
    %v1572 = vunpack.i.l.s16 %v1560
    %v1573 = vunpack.i.h.s16 %v1560
    %v1574 = vunpack.i.l.s16 %v1561
    %v1575 = vunpack.i.h.s16 %v1561
    %v1576 = vunpack.i.l.s16 %v1562
    %v1577 = vunpack.i.h.s16 %v1538
    %v1578 = vunpack.i.h.s16 %v1562
    %v1579 = vpack.i.b16 %v1565, %v1564
    %v1580 = vpack.i.b16 %v1567, %v1566
    %v1581 = vpack.i.b16 %v1569, %v1568
    %v1582 = vpack.i.b16 %v1571, %v1577
    %v1583 = vpack.i.b16 %v1573, %v1572
    %v1584 = vpack.i.b16 %v1575, %v1574
    %v1585 = vpack.i.b16 %v1578, %v1576
    %v1586 = vcombine.low %v1579, %v1580
    %v1587 = vcombine.low %v1581, %v1582
    %v1588 = vcombine.low %v1583, %v1584
    %v1590 = vunpack.c.l.s4 1966171168
    %v1591 = vunpack.c.0.s8 %v1590
    %v1592 = vlaneseq
    %v1593 = vshrl.u32 %v1592, 7
    %v1594 = vsub.s32 %v1591, %v1593
    %v1595 = vrot.slane %v1586, %v1594
    %v1597 = vunpack.c.l.s4 1966171168
    %v1598 = vunpack.c.0.s8 %v1597
    %v1599 = vlaneseq
    %v1600 = vshrl.u32 %v1599, 7
    %v1601 = vsub.s32 %v1598, %v1600
    %v1602 = vrot.slane %v1587, %v1601
    %v1604 = vunpack.c.l.s4 1966171168
    %v1605 = vunpack.c.0.s8 %v1604
    %v1606 = vlaneseq
    %v1607 = vshrl.u32 %v1606, 7
    %v1608 = vsub.s32 %v1605, %v1607
    %v1609 = vrot.slane %v1588, %v1608
    %v1611 = vunpack.c.l.s4 1966171168
    %v1612 = vunpack.c.0.s8 %v1611
    %v1613 = vlaneseq
    %v1614 = vshrl.u32 %v1613, 7
    %v1615 = vsub.s32 %v1612, %v1614
    %v1616 = vrot.slane %v1585, %v1615
    %v1617 = vcombine.low %v1595, %v1602
    %v1618 = vcombine.low %v1609, %v1616
    %v1620 = vunpack.c.l.s4 1966171168
    %v1621 = vunpack.c.0.s8 %v1620
    %v1622 = vlaneseq
    %v1623 = vshrl.u32 %v1622, 7
    %v1624 = vsub.s32 %v1621, %v1623
    %v1625 = vrot.slane %v1617, %v1624
    %v1627 = vunpack.c.l.s4 1966171168
    %v1628 = vunpack.c.0.s8 %v1627
    %v1629 = vlaneseq
    %v1630 = vshrl.u32 %v1629, 7
    %v1631 = vsub.s32 %v1628, %v1630
    %v1632 = vrot.slane %v1618, %v1631
    %v1633 = vcombine.low %v1625, %v1632
    %v1651 = vunpack.c.l.b16 %v1441
    %v1652 = vunpack.c.l.b16 %v1442
    %v1653 = vunpack.c.l.b16 %v1443
    %v1654 = vunpack.c.l.b16 %v1444
    %v1655 = vunpack.c.l.b16 %v1445
    %v1656 = vunpack.c.l.b16 %v1446
    %v1657 = vunpack.c.l.b16 %v1447
    %v1658 = vunpack.c.l.b16 %v1448
    %v1659 = vunpack.c.l.b16 %v1449
    %v1660 = vunpack.c.l.b16 %v1450
    %v1661 = vunpack.c.l.b16 %v1451
    %v1662 = vunpack.c.l.b16 %v1452
    %v1663 = vunpack.c.l.b16 %v1453
    %v1664 = vunpack.c.l.b16 %v1454
    %v1665 = vunpack.c.l.b16 %v1455
    %v1666 = vunpack.c.l.b16 %v1456
    %v1667 = vpack.c.b16 %v1652, %v1651
    %v1668 = vpack.c.b16 %v1654, %v1653
    %v1669 = vpack.c.b16 %v1656, %v1655
    %v1670 = vpack.c.b16 %v1658, %v1657
    %v1671 = vpack.c.b16 %v1660, %v1659
    %v1672 = vpack.c.b16 %v1662, %v1661
    %v1673 = vpack.c.b16 %v1664, %v1663
    %v1674 = vpack.c.b16 %v1666, %v1665
    %1683 = vmatprep.subr.bf16.mxu0 0
    %1684 = vmatpush1.bf16.msra.mxu0 %v1674
    %1685 = vmatprep.subr.bf16.mxu0 0
    %1686 = vmatpush1.bf16.msra.mxu0 %v1673
    %1687 = vmatprep.subr.bf16.mxu0 0
    %1688 = vmatpush1.bf16.msra.mxu0 %v1672
    %1689 = vmatprep.subr.bf16.mxu0 0
    %1690 = vmatpush1.bf16.msra.mxu0 %v1671
    %1691 = vmatprep.subr.bf16.mxu0 0
    %1692 = vmatpush1.bf16.msra.mxu0 %v1670
    %1693 = vmatprep.subr.bf16.mxu0 0
    %1694 = vmatpush1.bf16.msra.mxu0 %v1669
    %1695 = vmatprep.subr.bf16.mxu0 0
    %1696 = vmatpush1.bf16.msra.mxu0 %v1668
    %1697 = vmatprep.subr.bf16.mxu0 0
    %1698 = vmatpush1.bf16.msra.mxu0 %v1667
    %1699 = vmatprep.subr.bf16.mxu0 0
    %1700 = vmatpush2.bf16.msra.mxu0 0
    %1701 = vmatprep.subr.bf16.mxu0 0
    %1702 = vmatpush2.bf16.msra.mxu0 0
    %1703 = vmatprep.subr.bf16.mxu0 0
    %1704 = vmatpush2.bf16.msra.mxu0 0
    %1705 = vmatprep.subr.bf16.mxu0 0
    %1706 = vmatpush2.bf16.msra.mxu0 0
    %1707 = vmatprep.subr.bf16.mxu0 0
    %1708 = vmatpush2.bf16.msra.mxu0 0
    %1709 = vmatprep.subr.bf16.mxu0 0
    %1710 = vmatpush2.bf16.msra.mxu0 0
    %1711 = vmatprep.subr.bf16.mxu0 0
    %1712 = vmatpush2.bf16.msra.mxu0 0
    %1713 = vmatprep.subr.bf16.mxu0 0
    %1714 = vmatpush2.bf16.msra.mxu0 0
    %1715 = vmatprep.mubr.bf16.mxu0 0
    %1716 = vmatmul.mubr.bf16.gmra.mxu0 %v1633
    %v1717 = vpop.f32.mrf.mxu0
    %v1718 = vadd.f32 0.0, %v1717
    %v1719 = vpop.f32.mrf.mxu0
    %v1720 = vpop.f32.mrf.mxu0
    %v1721 = vadd.f32 0.0, %v1720
    %v1722 = vpop.f32.mrf.mxu0
    %1723 = vdwg.mxu0
    %v1724 = vpack.i.b16 %v1564, %v1563
    %v1725 = vpack.i.b16 %v1566, %v1565
    %v1726 = vpack.i.b16 %v1568, %v1567
    %v1727 = vpack.i.b16 %v1570, %v1569
    %v1728 = vpack.i.b16 %v1572, %v1571
    %v1729 = vpack.i.b16 %v1574, %v1573
    %v1730 = vpack.i.b16 %v1576, %v1575
    %v1731 = vcombine.low %v1724, %v1725
    %v1732 = vcombine.low %v1726, %v1727
    %v1733 = vcombine.low %v1728, %v1729
    %v1735 = vunpack.c.l.s4 1966171168
    %v1736 = vunpack.c.0.s8 %v1735
    %v1737 = vlaneseq
    %v1738 = vshrl.u32 %v1737, 7
    %v1739 = vsub.s32 %v1736, %v1738
    %v1740 = vrot.slane %v1731, %v1739
    %v1742 = vunpack.c.l.s4 1966171168
    %v1743 = vunpack.c.0.s8 %v1742
    %v1744 = vlaneseq
    %v1745 = vshrl.u32 %v1744, 7
    %v1746 = vsub.s32 %v1743, %v1745
    %v1747 = vrot.slane %v1732, %v1746
    %v1749 = vunpack.c.l.s4 1966171168
    %v1750 = vunpack.c.0.s8 %v1749
    %v1751 = vlaneseq
    %v1752 = vshrl.u32 %v1751, 7
    %v1753 = vsub.s32 %v1750, %v1752
    %v1754 = vrot.slane %v1733, %v1753
    %v1756 = vunpack.c.l.s4 1966171168
    %v1757 = vunpack.c.0.s8 %v1756
    %v1758 = vlaneseq
    %v1759 = vshrl.u32 %v1758, 7
    %v1760 = vsub.s32 %v1757, %v1759
    %v1761 = vrot.slane %v1730, %v1760
    %v1762 = vcombine.low %v1740, %v1747
    %v1763 = vcombine.low %v1754, %v1761
    %v1765 = vunpack.c.l.s4 1966171168
    %v1766 = vunpack.c.0.s8 %v1765
    %v1767 = vlaneseq
    %v1768 = vshrl.u32 %v1767, 7
    %v1769 = vsub.s32 %v1766, %v1768
    %v1770 = vrot.slane %v1762, %v1769
    %v1772 = vunpack.c.l.s4 1966171168
    %v1773 = vunpack.c.0.s8 %v1772
    %v1774 = vlaneseq
    %v1775 = vshrl.u32 %v1774, 7
    %v1776 = vsub.s32 %v1773, %v1775
    %v1777 = vrot.slane %v1763, %v1776
    %v1778 = vcombine.low %v1770, %v1777
    %v1796 = vunpack.c.l.b16 %v1425
    %v1797 = vunpack.c.l.b16 %v1426
    %v1798 = vunpack.c.l.b16 %v1427
    %v1799 = vunpack.c.l.b16 %v1428
    %v1800 = vunpack.c.l.b16 %v1429
    %v1801 = vunpack.c.l.b16 %v1430
    %v1802 = vunpack.c.l.b16 %v1431
    %v1803 = vunpack.c.l.b16 %v1432
    %v1804 = vunpack.c.l.b16 %v1433
    %v1805 = vunpack.c.l.b16 %v1434
    %v1806 = vunpack.c.l.b16 %v1435
    %v1807 = vunpack.c.l.b16 %v1436
    %v1808 = vunpack.c.l.b16 %v1437
    %v1809 = vunpack.c.l.b16 %v1438
    %v1810 = vunpack.c.l.b16 %v1439
    %v1811 = vunpack.c.l.b16 %v1440
    %v1812 = vpack.c.b16 %v1797, %v1796
    %v1813 = vpack.c.b16 %v1799, %v1798
    %v1814 = vpack.c.b16 %v1801, %v1800
    %v1815 = vpack.c.b16 %v1803, %v1802
    %v1816 = vpack.c.b16 %v1805, %v1804
    %v1817 = vpack.c.b16 %v1807, %v1806
    %v1818 = vpack.c.b16 %v1809, %v1808
    %v1819 = vpack.c.b16 %v1811, %v1810
    %1828 = vmatprep.subr.bf16.mxu0 0
    %1829 = vmatpush1.bf16.msra.mxu0 %v1819
    %1830 = vmatprep.subr.bf16.mxu0 0
    %1831 = vmatpush1.bf16.msra.mxu0 %v1818
    %1832 = vmatprep.subr.bf16.mxu0 0
    %1833 = vmatpush1.bf16.msra.mxu0 %v1817
    %1834 = vmatprep.subr.bf16.mxu0 0
    %1835 = vmatpush1.bf16.msra.mxu0 %v1816
    %1836 = vmatprep.subr.bf16.mxu0 0
    %1837 = vmatpush1.bf16.msra.mxu0 %v1815
    %1838 = vmatprep.subr.bf16.mxu0 0
    %1839 = vmatpush1.bf16.msra.mxu0 %v1814
    %1840 = vmatprep.subr.bf16.mxu0 0
    %1841 = vmatpush1.bf16.msra.mxu0 %v1813
    %1842 = vmatprep.subr.bf16.mxu0 0
    %1843 = vmatpush1.bf16.msra.mxu0 %v1812
    %1844 = vmatprep.subr.bf16.mxu0 0
    %1845 = vmatpush2.bf16.msra.mxu0 0
    %1846 = vmatprep.subr.bf16.mxu0 0
    %1847 = vmatpush2.bf16.msra.mxu0 0
    %1848 = vmatprep.subr.bf16.mxu0 0
    %1849 = vmatpush2.bf16.msra.mxu0 0
    %1850 = vmatprep.subr.bf16.mxu0 0
    %1851 = vmatpush2.bf16.msra.mxu0 0
    %1852 = vmatprep.subr.bf16.mxu0 0
    %1853 = vmatpush2.bf16.msra.mxu0 0
    %1854 = vmatprep.subr.bf16.mxu0 0
    %1855 = vmatpush2.bf16.msra.mxu0 0
    %1856 = vmatprep.subr.bf16.mxu0 0
    %1857 = vmatpush2.bf16.msra.mxu0 0
    %1858 = vmatprep.subr.bf16.mxu0 0
    %1859 = vmatpush2.bf16.msra.mxu0 0
    %1860 = vmatprep.mubr.bf16.mxu0 0
    %1861 = vmatmul.mubr.bf16.gmra.mxu0 %v1778
    %v1862 = vpop.f32.mrf.mxu0
    %v1863 = vadd.f32 %v1718, %v1862
    %v1864 = vpop.f32.mrf.mxu0
    %v1865 = vpop.f32.mrf.mxu0
    %v1866 = vadd.f32 %v1721, %v1865
    %v1867 = vpop.f32.mrf.mxu0
    %1868 = vdwg.mxu0
    %v1869 = vcombine.high %v1510, %v1510
    %v1871 = vunpack.c.l.s4 1966171168
    %v1872 = vunpack.c.0.s8 %v1871
    %v1873 = vlaneseq
    %v1874 = vshrl.u32 %v1873, 7
    %v1875 = vsub.s32 %v1872, %v1874
    %v1876 = vrot.slane %v1869, %v1875
    %v1878 = vunpack.c.l.s4 1966171168
    %v1879 = vunpack.c.0.s8 %v1878
    %v1880 = vlaneseq
    %v1881 = vshrl.u32 %v1880, 7
    %v1882 = vsub.s32 %v1879, %v1881
    %v1883 = vrot.slane %v1876, %v1882
    %v1884 = vcombine.high %v1512, %v1512
    %v1886 = vunpack.c.l.s4 1966171168
    %v1887 = vunpack.c.0.s8 %v1886
    %v1888 = vlaneseq
    %v1889 = vshrl.u32 %v1888, 7
    %v1890 = vsub.s32 %v1887, %v1889
    %v1891 = vrot.slane %v1884, %v1890
    %v1893 = vunpack.c.l.s4 1966171168
    %v1894 = vunpack.c.0.s8 %v1893
    %v1895 = vlaneseq
    %v1896 = vshrl.u32 %v1895, 7
    %v1897 = vsub.s32 %v1894, %v1896
    %v1898 = vrot.slane %v1891, %v1897
    %v1899 = vunpack.i.l.s16 %v1883
    %v1900 = vunpack.i.l.s16 %v1898
    %v1901 = vpack.i.b16 %v1577, %v1569
    %v1902 = vpack.i.b16 %v1572, %v1899
    %v1903 = vpack.i.b16 %v1900, %v1578
    %v1904 = vcombine.low %v1725, %v1726
    %v1905 = vcombine.low %v1901, %v1902
    %v1906 = vcombine.low %v1729, %v1730
    %v1908 = vunpack.c.l.s4 1966171168
    %v1909 = vunpack.c.0.s8 %v1908
    %v1910 = vlaneseq
    %v1911 = vshrl.u32 %v1910, 7
    %v1912 = vsub.s32 %v1909, %v1911
    %v1913 = vrot.slane %v1904, %v1912
    %v1915 = vunpack.c.l.s4 1966171168
    %v1916 = vunpack.c.0.s8 %v1915
    %v1917 = vlaneseq
    %v1918 = vshrl.u32 %v1917, 7
    %v1919 = vsub.s32 %v1916, %v1918
    %v1920 = vrot.slane %v1905, %v1919
    %v1922 = vunpack.c.l.s4 1966171168
    %v1923 = vunpack.c.0.s8 %v1922
    %v1924 = vlaneseq
    %v1925 = vshrl.u32 %v1924, 7
    %v1926 = vsub.s32 %v1923, %v1925
    %v1927 = vrot.slane %v1906, %v1926
    %v1929 = vunpack.c.l.s4 1966171168
    %v1930 = vunpack.c.0.s8 %v1929
    %v1931 = vlaneseq
    %v1932 = vshrl.u32 %v1931, 7
    %v1933 = vsub.s32 %v1930, %v1932
    %v1934 = vrot.slane %v1903, %v1933
    %v1935 = vcombine.low %v1913, %v1920
    %v1936 = vcombine.low %v1927, %v1934
    %v1938 = vunpack.c.l.s4 1966171168
    %v1939 = vunpack.c.0.s8 %v1938
    %v1940 = vlaneseq
    %v1941 = vshrl.u32 %v1940, 7
    %v1942 = vsub.s32 %v1939, %v1941
    %v1943 = vrot.slane %v1935, %v1942
    %v1945 = vunpack.c.l.s4 1966171168
    %v1946 = vunpack.c.0.s8 %v1945
    %v1947 = vlaneseq
    %v1948 = vshrl.u32 %v1947, 7
    %v1949 = vsub.s32 %v1946, %v1948
    %v1950 = vrot.slane %v1936, %v1949
    %v1951 = vcombine.low %v1943, %v1950
    %v1969 = vunpack.c.l.b16 %v1457
    %v1970 = vunpack.c.l.b16 %v1458
    %v1971 = vunpack.c.l.b16 %v1459
    %v1972 = vunpack.c.l.b16 %v1460
    %v1973 = vunpack.c.l.b16 %v1461
    %v1974 = vunpack.c.l.b16 %v1462
    %v1975 = vunpack.c.l.b16 %v1463
    %v1976 = vunpack.c.l.b16 %v1464
    %v1977 = vunpack.c.l.b16 %v1465
    %v1978 = vunpack.c.l.b16 %v1466
    %v1979 = vunpack.c.l.b16 %v1467
    %v1980 = vunpack.c.l.b16 %v1468
    %v1981 = vunpack.c.l.b16 %v1469
    %v1982 = vunpack.c.l.b16 %v1470
    %v1983 = vunpack.c.l.b16 %v1471
    %v1984 = vunpack.c.l.b16 %v1472
    %v1985 = vpack.c.b16 %v1970, %v1969
    %v1986 = vpack.c.b16 %v1972, %v1971
    %v1987 = vpack.c.b16 %v1974, %v1973
    %v1988 = vpack.c.b16 %v1976, %v1975
    %v1989 = vpack.c.b16 %v1978, %v1977
    %v1990 = vpack.c.b16 %v1980, %v1979
    %v1991 = vpack.c.b16 %v1982, %v1981
    %v1992 = vpack.c.b16 %v1984, %v1983
    %2001 = vmatprep.subr.bf16.mxu0 0
    %2002 = vmatpush1.bf16.msra.mxu0 %v1992
    %2003 = vmatprep.subr.bf16.mxu0 0
    %2004 = vmatpush1.bf16.msra.mxu0 %v1991
    %2005 = vmatprep.subr.bf16.mxu0 0
    %2006 = vmatpush1.bf16.msra.mxu0 %v1990
    %2007 = vmatprep.subr.bf16.mxu0 0
    %2008 = vmatpush1.bf16.msra.mxu0 %v1989
    %2009 = vmatprep.subr.bf16.mxu0 0
    %2010 = vmatpush1.bf16.msra.mxu0 %v1988
    %2011 = vmatprep.subr.bf16.mxu0 0
    %2012 = vmatpush1.bf16.msra.mxu0 %v1987
    %2013 = vmatprep.subr.bf16.mxu0 0
    %2014 = vmatpush1.bf16.msra.mxu0 %v1986
    %2015 = vmatprep.subr.bf16.mxu0 0
    %2016 = vmatpush1.bf16.msra.mxu0 %v1985
    %2017 = vmatprep.subr.bf16.mxu0 0
    %2018 = vmatpush2.bf16.msra.mxu0 0
    %2019 = vmatprep.subr.bf16.mxu0 0
    %2020 = vmatpush2.bf16.msra.mxu0 0
    %2021 = vmatprep.subr.bf16.mxu0 0
    %2022 = vmatpush2.bf16.msra.mxu0 0
    %2023 = vmatprep.subr.bf16.mxu0 0
    %2024 = vmatpush2.bf16.msra.mxu0 0
    %2025 = vmatprep.subr.bf16.mxu0 0
    %2026 = vmatpush2.bf16.msra.mxu0 0
    %2027 = vmatprep.subr.bf16.mxu0 0
    %2028 = vmatpush2.bf16.msra.mxu0 0
    %2029 = vmatprep.subr.bf16.mxu0 0
    %2030 = vmatpush2.bf16.msra.mxu0 0
    %2031 = vmatprep.subr.bf16.mxu0 0
    %2032 = vmatpush2.bf16.msra.mxu0 0
    %2033 = vmatprep.mubr.bf16.mxu0 0
    %2034 = vmatmul.mubr.bf16.gmra.mxu0 %v1951
    %v2035 = vpop.f32.mrf.mxu0
    %v2036 = vadd.f32 0.0, %v2035
    %v2037 = vpop.f32.mrf.mxu0
    %v2038 = vpop.f32.mrf.mxu0
    %v2039 = vadd.f32 0.0, %v2038
    %v2040 = vpop.f32.mrf.mxu0
    %2041 = vdwg.mxu0
    %v2042 = vadd.f32 %v1863, %v2036
    %v2043 = vadd.f32 %v1866, %v2039
    %v2046 = vcombine.high %v2042, %v2042
    %v2048 = vunpack.c.l.s4 1966171168
    %v2049 = vunpack.c.0.s8 %v2048
    %v2050 = vlaneseq
    %v2051 = vshrl.u32 %v2050, 7
    %v2052 = vsub.s32 %v2049, %v2051
    %v2053 = vrot.slane %v2042, %v2052
    %v2055 = vunpack.c.l.s4 1966171168
    %v2056 = vunpack.c.0.s8 %v2055
    %v2057 = vlaneseq
    %v2058 = vshrl.u32 %v2057, 7
    %v2059 = vsub.s32 %v2056, %v2058
    %v2060 = vrot.slane %v2046, %v2059
    %v2061 = vcombine.high %v2053, %v2053
    %v2062 = vcombine.high %v2060, %v2060
    %v2064 = vunpack.c.l.s4 1966171168
    %v2065 = vunpack.c.0.s8 %v2064
    %v2066 = vlaneseq
    %v2067 = vshrl.u32 %v2066, 7
    %v2068 = vsub.s32 %v2065, %v2067
    %v2069 = vrot.slane %v2053, %v2068
    %v2071 = vunpack.c.l.s4 1966171168
    %v2072 = vunpack.c.0.s8 %v2071
    %v2073 = vlaneseq
    %v2074 = vshrl.u32 %v2073, 7
    %v2075 = vsub.s32 %v2072, %v2074
    %v2076 = vrot.slane %v2060, %v2075
    %v2078 = vunpack.c.l.s4 1966171168
    %v2079 = vunpack.c.0.s8 %v2078
    %v2080 = vlaneseq
    %v2081 = vshrl.u32 %v2080, 7
    %v2082 = vsub.s32 %v2079, %v2081
    %v2083 = vrot.slane %v2061, %v2082
    %v2085 = vunpack.c.l.s4 1966171168
    %v2086 = vunpack.c.0.s8 %v2085
    %v2087 = vlaneseq
    %v2088 = vshrl.u32 %v2087, 7
    %v2089 = vsub.s32 %v2086, %v2088
    %v2090 = vrot.slane %v2062, %v2089
    %v2091 = vcombine.high %v2069, %v2069
    %v2092 = vcombine.high %v2076, %v2076
    %v2093 = vcombine.high %v2083, %v2083
    %v2094 = vcombine.high %v2090, %v2090
    %v2095 = vcombine.high %v2043, %v2043
    %v2097 = vunpack.c.l.s4 1966171168
    %v2098 = vunpack.c.0.s8 %v2097
    %v2099 = vlaneseq
    %v2100 = vshrl.u32 %v2099, 7
    %v2101 = vsub.s32 %v2098, %v2100
    %v2102 = vrot.slane %v2043, %v2101
    %v2104 = vunpack.c.l.s4 1966171168
    %v2105 = vunpack.c.0.s8 %v2104
    %v2106 = vlaneseq
    %v2107 = vshrl.u32 %v2106, 7
    %v2108 = vsub.s32 %v2105, %v2107
    %v2109 = vrot.slane %v2095, %v2108
    %v2110 = vcombine.high %v2102, %v2102
    %v2111 = vcombine.high %v2109, %v2109
    %v2113 = vunpack.c.l.s4 1966171168
    %v2114 = vunpack.c.0.s8 %v2113
    %v2115 = vlaneseq
    %v2116 = vshrl.u32 %v2115, 7
    %v2117 = vsub.s32 %v2114, %v2116
    %v2118 = vrot.slane %v2102, %v2117
    %v2120 = vunpack.c.l.s4 1966171168
    %v2121 = vunpack.c.0.s8 %v2120
    %v2122 = vlaneseq
    %v2123 = vshrl.u32 %v2122, 7
    %v2124 = vsub.s32 %v2121, %v2123
    %v2125 = vrot.slane %v2109, %v2124
    %v2127 = vunpack.c.l.s4 1966171168
    %v2128 = vunpack.c.0.s8 %v2127
    %v2129 = vlaneseq
    %v2130 = vshrl.u32 %v2129, 7
    %v2131 = vsub.s32 %v2128, %v2130
    %v2132 = vrot.slane %v2110, %v2131
    %v2134 = vunpack.c.l.s4 1966171168
    %v2135 = vunpack.c.0.s8 %v2134
    %v2136 = vlaneseq
    %v2137 = vshrl.u32 %v2136, 7
    %v2138 = vsub.s32 %v2135, %v2137
    %v2139 = vrot.slane %v2111, %v2138
    %v2140 = vcombine.high %v2118, %v2118
    %v2141 = vcombine.high %v2132, %v2132
    %v2157 = vlaneseq
    %v2158 = vshrl.u32 %v2157, 7
    %v2159 = vsub.s32 0, %v2158
    %v2160 = vrot.slane %v1474, %v2159
    %v2161 = vcombine.high %v2160, %v2160
    %v2163 = vunpack.c.l.s4 1966171168
    %v2164 = vunpack.c.0.s8 %v2163
    %v2165 = vlaneseq
    %v2166 = vshrl.u32 %v2165, 7
    %v2167 = vsub.s32 %v2164, %v2166
    %v2168 = vrot.slane %v2160, %v2167
    %v2170 = vunpack.c.l.s4 1966171168
    %v2171 = vunpack.c.0.s8 %v2170
    %v2172 = vlaneseq
    %v2173 = vshrl.u32 %v2172, 7
    %v2174 = vsub.s32 %v2171, %v2173
    %v2175 = vrot.slane %v2161, %v2174
    %v2176 = vcombine.high %v2168, %v2168
    %v2177 = vcombine.high %v2175, %v2175
    %v2179 = vunpack.c.l.s4 1966171168
    %v2180 = vunpack.c.0.s8 %v2179
    %v2181 = vlaneseq
    %v2182 = vshrl.u32 %v2181, 7
    %v2183 = vsub.s32 %v2180, %v2182
    %v2184 = vrot.slane %v2168, %v2183
    %v2186 = vunpack.c.l.s4 1966171168
    %v2187 = vunpack.c.0.s8 %v2186
    %v2188 = vlaneseq
    %v2189 = vshrl.u32 %v2188, 7
    %v2190 = vsub.s32 %v2187, %v2189
    %v2191 = vrot.slane %v2175, %v2190
    %v2193 = vunpack.c.l.s4 1966171168
    %v2194 = vunpack.c.0.s8 %v2193
    %v2195 = vlaneseq
    %v2196 = vshrl.u32 %v2195, 7
    %v2197 = vsub.s32 %v2194, %v2196
    %v2198 = vrot.slane %v2176, %v2197
    %v2200 = vunpack.c.l.s4 1966171168
    %v2201 = vunpack.c.0.s8 %v2200
    %v2202 = vlaneseq
    %v2203 = vshrl.u32 %v2202, 7
    %v2204 = vsub.s32 %v2201, %v2203
    %v2205 = vrot.slane %v2177, %v2204
    %v2206 = vcombine.high %v2184, %v2184
    %v2207 = vcombine.high %v2191, %v2191
    %v2208 = vcombine.high %v2198, %v2198
    %v2216 = vadd.f32 %v2069, %v2184
    %v2217 = vadd.f32 %v2083, %v2198
    %v2218 = vadd.f32 %v2091, %v2206
    %v2219 = vadd.f32 %v2093, %v2208
    %v2220 = vadd.f32 %v2076, %v2191
    %v2221 = vadd.f32 %v2090, %v2205
    %v2222 = vadd.f32 %v2092, %v2207
    %v2223 = vadd.f32 %v2094, %v2184
    %v2224 = vadd.f32 %v2118, %v2198
    %v2225 = vadd.f32 %v2132, %v2206
    %v2226 = vadd.f32 %v2140, %v2208
    %v2227 = vadd.f32 %v2141, %v2191
    %v2228 = vadd.f32 %v2125, %v2205
    %v2229 = vadd.f32 %v2139, %v2207
    %s2230 = scalar_lea.vmem [#allocation7], 576
    %v2231 = vld [vmem:[%s2230] sm:$0xf]
    %v2232 = vld [vmem:[%s2230 + $0x4] sm:$0xf]
    %v2233 = vld [vmem:[%s2230 + $0x8] sm:$0xf]
    %v2234 = vld [vmem:[%s2230 + $0xc] sm:$0xf]
    %v2235 = vld [vmem:[%s2230 + $0x10] sm:$0xf]
    %v2236 = vld [vmem:[%s2230 + $0x14] sm:$0xf]
    %v2237 = vld [vmem:[%s2230 + $0x18] sm:$0xf]
    %v2238 = vld [vmem:[%s2230 + $0x1c] sm:$0xf]
    %v2239 = vld [vmem:[%s2230 + $0x20] sm:$0xf]
    %v2240 = vld [vmem:[%s2230 + $0x24] sm:$0xf]
    %v2241 = vld [vmem:[%s2230 + $0x28] sm:$0xf]
    %v2242 = vld [vmem:[%s2230 + $0x2c] sm:$0xf]
    %v2243 = vld [vmem:[%s2230 + $0x30] sm:$0xf]
    %v2244 = vld [vmem:[%s2230 + $0x34] sm:$0xf]
    %v2245 = vld [vmem:[%s2230 + $0x38] sm:$0xf]
    %v2246 = vld [vmem:[%s2230 + $0x3c] sm:$0xf]
    %v2247 = vld [vmem:[%s2230 + $0x40] sm:$0xf]
    %v2248 = vld [vmem:[%s2230 + $0x44] sm:$0xf]
    %v2249 = vld [vmem:[%s2230 + $0x48] sm:$0xf]
    %v2250 = vld [vmem:[%s2230 + $0x4c] sm:$0xf]
    %v2251 = vld [vmem:[%s2230 + $0x50] sm:$0xf]
    %v2252 = vld [vmem:[%s2230 + $0x54] sm:$0xf]
    %v2253 = vld [vmem:[%s2230 + $0x58] sm:$0xf]
    %v2254 = vld [vmem:[%s2230 + $0x5c] sm:$0xf]
    %v2255 = vld [vmem:[%s2230 + $0x60] sm:$0xf]
    %v2256 = vld [vmem:[%s2230 + $0x64] sm:$0xf]
    %v2257 = vld [vmem:[%s2230 + $0x68] sm:$0xf]
    %v2258 = vld [vmem:[%s2230 + $0x6c] sm:$0xf]
    %v2259 = vld [vmem:[%s2230 + $0x70] sm:$0xf]
    %v2260 = vld [vmem:[%s2230 + $0x74] sm:$0xf]
    %v2261 = vld [vmem:[%s2230 + $0x78] sm:$0xf]
    %v2262 = vld [vmem:[%s2230 + $0x7c] sm:$0xf]
    %v2263 = vld [vmem:[%s2230 + $0x80] sm:$0xf]
    %v2264 = vld [vmem:[%s2230 + $0x84] sm:$0xf]
    %v2265 = vld [vmem:[%s2230 + $0x88] sm:$0xf]
    %v2266 = vld [vmem:[%s2230 + $0x8c] sm:$0xf]
    %v2267 = vld [vmem:[%s2230 + $0x90] sm:$0xf]
    %v2268 = vld [vmem:[%s2230 + $0x94] sm:$0xf]
    %v2269 = vld [vmem:[%s2230 + $0x98] sm:$0xf]
    %v2270 = vld [vmem:[%s2230 + $0x9c] sm:$0xf]
    %v2271 = vld [vmem:[%s2230 + $0xa0] sm:$0xf]
    %v2272 = vld [vmem:[%s2230 + $0xa4] sm:$0xf]
    %v2273 = vld [vmem:[%s2230 + $0xa8] sm:$0xf]
    %v2274 = vld [vmem:[%s2230 + $0xac] sm:$0xf]
    %v2275 = vld [vmem:[%s2230 + $0xb0] sm:$0xf]
    %v2276 = vld [vmem:[%s2230 + $0xb4] sm:$0xf]
    %v2277 = vld [vmem:[%s2230 + $0xb8] sm:$0xf]
    %v2278 = vld [vmem:[%s2230 + $0xbc] sm:$0xf]
    %s2279 = scalar_lea.vmem %s4, 3
    %v2280 = vld [vmem:[%s2279] sm:$0x1]
    %v2281 = vmax.f32 %v2216, 0.0
    %v2282 = vmax.f32 %v2217, 0.0
    %v2283 = vmax.f32 %v2218, 0.0
    %v2284 = vmax.f32 %v2219, 0.0
    %v2285 = vmax.f32 %v2220, 0.0
    %v2286 = vmax.f32 %v2221, 0.0
    %v2287 = vmax.f32 %v2222, 0.0
    %v2288 = vmax.f32 %v2223, 0.0
    %v2289 = vmax.f32 %v2224, 0.0
    %v2290 = vmax.f32 %v2225, 0.0
    %v2291 = vmax.f32 %v2226, 0.0
    %v2292 = vmax.f32 %v2227, 0.0
    %v2293 = vmax.f32 %v2228, 0.0
    %v2294 = vmax.f32 %v2229, 0.0
    %v2309 = vcombine.low %v2281, %v2282
    %v2310 = vcombine.low %v2283, %v2284
    %v2311 = vcombine.low %v2285, %v2286
    %v2313 = vunpack.c.l.s4 1966171168
    %v2314 = vunpack.c.0.s8 %v2313
    %v2315 = vlaneseq
    %v2316 = vshrl.u32 %v2315, 7
    %v2317 = vsub.s32 %v2314, %v2316
    %v2318 = vrot.slane %v2309, %v2317
    %v2320 = vunpack.c.l.s4 1966171168
    %v2321 = vunpack.c.0.s8 %v2320
    %v2322 = vlaneseq
    %v2323 = vshrl.u32 %v2322, 7
    %v2324 = vsub.s32 %v2321, %v2323
    %v2325 = vrot.slane %v2310, %v2324
    %v2327 = vunpack.c.l.s4 1966171168
    %v2328 = vunpack.c.0.s8 %v2327
    %v2329 = vlaneseq
    %v2330 = vshrl.u32 %v2329, 7
    %v2331 = vsub.s32 %v2328, %v2330
    %v2332 = vrot.slane %v2311, %v2331
    %v2334 = vunpack.c.l.s4 1966171168
    %v2335 = vunpack.c.0.s8 %v2334
    %v2336 = vlaneseq
    %v2337 = vshrl.u32 %v2336, 7
    %v2338 = vsub.s32 %v2335, %v2337
    %v2339 = vrot.slane %v2287, %v2338
    %v2340 = vcombine.low %v2318, %v2325
    %v2341 = vcombine.low %v2332, %v2339
    %v2343 = vunpack.c.l.s4 1966171168
    %v2344 = vunpack.c.0.s8 %v2343
    %v2345 = vlaneseq
    %v2346 = vshrl.u32 %v2345, 7
    %v2347 = vsub.s32 %v2344, %v2346
    %v2348 = vrot.slane %v2340, %v2347
    %v2350 = vunpack.c.l.s4 1966171168
    %v2351 = vunpack.c.0.s8 %v2350
    %v2352 = vlaneseq
    %v2353 = vshrl.u32 %v2352, 7
    %v2354 = vsub.s32 %v2351, %v2353
    %v2355 = vrot.slane %v2341, %v2354
    %v2356 = vcombine.low %v2348, %v2355
    %v2357 = vcombine.low %v2288, %v2289
    %v2358 = vcombine.low %v2290, %v2291
    %v2359 = vcombine.low %v2292, %v2293
    %v2361 = vunpack.c.l.s4 1966171168
    %v2362 = vunpack.c.0.s8 %v2361
    %v2363 = vlaneseq
    %v2364 = vshrl.u32 %v2363, 7
    %v2365 = vsub.s32 %v2362, %v2364
    %v2366 = vrot.slane %v2357, %v2365
    %v2368 = vunpack.c.l.s4 1966171168
    %v2369 = vunpack.c.0.s8 %v2368
    %v2370 = vlaneseq
    %v2371 = vshrl.u32 %v2370, 7
    %v2372 = vsub.s32 %v2369, %v2371
    %v2373 = vrot.slane %v2358, %v2372
    %v2375 = vunpack.c.l.s4 1966171168
    %v2376 = vunpack.c.0.s8 %v2375
    %v2377 = vlaneseq
    %v2378 = vshrl.u32 %v2377, 7
    %v2379 = vsub.s32 %v2376, %v2378
    %v2380 = vrot.slane %v2359, %v2379
    %v2382 = vunpack.c.l.s4 1966171168
    %v2383 = vunpack.c.0.s8 %v2382
    %v2384 = vlaneseq
    %v2385 = vshrl.u32 %v2384, 7
    %v2386 = vsub.s32 %v2383, %v2385
    %v2387 = vrot.slane %v2294, %v2386
    %v2388 = vcombine.low %v2366, %v2373
    %v2389 = vcombine.low %v2380, %v2387
    %v2391 = vunpack.c.l.s4 1966171168
    %v2392 = vunpack.c.0.s8 %v2391
    %v2393 = vlaneseq
    %v2394 = vshrl.u32 %v2393, 7
    %v2395 = vsub.s32 %v2392, %v2394
    %v2396 = vrot.slane %v2388, %v2395
    %v2398 = vunpack.c.l.s4 1966171168
    %v2399 = vunpack.c.0.s8 %v2398
    %v2400 = vlaneseq
    %v2401 = vshrl.u32 %v2400, 7
    %v2402 = vsub.s32 %v2399, %v2401
    %v2403 = vrot.slane %v2389, %v2402
    %v2404 = vcombine.low %v2396, %v2403
    %v2407 = vpack.c.bf16 %v2356, %v2356
    %v2408 = vpack.c.bf16 %v2404, %v2404
    %v2410 = vshrl.u32 %v2407, 16
    %v2412 = vrot.slane %v2410, 7
    %v2413 = vshll.u32 %v2407, 16
    %v2415 = vor.u32 %v2412, %v2413
    %v2417 = vshrl.u32 %v2408, 16
    %v2419 = vrot.slane %v2417, 7
    %v2420 = vshll.u32 %v2408, 16
    %v2422 = vor.u32 %v2419, %v2420
    %v2425 = vsel %vm166, 0, %v2415
    %v2426 = vsel %vm166, 0, %v2422
    %v2428 = vsel %vm1507, %v2425, 0
    %v2430 = vsel %vm1507, %v2426, 0
    %v2434 = vunpack.c.l.s4 1966171168
    %v2435 = vunpack.c.0.s8 %v2434
    %v2436 = vlaneseq
    %v2437 = vshrl.u32 %v2436, 7
    %v2438 = vsub.s32 %v2435, %v2437
    %v2439 = vrot.slane %v2428, %v2438
    %v2440 = vcombine.high %v2439, %v2439
    %v2442 = vunpack.c.l.s4 1966171168
    %v2443 = vunpack.c.0.s8 %v2442
    %v2444 = vlaneseq
    %v2445 = vshrl.u32 %v2444, 7
    %v2446 = vsub.s32 %v2443, %v2445
    %v2447 = vrot.slane %v2439, %v2446
    %v2449 = vunpack.c.l.s4 1966171168
    %v2450 = vunpack.c.0.s8 %v2449
    %v2451 = vlaneseq
    %v2452 = vshrl.u32 %v2451, 7
    %v2453 = vsub.s32 %v2450, %v2452
    %v2454 = vrot.slane %v2440, %v2453
    %v2455 = vcombine.high %v2447, %v2447
    %v2456 = vcombine.high %v2454, %v2454
    %v2458 = vunpack.c.l.s4 1966171168
    %v2459 = vunpack.c.0.s8 %v2458
    %v2460 = vlaneseq
    %v2461 = vshrl.u32 %v2460, 7
    %v2462 = vsub.s32 %v2459, %v2461
    %v2463 = vrot.slane %v2430, %v2462
    %v2464 = vcombine.high %v2463, %v2463
    %v2466 = vunpack.c.l.s4 1966171168
    %v2467 = vunpack.c.0.s8 %v2466
    %v2468 = vlaneseq
    %v2469 = vshrl.u32 %v2468, 7
    %v2470 = vsub.s32 %v2467, %v2469
    %v2471 = vrot.slane %v2463, %v2470
    %v2473 = vunpack.c.l.s4 1966171168
    %v2474 = vunpack.c.0.s8 %v2473
    %v2475 = vlaneseq
    %v2476 = vshrl.u32 %v2475, 7
    %v2477 = vsub.s32 %v2474, %v2476
    %v2478 = vrot.slane %v2464, %v2477
    %v2479 = vcombine.high %v2471, %v2471
    %v2480 = vcombine.high %v2478, %v2478
    %v2481 = vunpack.i.l.s16 %v2447
    %v2482 = vunpack.i.h.s16 %v2447
    %v2483 = vunpack.i.l.s16 %v2454
    %v2484 = vunpack.i.h.s16 %v2454
    %v2485 = vunpack.i.l.s16 %v2455
    %v2486 = vunpack.i.h.s16 %v2455
    %v2487 = vunpack.i.l.s16 %v2456
    %v2488 = vunpack.i.l.s16 %v2471
    %v2489 = vunpack.i.h.s16 %v2471
    %v2490 = vunpack.i.l.s16 %v2478
    %v2491 = vunpack.i.h.s16 %v2478
    %v2492 = vunpack.i.l.s16 %v2479
    %v2493 = vunpack.i.h.s16 %v2479
    %v2494 = vunpack.i.l.s16 %v2480
    %v2495 = vunpack.i.h.s16 %v2456
    %v2496 = vunpack.i.h.s16 %v2480
    %v2497 = vpack.i.b16 %v2483, %v2482
    %v2498 = vpack.i.b16 %v2485, %v2484
    %v2499 = vpack.i.b16 %v2487, %v2486
    %v2500 = vpack.i.b16 %v2489, %v2495
    %v2501 = vpack.i.b16 %v2491, %v2490
    %v2502 = vpack.i.b16 %v2493, %v2492
    %v2503 = vpack.i.b16 %v2496, %v2494
    %v2504 = vcombine.low %v2497, %v2498
    %v2505 = vcombine.low %v2499, %v2500
    %v2506 = vcombine.low %v2501, %v2502
    %v2508 = vunpack.c.l.s4 1966171168
    %v2509 = vunpack.c.0.s8 %v2508
    %v2510 = vlaneseq
    %v2511 = vshrl.u32 %v2510, 7
    %v2512 = vsub.s32 %v2509, %v2511
    %v2513 = vrot.slane %v2504, %v2512
    %v2515 = vunpack.c.l.s4 1966171168
    %v2516 = vunpack.c.0.s8 %v2515
    %v2517 = vlaneseq
    %v2518 = vshrl.u32 %v2517, 7
    %v2519 = vsub.s32 %v2516, %v2518
    %v2520 = vrot.slane %v2505, %v2519
    %v2522 = vunpack.c.l.s4 1966171168
    %v2523 = vunpack.c.0.s8 %v2522
    %v2524 = vlaneseq
    %v2525 = vshrl.u32 %v2524, 7
    %v2526 = vsub.s32 %v2523, %v2525
    %v2527 = vrot.slane %v2506, %v2526
    %v2529 = vunpack.c.l.s4 1966171168
    %v2530 = vunpack.c.0.s8 %v2529
    %v2531 = vlaneseq
    %v2532 = vshrl.u32 %v2531, 7
    %v2533 = vsub.s32 %v2530, %v2532
    %v2534 = vrot.slane %v2503, %v2533
    %v2535 = vcombine.low %v2513, %v2520
    %v2536 = vcombine.low %v2527, %v2534
    %v2538 = vunpack.c.l.s4 1966171168
    %v2539 = vunpack.c.0.s8 %v2538
    %v2540 = vlaneseq
    %v2541 = vshrl.u32 %v2540, 7
    %v2542 = vsub.s32 %v2539, %v2541
    %v2543 = vrot.slane %v2535, %v2542
    %v2545 = vunpack.c.l.s4 1966171168
    %v2546 = vunpack.c.0.s8 %v2545
    %v2547 = vlaneseq
    %v2548 = vshrl.u32 %v2547, 7
    %v2549 = vsub.s32 %v2546, %v2548
    %v2550 = vrot.slane %v2536, %v2549
    %v2551 = vcombine.low %v2543, %v2550
    %v2569 = vunpack.c.l.b16 %v2247
    %v2570 = vunpack.c.l.b16 %v2248
    %v2571 = vunpack.c.l.b16 %v2249
    %v2572 = vunpack.c.l.b16 %v2250
    %v2573 = vunpack.c.l.b16 %v2251
    %v2574 = vunpack.c.l.b16 %v2252
    %v2575 = vunpack.c.l.b16 %v2253
    %v2576 = vunpack.c.l.b16 %v2254
    %v2577 = vunpack.c.l.b16 %v2255
    %v2578 = vunpack.c.l.b16 %v2256
    %v2579 = vunpack.c.l.b16 %v2257
    %v2580 = vunpack.c.l.b16 %v2258
    %v2581 = vunpack.c.l.b16 %v2259
    %v2582 = vunpack.c.l.b16 %v2260
    %v2583 = vunpack.c.l.b16 %v2261
    %v2584 = vunpack.c.l.b16 %v2262
    %v2585 = vpack.c.b16 %v2570, %v2569
    %v2586 = vpack.c.b16 %v2572, %v2571
    %v2587 = vpack.c.b16 %v2574, %v2573
    %v2588 = vpack.c.b16 %v2576, %v2575
    %v2589 = vpack.c.b16 %v2578, %v2577
    %v2590 = vpack.c.b16 %v2580, %v2579
    %v2591 = vpack.c.b16 %v2582, %v2581
    %v2592 = vpack.c.b16 %v2584, %v2583
    %2601 = vmatprep.subr.bf16.mxu0 0
    %2602 = vmatpush1.bf16.msra.mxu0 %v2592
    %2603 = vmatprep.subr.bf16.mxu0 0
    %2604 = vmatpush1.bf16.msra.mxu0 %v2591
    %2605 = vmatprep.subr.bf16.mxu0 0
    %2606 = vmatpush1.bf16.msra.mxu0 %v2590
    %2607 = vmatprep.subr.bf16.mxu0 0
    %2608 = vmatpush1.bf16.msra.mxu0 %v2589
    %2609 = vmatprep.subr.bf16.mxu0 0
    %2610 = vmatpush1.bf16.msra.mxu0 %v2588
    %2611 = vmatprep.subr.bf16.mxu0 0
    %2612 = vmatpush1.bf16.msra.mxu0 %v2587
    %2613 = vmatprep.subr.bf16.mxu0 0
    %2614 = vmatpush1.bf16.msra.mxu0 %v2586
    %2615 = vmatprep.subr.bf16.mxu0 0
    %2616 = vmatpush1.bf16.msra.mxu0 %v2585
    %2617 = vmatprep.subr.bf16.mxu0 0
    %2618 = vmatpush2.bf16.msra.mxu0 0
    %2619 = vmatprep.subr.bf16.mxu0 0
    %2620 = vmatpush2.bf16.msra.mxu0 0
    %2621 = vmatprep.subr.bf16.mxu0 0
    %2622 = vmatpush2.bf16.msra.mxu0 0
    %2623 = vmatprep.subr.bf16.mxu0 0
    %2624 = vmatpush2.bf16.msra.mxu0 0
    %2625 = vmatprep.subr.bf16.mxu0 0
    %2626 = vmatpush2.bf16.msra.mxu0 0
    %2627 = vmatprep.subr.bf16.mxu0 0
    %2628 = vmatpush2.bf16.msra.mxu0 0
    %2629 = vmatprep.subr.bf16.mxu0 0
    %2630 = vmatpush2.bf16.msra.mxu0 0
    %2631 = vmatprep.subr.bf16.mxu0 0
    %2632 = vmatpush2.bf16.msra.mxu0 0
    %2633 = vmatprep.mubr.bf16.mxu0 0
    %2634 = vmatmul.mubr.bf16.gmra.mxu0 %v2551
    %v2635 = vpop.f32.mrf.mxu0
    %v2636 = vadd.f32 0.0, %v2635
    %v2637 = vpop.f32.mrf.mxu0
    %v2638 = vpop.f32.mrf.mxu0
    %v2639 = vadd.f32 0.0, %v2638
    %v2640 = vpop.f32.mrf.mxu0
    %2641 = vdwg.mxu0
    %v2642 = vpack.i.b16 %v2482, %v2481
    %v2643 = vpack.i.b16 %v2484, %v2483
    %v2644 = vpack.i.b16 %v2486, %v2485
    %v2645 = vpack.i.b16 %v2488, %v2487
    %v2646 = vpack.i.b16 %v2490, %v2489
    %v2647 = vpack.i.b16 %v2492, %v2491
    %v2648 = vpack.i.b16 %v2494, %v2493
    %v2649 = vcombine.low %v2642, %v2643
    %v2650 = vcombine.low %v2644, %v2645
    %v2651 = vcombine.low %v2646, %v2647
    %v2653 = vunpack.c.l.s4 1966171168
    %v2654 = vunpack.c.0.s8 %v2653
    %v2655 = vlaneseq
    %v2656 = vshrl.u32 %v2655, 7
    %v2657 = vsub.s32 %v2654, %v2656
    %v2658 = vrot.slane %v2649, %v2657
    %v2660 = vunpack.c.l.s4 1966171168
    %v2661 = vunpack.c.0.s8 %v2660
    %v2662 = vlaneseq
    %v2663 = vshrl.u32 %v2662, 7
    %v2664 = vsub.s32 %v2661, %v2663
    %v2665 = vrot.slane %v2650, %v2664
    %v2667 = vunpack.c.l.s4 1966171168
    %v2668 = vunpack.c.0.s8 %v2667
    %v2669 = vlaneseq
    %v2670 = vshrl.u32 %v2669, 7
    %v2671 = vsub.s32 %v2668, %v2670
    %v2672 = vrot.slane %v2651, %v2671
    %v2674 = vunpack.c.l.s4 1966171168
    %v2675 = vunpack.c.0.s8 %v2674
    %v2676 = vlaneseq
    %v2677 = vshrl.u32 %v2676, 7
    %v2678 = vsub.s32 %v2675, %v2677
    %v2679 = vrot.slane %v2648, %v2678
    %v2680 = vcombine.low %v2658, %v2665
    %v2681 = vcombine.low %v2672, %v2679
    %v2683 = vunpack.c.l.s4 1966171168
    %v2684 = vunpack.c.0.s8 %v2683
    %v2685 = vlaneseq
    %v2686 = vshrl.u32 %v2685, 7
    %v2687 = vsub.s32 %v2684, %v2686
    %v2688 = vrot.slane %v2680, %v2687
    %v2690 = vunpack.c.l.s4 1966171168
    %v2691 = vunpack.c.0.s8 %v2690
    %v2692 = vlaneseq
    %v2693 = vshrl.u32 %v2692, 7
    %v2694 = vsub.s32 %v2691, %v2693
    %v2695 = vrot.slane %v2681, %v2694
    %v2696 = vcombine.low %v2688, %v2695
    %v2714 = vunpack.c.l.b16 %v2231
    %v2715 = vunpack.c.l.b16 %v2232
    %v2716 = vunpack.c.l.b16 %v2233
    %v2717 = vunpack.c.l.b16 %v2234
    %v2718 = vunpack.c.l.b16 %v2235
    %v2719 = vunpack.c.l.b16 %v2236
    %v2720 = vunpack.c.l.b16 %v2237
    %v2721 = vunpack.c.l.b16 %v2238
    %v2722 = vunpack.c.l.b16 %v2239
    %v2723 = vunpack.c.l.b16 %v2240
    %v2724 = vunpack.c.l.b16 %v2241
    %v2725 = vunpack.c.l.b16 %v2242
    %v2726 = vunpack.c.l.b16 %v2243
    %v2727 = vunpack.c.l.b16 %v2244
    %v2728 = vunpack.c.l.b16 %v2245
    %v2729 = vunpack.c.l.b16 %v2246
    %v2730 = vpack.c.b16 %v2715, %v2714
    %v2731 = vpack.c.b16 %v2717, %v2716
    %v2732 = vpack.c.b16 %v2719, %v2718
    %v2733 = vpack.c.b16 %v2721, %v2720
    %v2734 = vpack.c.b16 %v2723, %v2722
    %v2735 = vpack.c.b16 %v2725, %v2724
    %v2736 = vpack.c.b16 %v2727, %v2726
    %v2737 = vpack.c.b16 %v2729, %v2728
    %2746 = vmatprep.subr.bf16.mxu0 0
    %2747 = vmatpush1.bf16.msra.mxu0 %v2737
    %2748 = vmatprep.subr.bf16.mxu0 0
    %2749 = vmatpush1.bf16.msra.mxu0 %v2736
    %2750 = vmatprep.subr.bf16.mxu0 0
    %2751 = vmatpush1.bf16.msra.mxu0 %v2735
    %2752 = vmatprep.subr.bf16.mxu0 0
    %2753 = vmatpush1.bf16.msra.mxu0 %v2734
    %2754 = vmatprep.subr.bf16.mxu0 0
    %2755 = vmatpush1.bf16.msra.mxu0 %v2733
    %2756 = vmatprep.subr.bf16.mxu0 0
    %2757 = vmatpush1.bf16.msra.mxu0 %v2732
    %2758 = vmatprep.subr.bf16.mxu0 0
    %2759 = vmatpush1.bf16.msra.mxu0 %v2731
    %2760 = vmatprep.subr.bf16.mxu0 0
    %2761 = vmatpush1.bf16.msra.mxu0 %v2730
    %2762 = vmatprep.subr.bf16.mxu0 0
    %2763 = vmatpush2.bf16.msra.mxu0 0
    %2764 = vmatprep.subr.bf16.mxu0 0
    %2765 = vmatpush2.bf16.msra.mxu0 0
    %2766 = vmatprep.subr.bf16.mxu0 0
    %2767 = vmatpush2.bf16.msra.mxu0 0
    %2768 = vmatprep.subr.bf16.mxu0 0
    %2769 = vmatpush2.bf16.msra.mxu0 0
    %2770 = vmatprep.subr.bf16.mxu0 0
    %2771 = vmatpush2.bf16.msra.mxu0 0
    %2772 = vmatprep.subr.bf16.mxu0 0
    %2773 = vmatpush2.bf16.msra.mxu0 0
    %2774 = vmatprep.subr.bf16.mxu0 0
    %2775 = vmatpush2.bf16.msra.mxu0 0
    %2776 = vmatprep.subr.bf16.mxu0 0
    %2777 = vmatpush2.bf16.msra.mxu0 0
    %2778 = vmatprep.mubr.bf16.mxu0 0
    %2779 = vmatmul.mubr.bf16.gmra.mxu0 %v2696
    %v2780 = vpop.f32.mrf.mxu0
    %v2781 = vadd.f32 %v2636, %v2780
    %v2782 = vpop.f32.mrf.mxu0
    %v2783 = vpop.f32.mrf.mxu0
    %v2784 = vadd.f32 %v2639, %v2783
    %v2785 = vpop.f32.mrf.mxu0
    %2786 = vdwg.mxu0
    %v2787 = vcombine.high %v2428, %v2428
    %v2789 = vunpack.c.l.s4 1966171168
    %v2790 = vunpack.c.0.s8 %v2789
    %v2791 = vlaneseq
    %v2792 = vshrl.u32 %v2791, 7
    %v2793 = vsub.s32 %v2790, %v2792
    %v2794 = vrot.slane %v2787, %v2793
    %v2796 = vunpack.c.l.s4 1966171168
    %v2797 = vunpack.c.0.s8 %v2796
    %v2798 = vlaneseq
    %v2799 = vshrl.u32 %v2798, 7
    %v2800 = vsub.s32 %v2797, %v2799
    %v2801 = vrot.slane %v2794, %v2800
    %v2802 = vcombine.high %v2430, %v2430
    %v2804 = vunpack.c.l.s4 1966171168
    %v2805 = vunpack.c.0.s8 %v2804
    %v2806 = vlaneseq
    %v2807 = vshrl.u32 %v2806, 7
    %v2808 = vsub.s32 %v2805, %v2807
    %v2809 = vrot.slane %v2802, %v2808
    %v2811 = vunpack.c.l.s4 1966171168
    %v2812 = vunpack.c.0.s8 %v2811
    %v2813 = vlaneseq
    %v2814 = vshrl.u32 %v2813, 7
    %v2815 = vsub.s32 %v2812, %v2814
    %v2816 = vrot.slane %v2809, %v2815
    %v2817 = vunpack.i.l.s16 %v2801
    %v2818 = vunpack.i.l.s16 %v2816
    %v2819 = vpack.i.b16 %v2495, %v2487
    %v2820 = vpack.i.b16 %v2490, %v2817
    %v2821 = vpack.i.b16 %v2818, %v2496
    %v2822 = vcombine.low %v2643, %v2644
    %v2823 = vcombine.low %v2819, %v2820
    %v2824 = vcombine.low %v2647, %v2648
    %v2826 = vunpack.c.l.s4 1966171168
    %v2827 = vunpack.c.0.s8 %v2826
    %v2828 = vlaneseq
    %v2829 = vshrl.u32 %v2828, 7
    %v2830 = vsub.s32 %v2827, %v2829
    %v2831 = vrot.slane %v2822, %v2830
    %v2833 = vunpack.c.l.s4 1966171168
    %v2834 = vunpack.c.0.s8 %v2833
    %v2835 = vlaneseq
    %v2836 = vshrl.u32 %v2835, 7
    %v2837 = vsub.s32 %v2834, %v2836
    %v2838 = vrot.slane %v2823, %v2837
    %v2840 = vunpack.c.l.s4 1966171168
    %v2841 = vunpack.c.0.s8 %v2840
    %v2842 = vlaneseq
    %v2843 = vshrl.u32 %v2842, 7
    %v2844 = vsub.s32 %v2841, %v2843
    %v2845 = vrot.slane %v2824, %v2844
    %v2847 = vunpack.c.l.s4 1966171168
    %v2848 = vunpack.c.0.s8 %v2847
    %v2849 = vlaneseq
    %v2850 = vshrl.u32 %v2849, 7
    %v2851 = vsub.s32 %v2848, %v2850
    %v2852 = vrot.slane %v2821, %v2851
    %v2853 = vcombine.low %v2831, %v2838
    %v2854 = vcombine.low %v2845, %v2852
    %v2856 = vunpack.c.l.s4 1966171168
    %v2857 = vunpack.c.0.s8 %v2856
    %v2858 = vlaneseq
    %v2859 = vshrl.u32 %v2858, 7
    %v2860 = vsub.s32 %v2857, %v2859
    %v2861 = vrot.slane %v2853, %v2860
    %v2863 = vunpack.c.l.s4 1966171168
    %v2864 = vunpack.c.0.s8 %v2863
    %v2865 = vlaneseq
    %v2866 = vshrl.u32 %v2865, 7
    %v2867 = vsub.s32 %v2864, %v2866
    %v2868 = vrot.slane %v2854, %v2867
    %v2869 = vcombine.low %v2861, %v2868
    %v2887 = vunpack.c.l.b16 %v2263
    %v2888 = vunpack.c.l.b16 %v2264
    %v2889 = vunpack.c.l.b16 %v2265
    %v2890 = vunpack.c.l.b16 %v2266
    %v2891 = vunpack.c.l.b16 %v2267
    %v2892 = vunpack.c.l.b16 %v2268
    %v2893 = vunpack.c.l.b16 %v2269
    %v2894 = vunpack.c.l.b16 %v2270
    %v2895 = vunpack.c.l.b16 %v2271
    %v2896 = vunpack.c.l.b16 %v2272
    %v2897 = vunpack.c.l.b16 %v2273
    %v2898 = vunpack.c.l.b16 %v2274
    %v2899 = vunpack.c.l.b16 %v2275
    %v2900 = vunpack.c.l.b16 %v2276
    %v2901 = vunpack.c.l.b16 %v2277
    %v2902 = vunpack.c.l.b16 %v2278
    %v2903 = vpack.c.b16 %v2888, %v2887
    %v2904 = vpack.c.b16 %v2890, %v2889
    %v2905 = vpack.c.b16 %v2892, %v2891
    %v2906 = vpack.c.b16 %v2894, %v2893
    %v2907 = vpack.c.b16 %v2896, %v2895
    %v2908 = vpack.c.b16 %v2898, %v2897
    %v2909 = vpack.c.b16 %v2900, %v2899
    %v2910 = vpack.c.b16 %v2902, %v2901
    %2919 = vmatprep.subr.bf16.mxu0 0
    %2920 = vmatpush1.bf16.msra.mxu0 %v2910
    %2921 = vmatprep.subr.bf16.mxu0 0
    %2922 = vmatpush1.bf16.msra.mxu0 %v2909
    %2923 = vmatprep.subr.bf16.mxu0 0
    %2924 = vmatpush1.bf16.msra.mxu0 %v2908
    %2925 = vmatprep.subr.bf16.mxu0 0
    %2926 = vmatpush1.bf16.msra.mxu0 %v2907
    %2927 = vmatprep.subr.bf16.mxu0 0
    %2928 = vmatpush1.bf16.msra.mxu0 %v2906
    %2929 = vmatprep.subr.bf16.mxu0 0
    %2930 = vmatpush1.bf16.msra.mxu0 %v2905
    %2931 = vmatprep.subr.bf16.mxu0 0
    %2932 = vmatpush1.bf16.msra.mxu0 %v2904
    %2933 = vmatprep.subr.bf16.mxu0 0
    %2934 = vmatpush1.bf16.msra.mxu0 %v2903
    %2935 = vmatprep.subr.bf16.mxu0 0
    %2936 = vmatpush2.bf16.msra.mxu0 0
    %2937 = vmatprep.subr.bf16.mxu0 0
    %2938 = vmatpush2.bf16.msra.mxu0 0
    %2939 = vmatprep.subr.bf16.mxu0 0
    %2940 = vmatpush2.bf16.msra.mxu0 0
    %2941 = vmatprep.subr.bf16.mxu0 0
    %2942 = vmatpush2.bf16.msra.mxu0 0
    %2943 = vmatprep.subr.bf16.mxu0 0
    %2944 = vmatpush2.bf16.msra.mxu0 0
    %2945 = vmatprep.subr.bf16.mxu0 0
    %2946 = vmatpush2.bf16.msra.mxu0 0
    %2947 = vmatprep.subr.bf16.mxu0 0
    %2948 = vmatpush2.bf16.msra.mxu0 0
    %2949 = vmatprep.subr.bf16.mxu0 0
    %2950 = vmatpush2.bf16.msra.mxu0 0
    %2951 = vmatprep.mubr.bf16.mxu0 0
    %2952 = vmatmul.mubr.bf16.gmra.mxu0 %v2869
    %v2953 = vpop.f32.mrf.mxu0
    %v2954 = vadd.f32 0.0, %v2953
    %v2955 = vpop.f32.mrf.mxu0
    %v2956 = vpop.f32.mrf.mxu0
    %v2957 = vadd.f32 0.0, %v2956
    %v2958 = vpop.f32.mrf.mxu0
    %2959 = vdwg.mxu0
    %v2960 = vadd.f32 %v2781, %v2954
    %v2961 = vadd.f32 %v2784, %v2957
    %v2964 = vcombine.high %v2960, %v2960
    %v2966 = vunpack.c.l.s4 1966171168
    %v2967 = vunpack.c.0.s8 %v2966
    %v2968 = vlaneseq
    %v2969 = vshrl.u32 %v2968, 7
    %v2970 = vsub.s32 %v2967, %v2969
    %v2971 = vrot.slane %v2960, %v2970
    %v2973 = vunpack.c.l.s4 1966171168
    %v2974 = vunpack.c.0.s8 %v2973
    %v2975 = vlaneseq
    %v2976 = vshrl.u32 %v2975, 7
    %v2977 = vsub.s32 %v2974, %v2976
    %v2978 = vrot.slane %v2964, %v2977
    %v2979 = vcombine.high %v2971, %v2971
    %v2980 = vcombine.high %v2978, %v2978
    %v2982 = vunpack.c.l.s4 1966171168
    %v2983 = vunpack.c.0.s8 %v2982
    %v2984 = vlaneseq
    %v2985 = vshrl.u32 %v2984, 7
    %v2986 = vsub.s32 %v2983, %v2985
    %v2987 = vrot.slane %v2971, %v2986
    %v2989 = vunpack.c.l.s4 1966171168
    %v2990 = vunpack.c.0.s8 %v2989
    %v2991 = vlaneseq
    %v2992 = vshrl.u32 %v2991, 7
    %v2993 = vsub.s32 %v2990, %v2992
    %v2994 = vrot.slane %v2978, %v2993
    %v2996 = vunpack.c.l.s4 1966171168
    %v2997 = vunpack.c.0.s8 %v2996
    %v2998 = vlaneseq
    %v2999 = vshrl.u32 %v2998, 7
    %v3000 = vsub.s32 %v2997, %v2999
    %v3001 = vrot.slane %v2979, %v3000
    %v3003 = vunpack.c.l.s4 1966171168
    %v3004 = vunpack.c.0.s8 %v3003
    %v3005 = vlaneseq
    %v3006 = vshrl.u32 %v3005, 7
    %v3007 = vsub.s32 %v3004, %v3006
    %v3008 = vrot.slane %v2980, %v3007
    %v3009 = vcombine.high %v2987, %v2987
    %v3010 = vcombine.high %v2994, %v2994
    %v3011 = vcombine.high %v3001, %v3001
    %v3012 = vcombine.high %v3008, %v3008
    %v3013 = vcombine.high %v2961, %v2961
    %v3015 = vunpack.c.l.s4 1966171168
    %v3016 = vunpack.c.0.s8 %v3015
    %v3017 = vlaneseq
    %v3018 = vshrl.u32 %v3017, 7
    %v3019 = vsub.s32 %v3016, %v3018
    %v3020 = vrot.slane %v2961, %v3019
    %v3022 = vunpack.c.l.s4 1966171168
    %v3023 = vunpack.c.0.s8 %v3022
    %v3024 = vlaneseq
    %v3025 = vshrl.u32 %v3024, 7
    %v3026 = vsub.s32 %v3023, %v3025
    %v3027 = vrot.slane %v3013, %v3026
    %v3028 = vcombine.high %v3020, %v3020
    %v3029 = vcombine.high %v3027, %v3027
    %v3031 = vunpack.c.l.s4 1966171168
    %v3032 = vunpack.c.0.s8 %v3031
    %v3033 = vlaneseq
    %v3034 = vshrl.u32 %v3033, 7
    %v3035 = vsub.s32 %v3032, %v3034
    %v3036 = vrot.slane %v3020, %v3035
    %v3038 = vunpack.c.l.s4 1966171168
    %v3039 = vunpack.c.0.s8 %v3038
    %v3040 = vlaneseq
    %v3041 = vshrl.u32 %v3040, 7
    %v3042 = vsub.s32 %v3039, %v3041
    %v3043 = vrot.slane %v3027, %v3042
    %v3045 = vunpack.c.l.s4 1966171168
    %v3046 = vunpack.c.0.s8 %v3045
    %v3047 = vlaneseq
    %v3048 = vshrl.u32 %v3047, 7
    %v3049 = vsub.s32 %v3046, %v3048
    %v3050 = vrot.slane %v3028, %v3049
    %v3052 = vunpack.c.l.s4 1966171168
    %v3053 = vunpack.c.0.s8 %v3052
    %v3054 = vlaneseq
    %v3055 = vshrl.u32 %v3054, 7
    %v3056 = vsub.s32 %v3053, %v3055
    %v3057 = vrot.slane %v3029, %v3056
    %v3058 = vcombine.high %v3036, %v3036
    %v3059 = vcombine.high %v3050, %v3050
    %v3075 = vlaneseq
    %v3076 = vshrl.u32 %v3075, 7
    %v3077 = vsub.s32 0, %v3076
    %v3078 = vrot.slane %v2280, %v3077
    %v3079 = vcombine.high %v3078, %v3078
    %v3081 = vunpack.c.l.s4 1966171168
    %v3082 = vunpack.c.0.s8 %v3081
    %v3083 = vlaneseq
    %v3084 = vshrl.u32 %v3083, 7
    %v3085 = vsub.s32 %v3082, %v3084
    %v3086 = vrot.slane %v3078, %v3085
    %v3088 = vunpack.c.l.s4 1966171168
    %v3089 = vunpack.c.0.s8 %v3088
    %v3090 = vlaneseq
    %v3091 = vshrl.u32 %v3090, 7
    %v3092 = vsub.s32 %v3089, %v3091
    %v3093 = vrot.slane %v3079, %v3092
    %v3094 = vcombine.high %v3086, %v3086
    %v3095 = vcombine.high %v3093, %v3093
    %v3097 = vunpack.c.l.s4 1966171168
    %v3098 = vunpack.c.0.s8 %v3097
    %v3099 = vlaneseq
    %v3100 = vshrl.u32 %v3099, 7
    %v3101 = vsub.s32 %v3098, %v3100
    %v3102 = vrot.slane %v3086, %v3101
    %v3104 = vunpack.c.l.s4 1966171168
    %v3105 = vunpack.c.0.s8 %v3104
    %v3106 = vlaneseq
    %v3107 = vshrl.u32 %v3106, 7
    %v3108 = vsub.s32 %v3105, %v3107
    %v3109 = vrot.slane %v3093, %v3108
    %v3111 = vunpack.c.l.s4 1966171168
    %v3112 = vunpack.c.0.s8 %v3111
    %v3113 = vlaneseq
    %v3114 = vshrl.u32 %v3113, 7
    %v3115 = vsub.s32 %v3112, %v3114
    %v3116 = vrot.slane %v3094, %v3115
    %v3118 = vunpack.c.l.s4 1966171168
    %v3119 = vunpack.c.0.s8 %v3118
    %v3120 = vlaneseq
    %v3121 = vshrl.u32 %v3120, 7
    %v3122 = vsub.s32 %v3119, %v3121
    %v3123 = vrot.slane %v3095, %v3122
    %v3124 = vcombine.high %v3102, %v3102
    %v3125 = vcombine.high %v3109, %v3109
    %v3126 = vcombine.high %v3116, %v3116
    %v3134 = vadd.f32 %v2987, %v3102
    %v3135 = vadd.f32 %v3001, %v3116
    %v3136 = vadd.f32 %v3009, %v3124
    %v3137 = vadd.f32 %v3011, %v3126
    %v3138 = vadd.f32 %v2994, %v3109
    %v3139 = vadd.f32 %v3008, %v3123
    %v3140 = vadd.f32 %v3010, %v3125
    %v3141 = vadd.f32 %v3012, %v3102
    %v3142 = vadd.f32 %v3036, %v3116
    %v3143 = vadd.f32 %v3050, %v3124
    %v3144 = vadd.f32 %v3058, %v3126
    %v3145 = vadd.f32 %v3059, %v3109
    %v3146 = vadd.f32 %v3043, %v3123
    %v3147 = vadd.f32 %v3057, %v3125
    %v3153 = vunpack.c.l.s4 1966171168
    %v3154 = vunpack.c.0.s8 %v3153
    %v3155 = vlaneseq
    %v3156 = vshrl.u32 %v3155, 7
    %v3157 = vsub.s32 %v3154, %v3156
    %v3158 = vrot.slane %v1402, %v3157
    %v3159 = vcombine.high %v3158, %v3158
    %v3161 = vunpack.c.l.s4 1966171168
    %v3162 = vunpack.c.0.s8 %v3161
    %v3163 = vlaneseq
    %v3164 = vshrl.u32 %v3163, 7
    %v3165 = vsub.s32 %v3162, %v3164
    %v3166 = vrot.slane %v3158, %v3165
    %v3168 = vunpack.c.l.s4 1966171168
    %v3169 = vunpack.c.0.s8 %v3168
    %v3170 = vlaneseq
    %v3171 = vshrl.u32 %v3170, 7
    %v3172 = vsub.s32 %v3169, %v3171
    %v3173 = vrot.slane %v3159, %v3172
    %v3174 = vcombine.high %v3166, %v3166
    %v3175 = vcombine.high %v3173, %v3173
    %v3177 = vunpack.c.l.s4 1966171168
    %v3178 = vunpack.c.0.s8 %v3177
    %v3179 = vlaneseq
    %v3180 = vshrl.u32 %v3179, 7
    %v3181 = vsub.s32 %v3178, %v3180
    %v3182 = vrot.slane %v1409, %v3181
    %v3183 = vcombine.high %v3182, %v3182
    %v3185 = vunpack.c.l.s4 1966171168
    %v3186 = vunpack.c.0.s8 %v3185
    %v3187 = vlaneseq
    %v3188 = vshrl.u32 %v3187, 7
    %v3189 = vsub.s32 %v3186, %v3188
    %v3190 = vrot.slane %v3182, %v3189
    %v3192 = vunpack.c.l.s4 1966171168
    %v3193 = vunpack.c.0.s8 %v3192
    %v3194 = vlaneseq
    %v3195 = vshrl.u32 %v3194, 7
    %v3196 = vsub.s32 %v3193, %v3195
    %v3197 = vrot.slane %v3183, %v3196
    %v3198 = vcombine.high %v3190, %v3190
    %v3200 = vunpack.c.l.s4 1966171168
    %v3201 = vunpack.c.0.s8 %v3200
    %v3202 = vlaneseq
    %v3203 = vshrl.u32 %v3202, 7
    %v3204 = vsub.s32 %v3201, %v3203
    %v3205 = vrot.slane %v1416, %v3204
    %v3206 = vcombine.high %v3205, %v3205
    %v3208 = vunpack.c.l.s4 1966171168
    %v3209 = vunpack.c.0.s8 %v3208
    %v3210 = vlaneseq
    %v3211 = vshrl.u32 %v3210, 7
    %v3212 = vsub.s32 %v3209, %v3211
    %v3213 = vrot.slane %v3205, %v3212
    %v3215 = vunpack.c.l.s4 1966171168
    %v3216 = vunpack.c.0.s8 %v3215
    %v3217 = vlaneseq
    %v3218 = vshrl.u32 %v3217, 7
    %v3219 = vsub.s32 %v3216, %v3218
    %v3220 = vrot.slane %v3206, %v3219
    %v3221 = vcombine.high %v3213, %v3213
    %v3222 = vcombine.high %v3220, %v3220
    %v3224 = vunpack.c.l.s4 1966171168
    %v3225 = vunpack.c.0.s8 %v3224
    %v3226 = vlaneseq
    %v3227 = vshrl.u32 %v3226, 7
    %v3228 = vsub.s32 %v3225, %v3227
    %v3229 = vrot.slane %v1423, %v3228
    %v3230 = vcombine.high %v3229, %v3229
    %v3232 = vunpack.c.l.s4 1966171168
    %v3233 = vunpack.c.0.s8 %v3232
    %v3234 = vlaneseq
    %v3235 = vshrl.u32 %v3234, 7
    %v3236 = vsub.s32 %v3233, %v3235
    %v3237 = vrot.slane %v3229, %v3236
    %v3239 = vunpack.c.l.s4 1966171168
    %v3240 = vunpack.c.0.s8 %v3239
    %v3241 = vlaneseq
    %v3242 = vshrl.u32 %v3241, 7
    %v3243 = vsub.s32 %v3240, %v3242
    %v3244 = vrot.slane %v3230, %v3243
    %v3245 = vcombine.high %v3237, %v3237
    %v3260 = vadd.f32 %v3134, %v3166
    %v3261 = vadd.f32 %v3135, %v3173
    %v3262 = vadd.f32 %v3136, %v3174
    %v3263 = vadd.f32 %v3137, %v3175
    %v3264 = vadd.f32 %v3138, %v3190
    %v3265 = vadd.f32 %v3139, %v3197
    %v3266 = vadd.f32 %v3140, %v3198
    %v3267 = vadd.f32 %v3141, %v3213
    %v3268 = vadd.f32 %v3142, %v3220
    %v3269 = vadd.f32 %v3143, %v3221
    %v3270 = vadd.f32 %v3144, %v3222
    %v3271 = vadd.f32 %v3145, %v3237
    %v3272 = vadd.f32 %v3146, %v3244
    %v3273 = vadd.f32 %v3147, %v3245
    %v3288 = vcombine.low %v3260, %v3261
    %v3289 = vcombine.low %v3262, %v3263
    %v3290 = vcombine.low %v3264, %v3265
    %v3292 = vunpack.c.l.s4 1966171168
    %v3293 = vunpack.c.0.s8 %v3292
    %v3294 = vlaneseq
    %v3295 = vshrl.u32 %v3294, 7
    %v3296 = vsub.s32 %v3293, %v3295
    %v3297 = vrot.slane %v3288, %v3296
    %v3299 = vunpack.c.l.s4 1966171168
    %v3300 = vunpack.c.0.s8 %v3299
    %v3301 = vlaneseq
    %v3302 = vshrl.u32 %v3301, 7
    %v3303 = vsub.s32 %v3300, %v3302
    %v3304 = vrot.slane %v3289, %v3303
    %v3306 = vunpack.c.l.s4 1966171168
    %v3307 = vunpack.c.0.s8 %v3306
    %v3308 = vlaneseq
    %v3309 = vshrl.u32 %v3308, 7
    %v3310 = vsub.s32 %v3307, %v3309
    %v3311 = vrot.slane %v3290, %v3310
    %v3313 = vunpack.c.l.s4 1966171168
    %v3314 = vunpack.c.0.s8 %v3313
    %v3315 = vlaneseq
    %v3316 = vshrl.u32 %v3315, 7
    %v3317 = vsub.s32 %v3314, %v3316
    %v3318 = vrot.slane %v3266, %v3317
    %v3319 = vcombine.low %v3297, %v3304
    %v3320 = vcombine.low %v3311, %v3318
    %v3322 = vunpack.c.l.s4 1966171168
    %v3323 = vunpack.c.0.s8 %v3322
    %v3324 = vlaneseq
    %v3325 = vshrl.u32 %v3324, 7
    %v3326 = vsub.s32 %v3323, %v3325
    %v3327 = vrot.slane %v3319, %v3326
    %v3329 = vunpack.c.l.s4 1966171168
    %v3330 = vunpack.c.0.s8 %v3329
    %v3331 = vlaneseq
    %v3332 = vshrl.u32 %v3331, 7
    %v3333 = vsub.s32 %v3330, %v3332
    %v3334 = vrot.slane %v3320, %v3333
    %v3335 = vcombine.low %v3327, %v3334
    %v3336 = vcombine.low %v3267, %v3268
    %v3337 = vcombine.low %v3269, %v3270
    %v3338 = vcombine.low %v3271, %v3272
    %v3340 = vunpack.c.l.s4 1966171168
    %v3341 = vunpack.c.0.s8 %v3340
    %v3342 = vlaneseq
    %v3343 = vshrl.u32 %v3342, 7
    %v3344 = vsub.s32 %v3341, %v3343
    %v3345 = vrot.slane %v3336, %v3344
    %v3347 = vunpack.c.l.s4 1966171168
    %v3348 = vunpack.c.0.s8 %v3347
    %v3349 = vlaneseq
    %v3350 = vshrl.u32 %v3349, 7
    %v3351 = vsub.s32 %v3348, %v3350
    %v3352 = vrot.slane %v3337, %v3351
    %v3354 = vunpack.c.l.s4 1966171168
    %v3355 = vunpack.c.0.s8 %v3354
    %v3356 = vlaneseq
    %v3357 = vshrl.u32 %v3356, 7
    %v3358 = vsub.s32 %v3355, %v3357
    %v3359 = vrot.slane %v3338, %v3358
    %v3361 = vunpack.c.l.s4 1966171168
    %v3362 = vunpack.c.0.s8 %v3361
    %v3363 = vlaneseq
    %v3364 = vshrl.u32 %v3363, 7
    %v3365 = vsub.s32 %v3362, %v3364
    %v3366 = vrot.slane %v3273, %v3365
    %v3367 = vcombine.low %v3345, %v3352
    %v3368 = vcombine.low %v3359, %v3366
    %v3370 = vunpack.c.l.s4 1966171168
    %v3371 = vunpack.c.0.s8 %v3370
    %v3372 = vlaneseq
    %v3373 = vshrl.u32 %v3372, 7
    %v3374 = vsub.s32 %v3371, %v3373
    %v3375 = vrot.slane %v3367, %v3374
    %v3377 = vunpack.c.l.s4 1966171168
    %v3378 = vunpack.c.0.s8 %v3377
    %v3379 = vlaneseq
    %v3380 = vshrl.u32 %v3379, 7
    %v3381 = vsub.s32 %v3378, %v3380
    %v3382 = vrot.slane %v3368, %v3381
    %v3383 = vcombine.low %v3375, %v3382
    %v3386 = vsel %vm1366, %v3335, -inf
    %v3387 = vrot.slane %v3386, 4
    %v3388 = vmax.f32 %v3386, %v3387
    %v3389 = vrot.slane %v3388, 2
    %v3390 = vmax.f32 %v3388, %v3389
    %v3391 = vrot.slane %v3390, 1
    %v3392 = vmax.f32 %v3390, %v3391
    %v3393 = vsel %vm1366, %v3383, -inf
    %v3394 = vrot.slane %v3393, 4
    %v3395 = vmax.f32 %v3393, %v3394
    %v3396 = vrot.slane %v3395, 2
    %v3397 = vmax.f32 %v3395, %v3396
    %v3398 = vrot.slane %v3397, 1
    %v3399 = vmax.f32 %v3397, %v3398
    %v3400 = vpack.c.bf16 %v3392, %v3392
    %v3401 = vpack.c.bf16 %v3399, %v3399
    %v3402 = vld [vmem:[#allocation8] sm:$0xf]
    %v3403 = vld [vmem:[#allocation8 + $0x4] sm:$0xf]
    %v3404 = vld [vmem:[#allocation8 + $0x8] sm:$0xf]
    %v3405 = vld [vmem:[#allocation8 + $0xc] sm:$0xf]
    %v3406 = vld [vmem:[#allocation8 + $0x10] sm:$0xf]
    %v3407 = vld [vmem:[#allocation8 + $0x14] sm:$0xf]
    %v3408 = vld [vmem:[#allocation8 + $0x18] sm:$0xf]
    %v3409 = vld [vmem:[#allocation8 + $0x1c] sm:$0xf]
    %v3410 = vld [vmem:[#allocation8 + $0x20] sm:$0xf]
    %v3411 = vld [vmem:[#allocation8 + $0x24] sm:$0xf]
    %v3412 = vld [vmem:[#allocation8 + $0x28] sm:$0xf]
    %v3413 = vld [vmem:[#allocation8 + $0x2c] sm:$0xf]
    %v3414 = vld [vmem:[#allocation8 + $0x30] sm:$0xf]
    %v3415 = vld [vmem:[#allocation8 + $0x34] sm:$0xf]
    %v3416 = vld [vmem:[#allocation8 + $0x38] sm:$0xf]
    %v3417 = vld [vmem:[#allocation8 + $0x3c] sm:$0xf]
    %v3418 = vld [vmem:[%s6] sm:$0x1]
    %v3420 = vlaneseq
    %v3421 = vshrl.u32 %v3420, 7
    %v3422 = vsub.s32 0, %v3421
    %v3423 = vrot.slane %v3418, %v3422
    %v3427 = vunpack.c.l.b16 %v3400
    %v3428 = vunpack.c.l.b16 %v3401
    %vm3429 = vcmask 1041409
    %v3430 = vsel %vm3429, %v3428, %v3427
    %v3431 = vpack.c.b16 %v3430, %v3430
    %v3449 = vunpack.c.l.b16 %v3402
    %v3450 = vunpack.c.l.b16 %v3403
    %v3451 = vunpack.c.l.b16 %v3404
    %v3452 = vunpack.c.l.b16 %v3405
    %v3453 = vunpack.c.l.b16 %v3406
    %v3454 = vunpack.c.l.b16 %v3407
    %v3455 = vunpack.c.l.b16 %v3408
    %v3456 = vunpack.c.l.b16 %v3409
    %v3457 = vunpack.c.l.b16 %v3410
    %v3458 = vunpack.c.l.b16 %v3411
    %v3459 = vunpack.c.l.b16 %v3412
    %v3460 = vunpack.c.l.b16 %v3413
    %v3461 = vunpack.c.l.b16 %v3414
    %v3462 = vunpack.c.l.b16 %v3415
    %v3463 = vunpack.c.l.b16 %v3416
    %v3464 = vunpack.c.l.b16 %v3417
    %v3465 = vpack.c.b16 %v3450, %v3449
    %v3466 = vpack.c.b16 %v3452, %v3451
    %v3467 = vpack.c.b16 %v3454, %v3453
    %v3468 = vpack.c.b16 %v3456, %v3455
    %v3469 = vpack.c.b16 %v3458, %v3457
    %v3470 = vpack.c.b16 %v3460, %v3459
    %v3471 = vpack.c.b16 %v3462, %v3461
    %v3472 = vpack.c.b16 %v3464, %v3463
    %3481 = vmatprep.subr.bf16.mxu0 0
    %3482 = vmatpush1.bf16.msra.mxu0 %v3472
    %3483 = vmatprep.subr.bf16.mxu0 0
    %3484 = vmatpush1.bf16.msra.mxu0 %v3471
    %3485 = vmatprep.subr.bf16.mxu0 0
    %3486 = vmatpush1.bf16.msra.mxu0 %v3470
    %3487 = vmatprep.subr.bf16.mxu0 0
    %3488 = vmatpush1.bf16.msra.mxu0 %v3469
    %3489 = vmatprep.subr.bf16.mxu0 0
    %3490 = vmatpush1.bf16.msra.mxu0 %v3468
    %3491 = vmatprep.subr.bf16.mxu0 0
    %3492 = vmatpush1.bf16.msra.mxu0 %v3467
    %3493 = vmatprep.subr.bf16.mxu0 0
    %3494 = vmatpush1.bf16.msra.mxu0 %v3466
    %3495 = vmatprep.subr.bf16.mxu0 0
    %3496 = vmatpush1.bf16.msra.mxu0 %v3465
    %3497 = vmatprep.subr.bf16.mxu0 0
    %3498 = vmatpush2.bf16.msra.mxu0 0
    %3499 = vmatprep.subr.bf16.mxu0 0
    %3500 = vmatpush2.bf16.msra.mxu0 0
    %3501 = vmatprep.subr.bf16.mxu0 0
    %3502 = vmatpush2.bf16.msra.mxu0 0
    %3503 = vmatprep.subr.bf16.mxu0 0
    %3504 = vmatpush2.bf16.msra.mxu0 0
    %3505 = vmatprep.subr.bf16.mxu0 0
    %3506 = vmatpush2.bf16.msra.mxu0 0
    %3507 = vmatprep.subr.bf16.mxu0 0
    %3508 = vmatpush2.bf16.msra.mxu0 0
    %3509 = vmatprep.subr.bf16.mxu0 0
    %3510 = vmatpush2.bf16.msra.mxu0 0
    %3511 = vmatprep.subr.bf16.mxu0 0
    %3512 = vmatpush2.bf16.msra.mxu0 0
    %3513 = vmatprep.mubr.bf16.mxu0 0
    %3514 = vmatmul.mubr.bf16.gmra.mxu0 %v3431
    %v3515 = vpop.f32.mrf.mxu0
    %v3516 = vadd.f32 %v3423, %v3515
    %v3517 = vpop.f32.mrf.mxu0
    %v3518 = vpop.f32.mrf.mxu0
    %v3519 = vpop.f32.mrf.mxu0
    %3520 = vdwg.mxu0
    %3521 = vst [vmem:[#allocation10] sm:$0x3] %v3516
    // Predicated region
    $region46: #{tpu_custom_call.1} parent=1 // pred_check
      _
    $region47: #{tpu_custom_call.1} parent=1 // pred_check_branch
      %3523 = sbr.rel (0) target = $region49
    $region48: #{tpu_custom_call.1} parent=1 // pred_region
      %s3525 = ssub.s32 32, 32
      %3526 = vsyncadd [#allocation4], %s3525
      %s3528 = sshll.u32 [#allocation10], 4
      %s3529 = int_to_ptr.vmem [resolvable:$true] %s3528
      %3531 = dma.vmem_to_hbm [thread:$0]  %s3529, 32, %s7, [#allocation4]
    $region49: #{tpu_custom_call.1} parent=1 // pred_fallthru
      _
    // Predicated region
    $region50: #{tpu_custom_call.1} parent=1 // pred_check
      _
    $region51: #{tpu_custom_call.1} parent=1 // pred_check_branch
      %3533 = sbr.rel (0) target = $region53
    $region52: #{tpu_custom_call.1} parent=1 // pred_region
      %3534 = dma.done [#allocation4], 32
    $region53: #{tpu_custom_call.1} parent=1 // pred_fallthru
      _
    %3535 = vsyncpa [#allocation3], 1
    %3536 = vsyncpa [#allocation6], 1
    %3537 = vsyncpa [#allocation9], 1
    %3538 = vsyncpa [#allocation4], 1

</llo_original>
